<compile_context>
chip_gen: v7x
topology: tpu7x:2x2x1
jax: 0.10.0
libtpu: 0.0.40
codegen_flags: <defaults>
</compile_context>

<pallas_src>
import functools

import numpy as np
import jax
import jax.numpy as jnp
from jax.experimental import pallas as pl
from jax.experimental.pallas import tpu as pltpu

EPS = 1e-5
LANE = 128


def _round_up(x, m):
    return ((x + m - 1) // m) * m


def _default_vmem_limit():
    # Generation-aware VMEM budget: ~3/4 of physical, capped at 96 MiB.
    try:
        cap = int(pltpu.get_tpu_info().vmem_capacity_bytes)
    except Exception:
        cap = 128 << 20
    return max(32 << 20, min(96 << 20, (cap * 3) // 4))


_VMEM_LIMIT = _default_vmem_limit()


def _bn_apply(y, gamma_row, beta_row):
    """Single-pass training-mode BatchNorm over the row axis (biased variance):
    var = E[y^2] - mean^2, folded into one y*scale + bias pass."""
    mean = jnp.mean(y, axis=0, keepdims=True)
    var = jnp.maximum(jnp.mean(y * y, axis=0, keepdims=True) - mean * mean, 0.0)
    scale = gamma_row * jax.lax.rsqrt(var + EPS)
    return y * scale + (beta_row - mean * scale)


# ----------------------------------------------------------------------------
# Kernel 1: conv1 (1x1) as a tiled matmul + BN + sigmoid.
# Grid = (N-tiles ["parallel"], K-blocks ["arbitrary"]); f32 scratch accumulator
# resident per N tile; bf16 streamed operands; bf16 output.
# ----------------------------------------------------------------------------
def matmul_bn_act_kernel(x_ref, w_ref, g_ref, b_ref, out_ref, acc_ref, *, act):
    k = pl.program_id(1)

    @pl.when(k == 0)
    def _init():
        acc_ref[...] = jnp.zeros_like(acc_ref)

    acc_ref[...] += jnp.dot(
        x_ref[...], w_ref[...], preferred_element_type=jnp.float32
    )

    @pl.when(k == pl.num_programs(1) - 1)
    def _finalize():
        y = acc_ref[...]
        z = _bn_apply(y, g_ref[...], b_ref[...])
        if act == "sigmoid":
            z = jax.nn.sigmoid(z)
        out_ref[...] = z.astype(out_ref.dtype)


def _choose_kb(M, K, nb, budget_bytes):
    """Pick the K block so the resident set (f32 acc + bf16 out block, both
    (M,nb)) plus double-buffered streamed bf16 (M,kb)/(kb,nb) blocks fits."""
    fixed = 4 * M * nb + 2 * M * nb
    avail = budget_bytes - fixed
    per_kb = 2 * 2 * (M + nb)          # bytes per unit of kb (2 bufs, bf16)
    cap = avail // per_kb if avail > 0 else LANE
    cap = int(max(LANE, min(cap, 4096)))
    if K <= cap:
        return K, K                     # single K step, no padding
    kb = (cap // LANE) * LANE
    return kb, _round_up(K, kb)


def matmul_bn_act(xm, wm, gamma, beta, act):
    """xm: (M, K) float; wm: (K, C) f32. Returns (M, C) bf16 = act(bn(xm @ wm))."""
    M, K = xm.shape
    C = wm.shape[1]
    Cp = _round_up(C, LANE)
    nb = LANE                           # 128-lane N tiles -> megacore-splittable
    nt = Cp // nb
    kb, Kp = _choose_kb(M, K, nb, budget_bytes=_VMEM_LIMIT // 2)
    kt = Kp // kb

    x_bf = xm.astype(jnp.bfloat16)
    if Kp > K:
        x_bf = jnp.pad(x_bf, ((0, 0), (0, Kp - K)))
    wp = jnp.pad(wm, ((0, Kp - K), (0, Cp - C))).astype(jnp.bfloat16)
    gp = jnp.pad(gamma.reshape(1, C).astype(jnp.float32),
                 ((0, 0), (0, Cp - C)), constant_values=1.0)
    bp = jnp.pad(beta.reshape(1, C).astype(jnp.float32), ((0, 0), (0, Cp - C)))

    out = pl.pallas_call(
        functools.partial(matmul_bn_act_kernel, act=act),
        out_shape=jax.ShapeDtypeStruct((M, Cp), jnp.bfloat16),
        grid_spec=pltpu.PrefetchScalarGridSpec(
            num_scalar_prefetch=0,
            grid=(nt, kt),
            in_specs=[
                pl.BlockSpec((M, kb), lambda n, k: (0, k)),
                pl.BlockSpec((kb, nb), lambda n, k: (k, n)),
                pl.BlockSpec((1, nb), lambda n, k: (0, n)),
                pl.BlockSpec((1, nb), lambda n, k: (0, n)),
            ],
            out_specs=pl.BlockSpec((M, nb), lambda n, k: (0, n)),
            scratch_shapes=[pltpu.VMEM((M, nb), jnp.float32)],
        ),
        compiler_params=pltpu.CompilerParams(
            dimension_semantics=("parallel", "arbitrary"),
            vmem_limit_bytes=_VMEM_LIMIT,
        ),
    )(x_bf, wp, gp, bp)
    return out[:, :C]


# ----------------------------------------------------------------------------
# Kernel 2: fused  conv2(3x3, 9 in-kernel taps) + bn2 + sigmoid
#                + conv3(1x1) + bn3 + shortcut(+conv/bn) + add + sigmoid.
# All operands are resident (BN needs full M anyway); no HBM intermediates.
# ----------------------------------------------------------------------------
def _conv2_9tap(src, w2, g2, b2, taps, B, Ho, Wo):
    """src: (G*B, Hs, Ws, P) bf16 space-to-depth planes of padded h1;
    w2: (9, P, Pp) bf16. Returns sigmoid(bn2(conv2)) as (M2, Pp) bf16."""
    P = src.shape[-1]
    M2 = B * Ho * Wo
    acc = None
    for t, (g, dy, dx) in enumerate(taps):
        tap = src[g * B:(g + 1) * B, dy:dy + Ho, dx:dx + Wo, :].reshape(M2, P)
        contrib = jnp.dot(tap, w2[t], preferred_element_type=jnp.float32)
        acc = contrib if acc is None else acc + contrib
    return jax.nn.sigmoid(_bn_apply(acc, g2, b2)).astype(jnp.bfloat16)


def fused_tail_proj_kernel(src_ref, w2_ref, g2_ref, b2_ref,
                           w3_ref, g3_ref, b3_ref,
                           xs_ref, wsc_ref, gsc_ref, bsc_ref,
                           out_ref, *, taps, dims):
    B, Ho, Wo = dims
    h2 = _conv2_9tap(src_ref[...], w2_ref[...], g2_ref[...], b2_ref[...],
                     taps, B, Ho, Wo)
    y3 = _bn_apply(jnp.dot(h2, w3_ref[...], preferred_element_type=jnp.float32),
                   g3_ref[...], b3_ref[...])
    ysc = _bn_apply(jnp.dot(xs_ref[...], wsc_ref[...],
                            preferred_element_type=jnp.float32),
                    gsc_ref[...], bsc_ref[...])
    out_ref[...] = jax.nn.sigmoid(y3 + ysc)


def fused_tail_identity_kernel(src_ref, w2_ref, g2_ref, b2_ref,
                               w3_ref, g3_ref, b3_ref,
                               xs_ref, out_ref, *, taps, dims):
    B, Ho, Wo = dims
    h2 = _conv2_9tap(src_ref[...], w2_ref[...], g2_ref[...], b2_ref[...],
                     taps, B, Ho, Wo)
    y3 = _bn_apply(jnp.dot(h2, w3_ref[...], preferred_element_type=jnp.float32),
                   g3_ref[...], b3_ref[...])
    out_ref[...] = jax.nn.sigmoid(y3 + xs_ref[...])


def _full_spec(shape):
    zeros = (0,) * len(shape)
    return pl.BlockSpec(shape, lambda i, _z=zeros: _z)


def fused_tail(src, w2m, g2, b2, w3m, g3, b3, taps, dims, *, xs, proj):
    """src: (G*B, Hs, Ws, P) bf16; w2m: (9, P, P) f32; w3m: (P, Cout) f32."""
    B, Ho, Wo = dims
    P = src.shape[-1]
    Cout = w3m.shape[1]
    M2 = B * Ho * Wo
    Pp = _round_up(P, LANE)
    Cp = _round_up(Cout, LANE)

    w2p = jnp.pad(w2m, ((0, 0), (0, 0), (0, Pp - P))).astype(jnp.bfloat16)
    g2p = jnp.pad(g2.reshape(1, P).astype(jnp.float32),
                  ((0, 0), (0, Pp - P)), constant_values=1.0)
    b2p = jnp.pad(b2.reshape(1, P).astype(jnp.float32), ((0, 0), (0, Pp - P)))
    w3p = jnp.pad(w3m, ((0, Pp - P), (0, Cp - Cout))).astype(jnp.bfloat16)
    g3p = jnp.pad(g3.reshape(1, Cout).astype(jnp.float32),
                  ((0, 0), (0, Cp - Cout)), constant_values=1.0)
    b3p = jnp.pad(b3.reshape(1, Cout).astype(jnp.float32),
                  ((0, 0), (0, Cp - Cout)))

    cp = pltpu.CompilerParams(dimension_semantics=("arbitrary",),
                              vmem_limit_bytes=_VMEM_LIMIT)
    out_shape = jax.ShapeDtypeStruct((M2, Cp), jnp.float32)

    if proj is not None:
        wscm, gsc, bsc = proj
        xs_b = xs.astype(jnp.bfloat16)
        wscp = jnp.pad(wscm, ((0, 0), (0, Cp - Cout))).astype(jnp.bfloat16)
        gscp = jnp.pad(gsc.reshape(1, Cout).astype(jnp.float32),
                       ((0, 0), (0, Cp - Cout)), constant_values=1.0)
        bscp = jnp.pad(bsc.reshape(1, Cout).astype(jnp.float32),
                       ((0, 0), (0, Cp - Cout)))
        args = (src, w2p, g2p, b2p, w3p, g3p, b3p, xs_b, wscp, gscp, bscp)
        kern = functools.partial(fused_tail_proj_kernel, taps=taps, dims=dims)
    else:
        xs_f = jnp.pad(xs.astype(jnp.float32), ((0, 0), (0, Cp - Cout)))
        args = (src, w2p, g2p, b2p, w3p, g3p, b3p, xs_f)
        kern = functools.partial(fused_tail_identity_kernel, taps=taps, dims=dims)

    return pl.pallas_call(
        kern,
        out_shape=out_shape,
        grid=(1,),
        in_specs=[_full_spec(a.shape) for a in args],
        out_specs=_full_spec((M2, Cp)),
        compiler_params=cp,
    )(*args)


# ----------------------------------------------------------------------------
# Bottleneck forward (glue: NCHW<->NHWC, pad + space-to-depth; no im2col)
# ----------------------------------------------------------------------------
@functools.partial(jax.jit, static_argnames=("stride",))
def bottleneck_forward(x_nchw, params, stride):
    (w1, g1, b1), (w2, g2, b2), (w3, g3, b3), shortcut = params
    B, Cin, H, W = x_nchw.shape
    planes = w1.shape[0]
    Cout = w3.shape[0]
    s = stride

    x = jnp.transpose(x_nchw, (0, 2, 3, 1))                    # NHWC f32
    M1 = B * H * W

    # ---- stage 1: conv1 (1x1) + bn1 + sigmoid (streamed matmul kernel) ------
    w1m = jnp.transpose(w1.reshape(planes, Cin))                # (Cin, planes)
    h1 = matmul_bn_act(x.reshape(M1, Cin), w1m, g1, b1, act="sigmoid")
    h1 = h1.reshape(B, H, W, planes)                            # bf16

    # ---- stages 2+3 prep: spatial pad (conv pad=1) + space-to-depth ---------
    Ho = (H + 2 - 3) // s + 1
    Wo = (W + 2 - 3) // s + 1
    Hp = _round_up(H + 2, s)
    Wp = _round_up(W + 2, s)
    h1p = jnp.pad(h1, ((0, 0), (1, Hp - H - 1), (1, Wp - W - 1), (0, 0)))
    Hs, Ws = Hp // s, Wp // s
    src = h1p.reshape(B, Hs, s, Ws, s, planes)
    src = jnp.transpose(src, (2, 4, 0, 1, 3, 5))                # (s, s, B, Hs, Ws, P)
    src = src.reshape(s * s * B, Hs, Ws, planes)                # group-major, bf16
    # tap (ky,kx) -> (group, dy, dx): group = (ky%s)*s + kx%s, offsets ky//s, kx//s
    taps = tuple(((ky % s) * s + (kx % s), ky // s, kx // s)
                 for ky in range(3) for kx in range(3))

    w2m = jnp.transpose(w2, (2, 3, 1, 0)).reshape(9, planes, planes)
    w3m = jnp.transpose(w3.reshape(Cout, planes))               # (planes, Cout)
    M2 = B * Ho * Wo
    dims = (B, Ho, Wo)

    # ---- stages 2+3: fused conv2+bn2+sigmoid+conv3+bn3+shortcut+add+sigmoid -
    if shortcut is not None:
        wsc, gsc, bsc = shortcut
        xs = x[:, ::s, ::s, :].reshape(M2, Cin)
        wscm = jnp.transpose(wsc.reshape(Cout, Cin))            # (Cin, Cout)
        out = fused_tail(src, w2m, g2, b2, w3m, g3, b3, taps, dims,
                         xs=xs, proj=(wscm, gsc, bsc))
    else:
        xs = x.reshape(M2, Cout)
        out = fused_tail(src, w2m, g2, b2, w3m, g3, b3, taps, dims,
                         xs=xs, proj=None)

    out = out[:, :Cout].reshape(B, Ho, Wo, Cout)
    return jnp.transpose(out, (0, 3, 1, 2))                     # NCHW f32


# ----------------------------------------------------------------------------
# Pure-JAX reference (mirrors the PyTorch module, training-mode BN, f32)
# ----------------------------------------------------------------------------
def ref_bottleneck(x, params, stride):
    (w1, g1, b1), (w2, g2, b2), (w3, g3, b3), shortcut = params

    def conv(x, w, s=1, p=0):
        return jax.lax.conv_general_dilated(
            x, w, (s, s), [(p, p), (p, p)],
            dimension_numbers=("NCHW", "OIHW", "NCHW"),
            precision=jax.lax.Precision.HIGHEST)

    def bn(y, g, b):
        mean = jnp.mean(y, axis=(0, 2, 3), keepdims=True)
        var = jnp.mean(jnp.square(y - mean), axis=(0, 2, 3), keepdims=True)
        return ((y - mean) * jax.lax.rsqrt(var + EPS)
                * g.reshape(1, -1, 1, 1) + b.reshape(1, -1, 1, 1))

    out = jax.nn.sigmoid(bn(conv(x, w1), g1, b1))
    out = jax.nn.sigmoid(bn(conv(out, w2, stride, 1), g2, b2))
    out = bn(conv(out, w3), g3, b3)
    if shortcut is not None:
        wsc, gsc, bsc = shortcut
        sc = bn(conv(x, wsc, stride), gsc, bsc)
    else:
        sc = x
    return jax.nn.sigmoid(out + sc)


# ----------------------------------------------------------------------------
# Parameter init (torch layouts; BN params perturbed to exercise the code paths)
# ----------------------------------------------------------------------------
def init_params(key, in_planes, planes, stride, expansion=4):
    keys = jax.random.split(key, 8)

    def w(k, shape):
        return jax.random.normal(k, shape, jnp.float32) * 0.1

    def gb(k, c):
        g = 1.0 + 0.1 * jax.random.normal(k, (c,), jnp.float32)
        b = 0.1 * jax.random.normal(jax.random.fold_in(k, 1), (c,), jnp.float32)
        return g, b

    w1 = w(keys[0], (planes, in_planes, 1, 1)); g1, b1 = gb(keys[1], planes)
    w2 = w(keys[2], (planes, planes, 3, 3));    g2, b2 = gb(keys[3], planes)
    w3 = w(keys[4], (expansion * planes, planes, 1, 1)); g3, b3 = gb(keys[5], expansion * planes)
    if stride != 1 or in_planes != expansion * planes:
        wsc = w(keys[6], (expansion * planes, in_planes, 1, 1))
        gsc, bsc = gb(keys[7], expansion * planes)
        shortcut = (wsc, gsc, bsc)
    else:
        shortcut = None
    return ((w1, g1, b1), (w2, g2, b2), (w3, g3, b3), shortcut)


if __name__ == "__main__":
    key = jax.random.PRNGKey(0)
    k1, k2, k3, k4 = jax.random.split(key, 4)

    # Tolerances reflect bf16 MXU operands (f32 accumulation) vs the f32 reference.
    RTOL = ATOL = 2e-2

    # Config A: projection shortcut (stride=2, in_planes != expansion*planes)
    in_planes, planes, stride = 32, 16, 2
    params_a = init_params(k1, in_planes, planes, stride)
    x_a = jax.random.normal(k2, (2, in_planes, 16, 16), jnp.float32)
    out_a = jax.block_until_ready(bottleneck_forward(x_a, params_a, stride))
    ref_a = jax.block_until_ready(ref_bottleneck(x_a, params_a, stride))
    assert out_a.shape == (2, 64, 8, 8), out_a.shape
    assert bool(jnp.all(jnp.isfinite(out_a)))
    np.testing.assert_allclose(np.asarray(out_a), np.asarray(ref_a),
                               rtol=RTOL, atol=ATOL)

    # Config B: identity shortcut (stride=1, in_planes == expansion*planes)
    in_planes_b, planes_b, stride_b = 64, 16, 1
    params_b = init_params(k3, in_planes_b, planes_b, stride_b)
    x_b = jax.random.normal(k4, (2, in_planes_b, 16, 16), jnp.float32)
    out_b = jax.block_until_ready(bottleneck_forward(x_b, params_b, stride_b))
    ref_b = jax.block_until_ready(ref_bottleneck(x_b, params_b, stride_b))
    assert out_b.shape == (2, 64, 16, 16), out_b.shape
    assert bool(jnp.all(jnp.isfinite(out_b)))
    np.testing.assert_allclose(np.asarray(out_b), np.asarray(ref_b),
                               rtol=RTOL, atol=ATOL)

    print("KERNEL_OK")
</pallas_src>

<mosaic_0001>
module attributes {stable_mosaic.version = 11 : i64} {
  func.func @matmul_bn_act_kernel(%arg0: i32, %arg1: i32, %arg2: memref<512x32xbf16, #tpu.memory_space<vmem>>, %arg3: memref<32x128xbf16, #tpu.memory_space<vmem>>, %arg4: memref<1x128xf32, #tpu.memory_space<vmem>>, %arg5: memref<1x128xf32, #tpu.memory_space<vmem>>, %arg6: memref<512x128xbf16, #tpu.memory_space<vmem>>, %arg7: memref<512x128xf32, #tpu.memory_space<vmem>>) attributes {dimension_semantics = [#tpu.dimension_semantics<parallel>, #tpu.dimension_semantics<arbitrary>], iteration_bounds = array<i64: 1, 1>, scalar_prefetch = 0 : i64, scratch_operands = 1 : i64, tpu.core_type = #tpu.core_type<tc>, window_params = [{transform_indices = @transform_0, window_bounds = array<i64: 512, 32>}, {transform_indices = @transform_1, window_bounds = array<i64: 32, 128>}, {transform_indices = @transform_2, window_bounds = array<i64: 1, 128>}, {transform_indices = @transform_3, window_bounds = array<i64: 1, 128>}, {transform_indices = @transform_4, window_bounds = array<i64: 512, 128>}]} {
    %c0_i32 = arith.constant 0 : i32
    %0 = arith.cmpi eq, %arg1, %c0_i32 : i32
    %1 = arith.extui %0 : i1 to i32
    %c0_i32_0 = arith.constant 0 : i32
    %2 = arith.cmpi ne, %1, %c0_i32_0 : i32
    scf.if %2 {
      %cst_10 = arith.constant 0.000000e+00 : f32
      %12 = vector.broadcast %cst_10 : f32 to vector<512x128xf32>
      %c0_11 = arith.constant 0 : index
      %c0_12 = arith.constant 0 : index
      %13 = vector.load %arg7[%c0_11, %c0_12] : memref<512x128xf32, #tpu.memory_space<vmem>>, vector<512x128xf32>
      tpu.vector_store %arg7[%c0_11, %c0_12], %12 {strides = array<i32>} : memref<512x128xf32, #tpu.memory_space<vmem>>, vector<512x128xf32>,
    } else {
    }
    %c0 = arith.constant 0 : index
    %c0_1 = arith.constant 0 : index
    %3 = vector.load %arg7[%c0, %c0_1] : memref<512x128xf32, #tpu.memory_space<vmem>>, vector<512x128xf32>
    %c0_2 = arith.constant 0 : index
    %c0_3 = arith.constant 0 : index
    %4 = vector.load %arg2[%c0_2, %c0_3] : memref<512x32xbf16, #tpu.memory_space<vmem>>, vector<512x32xbf16>
    %c0_4 = arith.constant 0 : index
    %c0_5 = arith.constant 0 : index
    %5 = vector.load %arg3[%c0_4, %c0_5] : memref<32x128xbf16, #tpu.memory_space<vmem>>, vector<32x128xbf16>
    %cst = arith.constant dense<0.000000e+00> : vector<512x128xf32>
    %6 = tpu.matmul %4, %5, %cst {dimension_numbers = #tpu.dot_dimension_numbers<[1], [0], [0], [1], [0, 0, 1, 1], [], []>} : vector<512x32xbf16>, vector<32x128xbf16>, vector<512x128xf32> -> vector<512x128xf32>
    %7 = arith.addf %3, %6 : vector<512x128xf32>
    %c0_6 = arith.constant 0 : index
    %c0_7 = arith.constant 0 : index
    %8 = vector.load %arg7[%c0_6, %c0_7] : memref<512x128xf32, #tpu.memory_space<vmem>>, vector<512x128xf32>
    tpu.vector_store %arg7[%c0_6, %c0_7], %7 {strides = array<i32>} : memref<512x128xf32, #tpu.memory_space<vmem>>, vector<512x128xf32>,
    %c0_i32_8 = arith.constant 0 : i32
    %9 = arith.cmpi eq, %arg1, %c0_i32_8 : i32
    %10 = arith.extui %9 : i1 to i32
    %c0_i32_9 = arith.constant 0 : i32
    %11 = arith.cmpi ne, %10, %c0_i32_9 : i32
    scf.if %11 {
      %c0_10 = arith.constant 0 : index
      %c0_11 = arith.constant 0 : index
      %12 = vector.load %arg7[%c0_10, %c0_11] : memref<512x128xf32, #tpu.memory_space<vmem>>, vector<512x128xf32>
      %c0_12 = arith.constant 0 : index
      %c0_13 = arith.constant 0 : index
      %13 = vector.load %arg4[%c0_12, %c0_13] : memref<1x128xf32, #tpu.memory_space<vmem>>, vector<1x128xf32>
      %c0_14 = arith.constant 0 : index
      %c0_15 = arith.constant 0 : index
      %14 = vector.load %arg5[%c0_14, %c0_15] : memref<1x128xf32, #tpu.memory_space<vmem>>, vector<1x128xf32>
      %cst_16 = arith.constant dense<0.000000e+00> : vector<128xf32>
      %15 = vector.multi_reduction <add>, %12, %cst_16 [0] : vector<512x128xf32> to vector<128xf32>
      %16 = vector.shape_cast %15 : vector<128xf32> to vector<1x128xf32>
      %cst_17 = arith.constant 5.120000e+02 : f32
      %17 = vector.broadcast %cst_17 : f32 to vector<1x128xf32>
      %18 = arith.divf %16, %17 : vector<1x128xf32>
      %19 = arith.mulf %12, %12 : vector<512x128xf32>
      %cst_18 = arith.constant dense<0.000000e+00> : vector<128xf32>
      %20 = vector.multi_reduction <add>, %19, %cst_18 [0] : vector<512x128xf32> to vector<128xf32>
      %21 = vector.shape_cast %20 : vector<128xf32> to vector<1x128xf32>
      %cst_19 = arith.constant 5.120000e+02 : f32
      %22 = vector.broadcast %cst_19 : f32 to vector<1x128xf32>
      %23 = arith.divf %21, %22 : vector<1x128xf32>
      %24 = arith.mulf %18, %18 : vector<1x128xf32>
      %25 = arith.subf %23, %24 : vector<1x128xf32>
      %cst_20 = arith.constant 0.000000e+00 : f32
      %26 = vector.broadcast %cst_20 : f32 to vector<1x128xf32>
      %27 = arith.maximumf %25, %26 : vector<1x128xf32>
      %cst_21 = arith.constant 9.99999974E-6 : f32
      %28 = vector.broadcast %cst_21 : f32 to vector<1x128xf32>
      %29 = arith.addf %27, %28 : vector<1x128xf32>
      %30 = math.rsqrt %29 : vector<1x128xf32>
      %31 = arith.mulf %13, %30 : vector<1x128xf32>
      %32 = vector.broadcast %31 : vector<1x128xf32> to vector<512x128xf32>
      %33 = arith.mulf %12, %32 : vector<512x128xf32>
      %34 = arith.mulf %18, %31 : vector<1x128xf32>
      %35 = arith.subf %14, %34 : vector<1x128xf32>
      %36 = vector.broadcast %35 : vector<1x128xf32> to vector<512x128xf32>
      %37 = arith.addf %33, %36 : vector<512x128xf32>
      %38 = arith.negf %37 : vector<512x128xf32>
      %39 = math.exp %38 : vector<512x128xf32>
      %cst_22 = arith.constant 1.000000e+00 : f32
      %40 = vector.broadcast %cst_22 : f32 to vector<512x128xf32>
      %41 = arith.addf %40, %39 : vector<512x128xf32>
      %42 = arith.divf %40, %41 : vector<512x128xf32>
      %43 = arith.truncf %42 : vector<512x128xf32> to vector<512x128xbf16>
      %c0_23 = arith.constant 0 : index
      %c0_24 = arith.constant 0 : index
      %44 = vector.load %arg6[%c0_23, %c0_24] : memref<512x128xbf16, #tpu.memory_space<vmem>>, vector<512x128xbf16>
      tpu.vector_store %arg6[%c0_23, %c0_24], %43 {strides = array<i32>} : memref<512x128xbf16, #tpu.memory_space<vmem>>, vector<512x128xbf16>,
    } else {
    }
    return
  }
  func.func @transform_0(%arg0: i32, %arg1: i32) -> (i32, i32) {
    %c0_i32 = arith.constant 0 : i32
    %c0_i32_0 = arith.constant 0 : i32
    return %c0_i32, %arg1 : i32, i32
  }
  func.func @transform_1(%arg0: i32, %arg1: i32) -> (i32, i32) {
    %c0_i32 = arith.constant 0 : i32
    return %arg1, %arg0 : i32, i32
  }
  func.func @transform_2(%arg0: i32, %arg1: i32) -> (i32, i32) {
    %c0_i32 = arith.constant 0 : i32
    %c0_i32_0 = arith.constant 0 : i32
    return %c0_i32, %arg0 : i32, i32
  }
  func.func @transform_3(%arg0: i32, %arg1: i32) -> (i32, i32) {
    %c0_i32 = arith.constant 0 : i32
    %c0_i32_0 = arith.constant 0 : i32
    return %c0_i32, %arg0 : i32, i32
  }
  func.func @transform_4(%arg0: i32, %arg1: i32) -> (i32, i32) {
    %c0_i32 = arith.constant 0 : i32
    %c0_i32_0 = arith.constant 0 : i32
    return %c0_i32, %arg0 : i32, i32
  }
}

module attributes {stable_mosaic.version = 11 : i64} {
  func.func @fused_tail_proj_kernel(%arg0: i32, %arg1: memref<8x9x9x16xbf16, #tpu.memory_space<vmem>>, %arg2: memref<9x16x128xbf16, #tpu.memory_space<vmem>>, %arg3: memref<1x128xf32, #tpu.memory_space<vmem>>, %arg4: memref<1x128xf32, #tpu.memory_space<vmem>>, %arg5: memref<128x128xbf16, #tpu.memory_space<vmem>>, %arg6: memref<1x128xf32, #tpu.memory_space<vmem>>, %arg7: memref<1x128xf32, #tpu.memory_space<vmem>>, %arg8: memref<128x32xbf16, #tpu.memory_space<vmem>>, %arg9: memref<32x128xbf16, #tpu.memory_space<vmem>>, %arg10: memref<1x128xf32, #tpu.memory_space<vmem>>, %arg11: memref<1x128xf32, #tpu.memory_space<vmem>>, %arg12: memref<128x128xf32, #tpu.memory_space<vmem>>) attributes {dimension_semantics = [#tpu.dimension_semantics<arbitrary>], iteration_bounds = array<i64: 1>, scalar_prefetch = 0 : i64, scratch_operands = 0 : i64, tpu.core_type = #tpu.core_type<tc>, window_params = [{pipeline_mode = #tpu.pipeline_mode<synchronous>, transform_indices = @transform_0, window_bounds = array<i64: 8, 9, 9, 16>}, {pipeline_mode = #tpu.pipeline_mode<synchronous>, transform_indices = @transform_1, window_bounds = array<i64: 9, 16, 128>}, {pipeline_mode = #tpu.pipeline_mode<synchronous>, transform_indices = @transform_2, window_bounds = array<i64: 1, 128>}, {pipeline_mode = #tpu.pipeline_mode<synchronous>, transform_indices = @transform_3, window_bounds = array<i64: 1, 128>}, {pipeline_mode = #tpu.pipeline_mode<synchronous>, transform_indices = @transform_4, window_bounds = array<i64: 128, 128>}, {pipeline_mode = #tpu.pipeline_mode<synchronous>, transform_indices = @transform_5, window_bounds = array<i64: 1, 128>}, {pipeline_mode = #tpu.pipeline_mode<synchronous>, transform_indices = @transform_6, window_bounds = array<i64: 1, 128>}, {pipeline_mode = #tpu.pipeline_mode<synchronous>, transform_indices = @transform_7, window_bounds = array<i64: 128, 32>}, {pipeline_mode = #tpu.pipeline_mode<synchronous>, transform_indices = @transform_8, window_bounds = array<i64: 32, 128>}, {pipeline_mode = #tpu.pipeline_mode<synchronous>, transform_indices = @transform_9, window_bounds = array<i64: 1, 128>}, {pipeline_mode = #tpu.pipeline_mode<synchronous>, transform_indices = @transform_10, window_bounds = array<i64: 1, 128>}, {pipeline_mode = #tpu.pipeline_mode<synchronous>, transform_indices = @transform_11, window_bounds = array<i64: 128, 128>}]} {
    %c0 = arith.constant 0 : index
    %c0_0 = arith.constant 0 : index
    %c0_1 = arith.constant 0 : index
    %c0_2 = arith.constant 0 : index
    %0 = vector.load %arg1[%c0, %c0_0, %c0_1, %c0_2] : memref<8x9x9x16xbf16, #tpu.memory_space<vmem>>, vector<8x9x9x16xbf16>
    %c0_3 = arith.constant 0 : index
    %c0_4 = arith.constant 0 : index
    %c0_5 = arith.constant 0 : index
    %1 = vector.load %arg2[%c0_3, %c0_4, %c0_5] : memref<9x16x128xbf16, #tpu.memory_space<vmem>>, vector<9x16x128xbf16>
    %c0_6 = arith.constant 0 : index
    %c0_7 = arith.constant 0 : index
    %2 = vector.load %arg3[%c0_6, %c0_7] : memref<1x128xf32, #tpu.memory_space<vmem>>, vector<1x128xf32>
    %c0_8 = arith.constant 0 : index
    %c0_9 = arith.constant 0 : index
    %3 = vector.load %arg4[%c0_8, %c0_9] : memref<1x128xf32, #tpu.memory_space<vmem>>, vector<1x128xf32>
    %4 = vector.extract_strided_slice %0 {offsets = [0, 0, 0, 0], sizes = [2, 8, 8, 16], strides = [1, 1, 1, 1]} : vector<8x9x9x16xbf16> to vector<2x8x8x16xbf16>
    %5 = vector.shape_cast %4 : vector<2x8x8x16xbf16> to vector<128x16xbf16>
    %6 = vector.extract_strided_slice %1 {offsets = [0, 0, 0], sizes = [1, 16, 128], strides = [1, 1, 1]} : vector<9x16x128xbf16> to vector<1x16x128xbf16>
    %7 = vector.shape_cast %6 : vector<1x16x128xbf16> to vector<16x128xbf16>
    %cst = arith.constant dense<0.000000e+00> : vector<128x128xf32>
    %8 = tpu.matmul %5, %7, %cst {dimension_numbers = #tpu.dot_dimension_numbers<[1], [0], [0], [1], [0, 0, 1, 1], [], []>} : vector<128x16xbf16>, vector<16x128xbf16>, vector<128x128xf32> -> vector<128x128xf32>
    %9 = vector.extract_strided_slice %0 {offsets = [2, 0, 0, 0], sizes = [2, 8, 8, 16], strides = [1, 1, 1, 1]} : vector<8x9x9x16xbf16> to vector<2x8x8x16xbf16>
    %10 = vector.shape_cast %9 : vector<2x8x8x16xbf16> to vector<128x16xbf16>
    %11 = vector.extract_strided_slice %1 {offsets = [1, 0, 0], sizes = [1, 16, 128], strides = [1, 1, 1]} : vector<9x16x128xbf16> to vector<1x16x128xbf16>
    %12 = vector.shape_cast %11 : vector<1x16x128xbf16> to vector<16x128xbf16>
    %cst_10 = arith.constant dense<0.000000e+00> : vector<128x128xf32>
    %13 = tpu.matmul %10, %12, %cst_10 {dimension_numbers = #tpu.dot_dimension_numbers<[1], [0], [0], [1], [0, 0, 1, 1], [], []>} : vector<128x16xbf16>, vector<16x128xbf16>, vector<128x128xf32> -> vector<128x128xf32>
    %14 = arith.addf %8, %13 : vector<128x128xf32>
    %15 = vector.extract_strided_slice %0 {offsets = [0, 0, 1, 0], sizes = [2, 8, 8, 16], strides = [1, 1, 1, 1]} : vector<8x9x9x16xbf16> to vector<2x8x8x16xbf16>
    %16 = vector.shape_cast %15 : vector<2x8x8x16xbf16> to vector<128x16xbf16>
    %17 = vector.extract_strided_slice %1 {offsets = [2, 0, 0], sizes = [1, 16, 128], strides = [1, 1, 1]} : vector<9x16x128xbf16> to vector<1x16x128xbf16>
    %18 = vector.shape_cast %17 : vector<1x16x128xbf16> to vector<16x128xbf16>
    %cst_11 = arith.constant dense<0.000000e+00> : vector<128x128xf32>
    %19 = tpu.matmul %16, %18, %cst_11 {dimension_numbers = #tpu.dot_dimension_numbers<[1], [0], [0], [1], [0, 0, 1, 1], [], []>} : vector<128x16xbf16>, vector<16x128xbf16>, vector<128x128xf32> -> vector<128x128xf32>
    %20 = arith.addf %14, %19 : vector<128x128xf32>
    %21 = vector.extract_strided_slice %0 {offsets = [4, 0, 0, 0], sizes = [2, 8, 8, 16], strides = [1, 1, 1, 1]} : vector<8x9x9x16xbf16> to vector<2x8x8x16xbf16>
    %22 = vector.shape_cast %21 : vector<2x8x8x16xbf16> to vector<128x16xbf16>
    %23 = vector.extract_strided_slice %1 {offsets = [3, 0, 0], sizes = [1, 16, 128], strides = [1, 1, 1]} : vector<9x16x128xbf16> to vector<1x16x128xbf16>
    %24 = vector.shape_cast %23 : vector<1x16x128xbf16> to vector<16x128xbf16>
    %cst_12 = arith.constant dense<0.000000e+00> : vector<128x128xf32>
    %25 = tpu.matmul %22, %24, %cst_12 {dimension_numbers = #tpu.dot_dimension_numbers<[1], [0], [0], [1], [0, 0, 1, 1], [], []>} : vector<128x16xbf16>, vector<16x128xbf16>, vector<128x128xf32> -> vector<128x128xf32>
    %26 = arith.addf %20, %25 : vector<128x128xf32>
    %27 = vector.extract_strided_slice %0 {offsets = [6, 0, 0, 0], sizes = [2, 8, 8, 16], strides = [1, 1, 1, 1]} : vector<8x9x9x16xbf16> to vector<2x8x8x16xbf16>
    %28 = vector.shape_cast %27 : vector<2x8x8x16xbf16> to vector<128x16xbf16>
    %29 = vector.extract_strided_slice %1 {offsets = [4, 0, 0], sizes = [1, 16, 128], strides = [1, 1, 1]} : vector<9x16x128xbf16> to vector<1x16x128xbf16>
    %30 = vector.shape_cast %29 : vector<1x16x128xbf16> to vector<16x128xbf16>
    %cst_13 = arith.constant dense<0.000000e+00> : vector<128x128xf32>
    %31 = tpu.matmul %28, %30, %cst_13 {dimension_numbers = #tpu.dot_dimension_numbers<[1], [0], [0], [1], [0, 0, 1, 1], [], []>} : vector<128x16xbf16>, vector<16x128xbf16>, vector<128x128xf32> -> vector<128x128xf32>
    %32 = arith.addf %26, %31 : vector<128x128xf32>
    %33 = vector.extract_strided_slice %0 {offsets = [4, 0, 1, 0], sizes = [2, 8, 8, 16], strides = [1, 1, 1, 1]} : vector<8x9x9x16xbf16> to vector<2x8x8x16xbf16>
    %34 = vector.shape_cast %33 : vector<2x8x8x16xbf16> to vector<128x16xbf16>
    %35 = vector.extract_strided_slice %1 {offsets = [5, 0, 0], sizes = [1, 16, 128], strides = [1, 1, 1]} : vector<9x16x128xbf16> to vector<1x16x128xbf16>
    %36 = vector.shape_cast %35 : vector<1x16x128xbf16> to vector<16x128xbf16>
    %cst_14 = arith.constant dense<0.000000e+00> : vector<128x128xf32>
    %37 = tpu.matmul %34, %36, %cst_14 {dimension_numbers = #tpu.dot_dimension_numbers<[1], [0], [0], [1], [0, 0, 1, 1], [], []>} : vector<128x16xbf16>, vector<16x128xbf16>, vector<128x128xf32> -> vector<128x128xf32>
    %38 = arith.addf %32, %37 : vector<128x128xf32>
    %39 = vector.extract_strided_slice %0 {offsets = [0, 1, 0, 0], sizes = [2, 8, 8, 16], strides = [1, 1, 1, 1]} : vector<8x9x9x16xbf16> to vector<2x8x8x16xbf16>
    %40 = vector.shape_cast %39 : vector<2x8x8x16xbf16> to vector<128x16xbf16>
    %41 = vector.extract_strided_slice %1 {offsets = [6, 0, 0], sizes = [1, 16, 128], strides = [1, 1, 1]} : vector<9x16x128xbf16> to vector<1x16x128xbf16>
    %42 = vector.shape_cast %41 : vector<1x16x128xbf16> to vector<16x128xbf16>
    %cst_15 = arith.constant dense<0.000000e+00> : vector<128x128xf32>
    %43 = tpu.matmul %40, %42, %cst_15 {dimension_numbers = #tpu.dot_dimension_numbers<[1], [0], [0], [1], [0, 0, 1, 1], [], []>} : vector<128x16xbf16>, vector<16x128xbf16>, vector<128x128xf32> -> vector<128x128xf32>
    %44 = arith.addf %38, %43 : vector<128x128xf32>
    %45 = vector.extract_strided_slice %0 {offsets = [2, 1, 0, 0], sizes = [2, 8, 8, 16], strides = [1, 1, 1, 1]} : vector<8x9x9x16xbf16> to vector<2x8x8x16xbf16>
    %46 = vector.shape_cast %45 : vector<2x8x8x16xbf16> to vector<128x16xbf16>
    %47 = vector.extract_strided_slice %1 {offsets = [7, 0, 0], sizes = [1, 16, 128], strides = [1, 1, 1]} : vector<9x16x128xbf16> to vector<1x16x128xbf16>
    %48 = vector.shape_cast %47 : vector<1x16x128xbf16> to vector<16x128xbf16>
    %cst_16 = arith.constant dense<0.000000e+00> : vector<128x128xf32>
    %49 = tpu.matmul %46, %48, %cst_16 {dimension_numbers = #tpu.dot_dimension_numbers<[1], [0], [0], [1], [0, 0, 1, 1], [], []>} : vector<128x16xbf16>, vector<16x128xbf16>, vector<128x128xf32> -> vector<128x128xf32>
    %50 = arith.addf %44, %49 : vector<128x128xf32>
    %51 = vector.extract_strided_slice %0 {offsets = [0, 1, 1, 0], sizes = [2, 8, 8, 16], strides = [1, 1, 1, 1]} : vector<8x9x9x16xbf16> to vector<2x8x8x16xbf16>
    %52 = vector.shape_cast %51 : vector<2x8x8x16xbf16> to vector<128x16xbf16>
    %53 = vector.extract_strided_slice %1 {offsets = [8, 0, 0], sizes = [1, 16, 128], strides = [1, 1, 1]} : vector<9x16x128xbf16> to vector<1x16x128xbf16>
    %54 = vector.shape_cast %53 : vector<1x16x128xbf16> to vector<16x128xbf16>
    %cst_17 = arith.constant dense<0.000000e+00> : vector<128x128xf32>
    %55 = tpu.matmul %52, %54, %cst_17 {dimension_numbers = #tpu.dot_dimension_numbers<[1], [0], [0], [1], [0, 0, 1, 1], [], []>} : vector<128x16xbf16>, vector<16x128xbf16>, vector<128x128xf32> -> vector<128x128xf32>
    %56 = arith.addf %50, %55 : vector<128x128xf32>
    %cst_18 = arith.constant dense<0.000000e+00> : vector<128xf32>
    %57 = vector.multi_reduction <add>, %56, %cst_18 [0] : vector<128x128xf32> to vector<128xf32>
    %58 = vector.shape_cast %57 : vector<128xf32> to vector<1x128xf32>
    %cst_19 = arith.constant 1.280000e+02 : f32
    %59 = vector.broadcast %cst_19 : f32 to vector<1x128xf32>
    %60 = arith.divf %58, %59 : vector<1x128xf32>
    %61 = arith.mulf %56, %56 : vector<128x128xf32>
    %cst_20 = arith.constant dense<0.000000e+00> : vector<128xf32>
    %62 = vector.multi_reduction <add>, %61, %cst_20 [0] : vector<128x128xf32> to vector<128xf32>
    %63 = vector.shape_cast %62 : vector<128xf32> to vector<1x128xf32>
    %cst_21 = arith.constant 1.280000e+02 : f32
    %64 = vector.broadcast %cst_21 : f32 to vector<1x128xf32>
    %65 = arith.divf %63, %64 : vector<1x128xf32>
    %66 = arith.mulf %60, %60 : vector<1x128xf32>
    %67 = arith.subf %65, %66 : vector<1x128xf32>
    %cst_22 = arith.constant 0.000000e+00 : f32
    %68 = vector.broadcast %cst_22 : f32 to vector<1x128xf32>
    %69 = arith.maximumf %67, %68 : vector<1x128xf32>
    %cst_23 = arith.constant 9.99999974E-6 : f32
    %70 = vector.broadcast %cst_23 : f32 to vector<1x128xf32>
    %71 = arith.addf %69, %70 : vector<1x128xf32>
    %72 = math.rsqrt %71 : vector<1x128xf32>
    %73 = arith.mulf %2, %72 : vector<1x128xf32>
    %74 = vector.broadcast %73 : vector<1x128xf32> to vector<128x128xf32>
    %75 = arith.mulf %56, %74 : vector<128x128xf32>
    %76 = arith.mulf %60, %73 : vector<1x128xf32>
    %77 = arith.subf %3, %76 : vector<1x128xf32>
    %78 = vector.broadcast %77 : vector<1x128xf32> to vector<128x128xf32>
    %79 = arith.addf %75, %78 : vector<128x128xf32>
    %80 = arith.negf %79 : vector<128x128xf32>
    %81 = math.exp %80 : vector<128x128xf32>
    %cst_24 = arith.constant 1.000000e+00 : f32
    %82 = vector.broadcast %cst_24 : f32 to vector<128x128xf32>
    %83 = arith.addf %82, %81 : vector<128x128xf32>
    %84 = arith.divf %82, %83 : vector<128x128xf32>
    %85 = arith.truncf %84 : vector<128x128xf32> to vector<128x128xbf16>
    %c0_25 = arith.constant 0 : index
    %c0_26 = arith.constant 0 : index
    %86 = vector.load %arg5[%c0_25, %c0_26] : memref<128x128xbf16, #tpu.memory_space<vmem>>, vector<128x128xbf16>
    %cst_27 = arith.constant dense<0.000000e+00> : vector<128x128xf32>
    %87 = tpu.matmul %85, %86, %cst_27 {dimension_numbers = #tpu.dot_dimension_numbers<[1], [0], [0], [1], [0, 0, 1, 1], [], []>} : vector<128x128xbf16>, vector<128x128xbf16>, vector<128x128xf32> -> vector<128x128xf32>
    %c0_28 = arith.constant 0 : index
    %c0_29 = arith.constant 0 : index
    %88 = vector.load %arg6[%c0_28, %c0_29] : memref<1x128xf32, #tpu.memory_space<vmem>>, vector<1x128xf32>
    %c0_30 = arith.constant 0 : index
    %c0_31 = arith.constant 0 : index
    %89 = vector.load %arg7[%c0_30, %c0_31] : memref<1x128xf32, #tpu.memory_space<vmem>>, vector<1x128xf32>
    %cst_32 = arith.constant dense<0.000000e+00> : vector<128xf32>
    %90 = vector.multi_reduction <add>, %87, %cst_32 [0] : vector<128x128xf32> to vector<128xf32>
    %91 = vector.shape_cast %90 : vector<128xf32> to vector<1x128xf32>
    %cst_33 = arith.constant 1.280000e+02 : f32
    %92 = vector.broadcast %cst_33 : f32 to vector<1x128xf32>
    %93 = arith.divf %91, %92 : vector<1x128xf32>
    %94 = arith.mulf %87, %87 : vector<128x128xf32>
    %cst_34 = arith.constant dense<0.000000e+00> : vector<128xf32>
    %95 = vector.multi_reduction <add>, %94, %cst_34 [0] : vector<128x128xf32> to vector<128xf32>
    %96 = vector.shape_cast %95 : vector<128xf32> to vector<1x128xf32>
    %cst_35 = arith.constant 1.280000e+02 : f32
    %97 = vector.broadcast %cst_35 : f32 to vector<1x128xf32>
    %98 = arith.divf %96, %97 : vector<1x128xf32>
    %99 = arith.mulf %93, %93 : vector<1x128xf32>
    %100 = arith.subf %98, %99 : vector<1x128xf32>
    %cst_36 = arith.constant 0.000000e+00 : f32
    %101 = vector.broadcast %cst_36 : f32 to vector<1x128xf32>
    %102 = arith.maximumf %100, %101 : vector<1x128xf32>
    %cst_37 = arith.constant 9.99999974E-6 : f32
    %103 = vector.broadcast %cst_37 : f32 to vector<1x128xf32>
    %104 = arith.addf %102, %103 : vector<1x128xf32>
    %105 = math.rsqrt %104 : vector<1x128xf32>
    %106 = arith.mulf %88, %105 : vector<1x128xf32>
    %107 = vector.broadcast %106 : vector<1x128xf32> to vector<128x128xf32>
    %108 = arith.mulf %87, %107 : vector<128x128xf32>
    %109 = arith.mulf %93, %106 : vector<1x128xf32>
    %110 = arith.subf %89, %109 : vector<1x128xf32>
    %111 = vector.broadcast %110 : vector<1x128xf32> to vector<128x128xf32>
    %112 = arith.addf %108, %111 : vector<128x128xf32>
    %c0_38 = arith.constant 0 : index
    %c0_39 = arith.constant 0 : index
    %113 = vector.load %arg8[%c0_38, %c0_39] : memref<128x32xbf16, #tpu.memory_space<vmem>>, vector<128x32xbf16>
    %c0_40 = arith.constant 0 : index
    %c0_41 = arith.constant 0 : index
    %114 = vector.load %arg9[%c0_40, %c0_41] : memref<32x128xbf16, #tpu.memory_space<vmem>>, vector<32x128xbf16>
    %cst_42 = arith.constant dense<0.000000e+00> : vector<128x128xf32>
    %115 = tpu.matmul %113, %114, %cst_42 {dimension_numbers = #tpu.dot_dimension_numbers<[1], [0], [0], [1], [0, 0, 1, 1], [], []>} : vector<128x32xbf16>, vector<32x128xbf16>, vector<128x128xf32> -> vector<128x128xf32>
    %c0_43 = arith.constant 0 : index
    %c0_44 = arith.constant 0 : index
    %116 = vector.load %arg10[%c0_43, %c0_44] : memref<1x128xf32, #tpu.memory_space<vmem>>, vector<1x128xf32>
    %c0_45 = arith.constant 0 : index
    %c0_46 = arith.constant 0 : index
    %117 = vector.load %arg11[%c0_45, %c0_46] : memref<1x128xf32, #tpu.memory_space<vmem>>, vector<1x128xf32>
    %cst_47 = arith.constant dense<0.000000e+00> : vector<128xf32>
    %118 = vector.multi_reduction <add>, %115, %cst_47 [0] : vector<128x128xf32> to vector<128xf32>
    %119 = vector.shape_cast %118 : vector<128xf32> to vector<1x128xf32>
    %cst_48 = arith.constant 1.280000e+02 : f32
    %120 = vector.broadcast %cst_48 : f32 to vector<1x128xf32>
    %121 = arith.divf %119, %120 : vector<1x128xf32>
    %122 = arith.mulf %115, %115 : vector<128x128xf32>
    %cst_49 = arith.constant dense<0.000000e+00> : vector<128xf32>
    %123 = vector.multi_reduction <add>, %122, %cst_49 [0] : vector<128x128xf32> to vector<128xf32>
    %124 = vector.shape_cast %123 : vector<128xf32> to vector<1x128xf32>
    %cst_50 = arith.constant 1.280000e+02 : f32
    %125 = vector.broadcast %cst_50 : f32 to vector<1x128xf32>
    %126 = arith.divf %124, %125 : vector<1x128xf32>
    %127 = arith.mulf %121, %121 : vector<1x128xf32>
    %128 = arith.subf %126, %127 : vector<1x128xf32>
    %cst_51 = arith.constant 0.000000e+00 : f32
    %129 = vector.broadcast %cst_51 : f32 to vector<1x128xf32>
    %130 = arith.maximumf %128, %129 : vector<1x128xf32>
    %cst_52 = arith.constant 9.99999974E-6 : f32
    %131 = vector.broadcast %cst_52 : f32 to vector<1x128xf32>
    %132 = arith.addf %130, %131 : vector<1x128xf32>
    %133 = math.rsqrt %132 : vector<1x128xf32>
    %134 = arith.mulf %116, %133 : vector<1x128xf32>
    %135 = vector.broadcast %134 : vector<1x128xf32> to vector<128x128xf32>
    %136 = arith.mulf %115, %135 : vector<128x128xf32>
    %137 = arith.mulf %121, %134 : vector<1x128xf32>
    %138 = arith.subf %117, %137 : vector<1x128xf32>
    %139 = vector.broadcast %138 : vector<1x128xf32> to vector<128x128xf32>
    %140 = arith.addf %136, %139 : vector<128x128xf32>
    %141 = arith.addf %112, %140 : vector<128x128xf32>
    %142 = arith.negf %141 : vector<128x128xf32>
    %143 = math.exp %142 : vector<128x128xf32>
    %cst_53 = arith.constant 1.000000e+00 : f32
    %144 = vector.broadcast %cst_53 : f32 to vector<128x128xf32>
    %145 = arith.addf %144, %143 : vector<128x128xf32>
    %146 = arith.divf %144, %145 : vector<128x128xf32>
    %c0_54 = arith.constant 0 : index
    %c0_55 = arith.constant 0 : index
    %147 = vector.load %arg12[%c0_54, %c0_55] : memref<128x128xf32, #tpu.memory_space<vmem>>, vector<128x128xf32>
    tpu.vector_store %arg12[%c0_54, %c0_55], %146 {strides = array<i32>} : memref<128x128xf32, #tpu.memory_space<vmem>>, vector<128x128xf32>,
    return
  }
  func.func @transform_0(%arg0: i32) -> (i32, i32, i32, i32) {
    %c0_i32 = arith.constant 0 : i32
    %c0_i32_0 = arith.constant 0 : i32
    %c0_i32_1 = arith.constant 0 : i32
    %c0_i32_2 = arith.constant 0 : i32
    %c0_i32_3 = arith.constant 0 : i32
    return %c0_i32, %c0_i32_0, %c0_i32_1, %c0_i32_2 : i32, i32, i32, i32
  }
  func.func @transform_1(%arg0: i32) -> (i32, i32, i32) {
    %c0_i32 = arith.constant 0 : i32
    %c0_i32_0 = arith.constant 0 : i32
    %c0_i32_1 = arith.constant 0 : i32
    %c0_i32_2 = arith.constant 0 : i32
    return %c0_i32, %c0_i32_0, %c0_i32_1 : i32, i32, i32
  }
  func.func @transform_2(%arg0: i32) -> (i32, i32) {
    %c0_i32 = arith.constant 0 : i32
    %c0_i32_0 = arith.constant 0 : i32
    %c0_i32_1 = arith.constant 0 : i32
    return %c0_i32, %c0_i32_0 : i32, i32
  }
  func.func @transform_3(%arg0: i32) -> (i32, i32) {
    %c0_i32 = arith.constant 0 : i32
    %c0_i32_0 = arith.constant 0 : i32
    %c0_i32_1 = arith.constant 0 : i32
    return %c0_i32, %c0_i32_0 : i32, i32
  }
  func.func @transform_4(%arg0: i32) -> (i32, i32) {
    %c0_i32 = arith.constant 0 : i32
    %c0_i32_0 = arith.constant 0 : i32
    %c0_i32_1 = arith.constant 0 : i32
    return %c0_i32, %c0_i32_0 : i32, i32
  }
  func.func @transform_5(%arg0: i32) -> (i32, i32) {
    %c0_i32 = arith.constant 0 : i32
    %c0_i32_0 = arith.constant 0 : i32
    %c0_i32_1 = arith.constant 0 : i32
    return %c0_i32, %c0_i32_0 : i32, i32
  }
  func.func @transform_6(%arg0: i32) -> (i32, i32) {
    %c0_i32 = arith.constant 0 : i32
    %c0_i32_0 = arith.constant 0 : i32
    %c0_i32_1 = arith.constant 0 : i32
    return %c0_i32, %c0_i32_0 : i32, i32
  }
  func.func @transform_7(%arg0: i32) -> (i32, i32) {
    %c0_i32 = arith.constant 0 : i32
    %c0_i32_0 = arith.constant 0 : i32
    %c0_i32_1 = arith.constant 0 : i32
    return %c0_i32, %c0_i32_0 : i32, i32
  }
  func.func @transform_8(%arg0: i32) -> (i32, i32) {
    %c0_i32 = arith.constant 0 : i32
    %c0_i32_0 = arith.constant 0 : i32
    %c0_i32_1 = arith.constant 0 : i32
    return %c0_i32, %c0_i32_0 : i32, i32
  }
  func.func @transform_9(%arg0: i32) -> (i32, i32) {
    %c0_i32 = arith.constant 0 : i32
    %c0_i32_0 = arith.constant 0 : i32
    %c0_i32_1 = arith.constant 0 : i32
    return %c0_i32, %c0_i32_0 : i32, i32
  }
  func.func @transform_10(%arg0: i32) -> (i32, i32) {
    %c0_i32 = arith.constant 0 : i32
    %c0_i32_0 = arith.constant 0 : i32
    %c0_i32_1 = arith.constant 0 : i32
    return %c0_i32, %c0_i32_0 : i32, i32
  }
  func.func @transform_11(%arg0: i32) -> (i32, i32) {
    %c0_i32 = arith.constant 0 : i32
    %c0_i32_0 = arith.constant 0 : i32
    %c0_i32_1 = arith.constant 0 : i32
    return %c0_i32, %c0_i32_0 : i32, i32
  }
}

</mosaic_0001>

<llo_original>
// kernel: bottleneck_forward.2
$region0: #{bottleneck_forward.2}
  #allocation0 [shape = 'u32[]', space=smem, size = 0x4, offset = 0x4, fixed_abs, tag = 'smem constant byte address 0x4 - core index']
  #allocation1 [shape = 'u32[144,128]{1,0:T(1,128)}', space=vmem, size = 0x12000, scoped, tag = 'internal scratch']
  #allocation2 [shape = 'f32[512,128]{1,0:T(8,128)}', space=vmem, size = 0x40000, scoped, tag = 'scratch operand']
  %s0 = inlined_call_operand.hbm [shape: bf16[512,32], index: 0, kind: input, shape index: {}]
  %s1 = inlined_call_operand.hbm [shape: bf16[32,128], index: 1, kind: input, shape index: {}]
  %s2 = inlined_call_operand.hbm [shape: f32[1,128], index: 2, kind: input, shape index: {}]
  %s3 = inlined_call_operand.hbm [shape: f32[1,128], index: 3, kind: input, shape index: {}]
  %s4 = inlined_call_operand.hbm [shape: bf16[512,128], index: 4, kind: output, shape index: {}]
  %s5 = sld [smem:[#allocation0]]
  $region50: #{bottleneck_forward.2} parent=0
    _
  %s7 = ssub.s32 1, %s5
  %s8 = scalar_select 0, %s7, %s5
  $region1: #{bottleneck_forward.2} parent=0
    #allocation3 [shape = 'u8[131072]{0}', space=vmem, size = 0x20000, scoped, tag = 'input window, operand 0, single buffered']
    #allocation4 [shape = 's32[1]{0}', space=sflag, size = 0x4, scoped, tag = 'scoped memory for bottleneck_forward.2']
    #allocation5 [shape = 's32[1]{0}', space=sflag, size = 0x4, scoped, tag = 'scoped memory for bottleneck_forward.2']
    #allocation6 [shape = 'u8[8192]{0}', space=vmem, size = 0x2000, scoped, tag = 'input window, operand 1, single buffered']
    #allocation7 [shape = 's32[1]{0}', space=sflag, size = 0x4, scoped, tag = 'scoped memory for bottleneck_forward.2']
    #allocation8 [shape = 'u8[512]{0}', space=vmem, size = 0x400, scoped, tag = 'input window, operand 2, single buffered']
    #allocation9 [shape = 'u8[512]{0}', space=vmem, size = 0x400, scoped, tag = 'input window, operand 3, single buffered']
    #allocation10 [shape = 's32[1]{0}', space=sflag, size = 0x4, scoped, tag = 'scoped memory for bottleneck_forward.2']
    #allocation11 [shape = 'u8[131072]{0}', space=vmem, size = 0x20000, scoped, tag = 'output window, operand 0, single buffered']
    %9 = vsyncpa [#allocation4], 0
    %10 = vsyncpa [#allocation7], 0
    %11 = vsyncpa [#allocation10], 0
    %12 = vsyncpa [#allocation5], 0
    // Predicated region
    $region2: #{bottleneck_forward.2} parent=1 // pred_check
      _
    $region3: #{bottleneck_forward.2} parent=1 // pred_check_branch
      %14 = sbr.rel (0) target = $region5
    $region4: #{bottleneck_forward.2} parent=1 // pred_region
      %s16 = ssub.s32 4096, 4096
      %17 = vsyncadd [#allocation4], %s16
      %s18 = sshll.u32 [#allocation3], 4
      %s19 = int_to_ptr.vmem [resolvable:$true] %s18
      %24 = dma.hbm_to_vmem [thread:$0]  %s0, 4096, %s19, [#allocation4], 64, 64, 4
    $region5: #{bottleneck_forward.2} parent=1 // pred_fallthru
      _
    // Predicated region
    $region6: #{bottleneck_forward.2} parent=1 // pred_check
      _
    $region7: #{bottleneck_forward.2} parent=1 // pred_check_branch
      %26 = sbr.rel (0) target = $region9
    $region8: #{bottleneck_forward.2} parent=1 // pred_region
      %s28 = ssub.s32 256, 256
      %29 = vsyncadd [#allocation7], %s28
      %s30 = sshll.u32 [#allocation6], 4
      %s31 = int_to_ptr.vmem [resolvable:$true] %s30
      %36 = dma.hbm_to_vmem [thread:$0]  %s1, 256, %s31, [#allocation7], 64, 64, 4
    $region9: #{bottleneck_forward.2} parent=1 // pred_fallthru
      _
    // Predicated region
    $region10: #{bottleneck_forward.2} parent=1 // pred_check
      _
    $region11: #{bottleneck_forward.2} parent=1 // pred_check_branch
      %38 = sbr.rel (0) target = $region13
    $region12: #{bottleneck_forward.2} parent=1 // pred_region
      %s40 = ssub.s32 16, 16
      %41 = vsyncadd [#allocation7], %s40
      %s43 = sshll.u32 [#allocation8], 4
      %s44 = int_to_ptr.vmem [resolvable:$true] %s43
      %46 = dma.hbm_to_vmem [thread:$0]  %s2, 16, %s44, [#allocation7]
    $region13: #{bottleneck_forward.2} parent=1 // pred_fallthru
      _
    // Predicated region
    $region14: #{bottleneck_forward.2} parent=1 // pred_check
      _
    $region15: #{bottleneck_forward.2} parent=1 // pred_check_branch
      %48 = sbr.rel (0) target = $region17
    $region16: #{bottleneck_forward.2} parent=1 // pred_region
      %s50 = ssub.s32 16, 16
      %51 = vsyncadd [#allocation10], %s50
      %s53 = sshll.u32 [#allocation9], 4
      %s54 = int_to_ptr.vmem [resolvable:$true] %s53
      %56 = dma.hbm_to_vmem [thread:$0]  %s3, 16, %s54, [#allocation10]
    $region17: #{bottleneck_forward.2} parent=1 // pred_fallthru
      _
    // Predicated region
    $region18: #{bottleneck_forward.2} parent=1 // pred_check
      _
    $region19: #{bottleneck_forward.2} parent=1 // pred_check_branch
      %58 = sbr.rel (0) target = $region21
    $region20: #{bottleneck_forward.2} parent=1 // pred_region
      %59 = dma.done [#allocation4], 4096
    $region21: #{bottleneck_forward.2} parent=1 // pred_fallthru
      _
    // Predicated region
    $region22: #{bottleneck_forward.2} parent=1 // pred_check
      _
    $region23: #{bottleneck_forward.2} parent=1 // pred_check_branch
      %61 = sbr.rel (0) target = $region25
    $region24: #{bottleneck_forward.2} parent=1 // pred_region
      %62 = dma.done [#allocation7], 256
    $region25: #{bottleneck_forward.2} parent=1 // pred_fallthru
      _
    // Predicated region
    $region26: #{bottleneck_forward.2} parent=1 // pred_check
      _
    $region27: #{bottleneck_forward.2} parent=1 // pred_check_branch
      %64 = sbr.rel (0) target = $region29
    $region28: #{bottleneck_forward.2} parent=1 // pred_region
      %65 = dma.done [#allocation7], 16
    $region29: #{bottleneck_forward.2} parent=1 // pred_fallthru
      _
    // Predicated region
    $region30: #{bottleneck_forward.2} parent=1 // pred_check
      _
    $region31: #{bottleneck_forward.2} parent=1 // pred_check_branch
      %67 = sbr.rel (0) target = $region33
    $region32: #{bottleneck_forward.2} parent=1 // pred_region
      %68 = dma.done [#allocation10], 16
    $region33: #{bottleneck_forward.2} parent=1 // pred_fallthru
      _
    %p70 = scmp.eq.s32.totalorder 0, 0
    // Predicated region
    $region34: #{bottleneck_forward.2} parent=1 // pred_check
      %p71 = pneg %p70
    $region35: #{bottleneck_forward.2} parent=1 // pred_check_branch
      %73 = sbr.rel (%p71) target = $region37
    $region36: #{bottleneck_forward.2} parent=1 // pred_region
      %74 = vst [vmem:[#allocation2] sm:$0xff] 0.0
      %75 = vst [vmem:[#allocation2 + $0x8] sm:$0xff] 0.0
      %76 = vst [vmem:[#allocation2 + $0x10] sm:$0xff] 0.0
      %77 = vst [vmem:[#allocation2 + $0x18] sm:$0xff] 0.0
      %78 = vst [vmem:[#allocation2 + $0x20] sm:$0xff] 0.0
      %79 = vst [vmem:[#allocation2 + $0x28] sm:$0xff] 0.0
      %80 = vst [vmem:[#allocation2 + $0x30] sm:$0xff] 0.0
      %81 = vst [vmem:[#allocation2 + $0x38] sm:$0xff] 0.0
      %82 = vst [vmem:[#allocation2 + $0x40] sm:$0xff] 0.0
      %83 = vst [vmem:[#allocation2 + $0x48] sm:$0xff] 0.0
      %84 = vst [vmem:[#allocation2 + $0x50] sm:$0xff] 0.0
      %85 = vst [vmem:[#allocation2 + $0x58] sm:$0xff] 0.0
      %86 = vst [vmem:[#allocation2 + $0x60] sm:$0xff] 0.0
      %87 = vst [vmem:[#allocation2 + $0x68] sm:$0xff] 0.0
      %88 = vst [vmem:[#allocation2 + $0x70] sm:$0xff] 0.0
      %89 = vst [vmem:[#allocation2 + $0x78] sm:$0xff] 0.0
      %90 = vst [vmem:[#allocation2 + $0x80] sm:$0xff] 0.0
      %91 = vst [vmem:[#allocation2 + $0x88] sm:$0xff] 0.0
      %92 = vst [vmem:[#allocation2 + $0x90] sm:$0xff] 0.0
      %93 = vst [vmem:[#allocation2 + $0x98] sm:$0xff] 0.0
      %94 = vst [vmem:[#allocation2 + $0xa0] sm:$0xff] 0.0
      %95 = vst [vmem:[#allocation2 + $0xa8] sm:$0xff] 0.0
      %96 = vst [vmem:[#allocation2 + $0xb0] sm:$0xff] 0.0
      %97 = vst [vmem:[#allocation2 + $0xb8] sm:$0xff] 0.0
      %98 = vst [vmem:[#allocation2 + $0xc0] sm:$0xff] 0.0
      %99 = vst [vmem:[#allocation2 + $0xc8] sm:$0xff] 0.0
      %100 = vst [vmem:[#allocation2 + $0xd0] sm:$0xff] 0.0
      %101 = vst [vmem:[#allocation2 + $0xd8] sm:$0xff] 0.0
      %102 = vst [vmem:[#allocation2 + $0xe0] sm:$0xff] 0.0
      %103 = vst [vmem:[#allocation2 + $0xe8] sm:$0xff] 0.0
      %104 = vst [vmem:[#allocation2 + $0xf0] sm:$0xff] 0.0
      %105 = vst [vmem:[#allocation2 + $0xf8] sm:$0xff] 0.0
      %106 = vst [vmem:[#allocation2 + $0x100] sm:$0xff] 0.0
      %107 = vst [vmem:[#allocation2 + $0x108] sm:$0xff] 0.0
      %108 = vst [vmem:[#allocation2 + $0x110] sm:$0xff] 0.0
      %109 = vst [vmem:[#allocation2 + $0x118] sm:$0xff] 0.0
      %110 = vst [vmem:[#allocation2 + $0x120] sm:$0xff] 0.0
      %111 = vst [vmem:[#allocation2 + $0x128] sm:$0xff] 0.0
      %112 = vst [vmem:[#allocation2 + $0x130] sm:$0xff] 0.0
      %113 = vst [vmem:[#allocation2 + $0x138] sm:$0xff] 0.0
      %114 = vst [vmem:[#allocation2 + $0x140] sm:$0xff] 0.0
      %115 = vst [vmem:[#allocation2 + $0x148] sm:$0xff] 0.0
      %116 = vst [vmem:[#allocation2 + $0x150] sm:$0xff] 0.0
      %117 = vst [vmem:[#allocation2 + $0x158] sm:$0xff] 0.0
      %118 = vst [vmem:[#allocation2 + $0x160] sm:$0xff] 0.0
      %119 = vst [vmem:[#allocation2 + $0x168] sm:$0xff] 0.0
      %120 = vst [vmem:[#allocation2 + $0x170] sm:$0xff] 0.0
      %121 = vst [vmem:[#allocation2 + $0x178] sm:$0xff] 0.0
      %122 = vst [vmem:[#allocation2 + $0x180] sm:$0xff] 0.0
      %123 = vst [vmem:[#allocation2 + $0x188] sm:$0xff] 0.0
      %124 = vst [vmem:[#allocation2 + $0x190] sm:$0xff] 0.0
      %125 = vst [vmem:[#allocation2 + $0x198] sm:$0xff] 0.0
      %126 = vst [vmem:[#allocation2 + $0x1a0] sm:$0xff] 0.0
      %127 = vst [vmem:[#allocation2 + $0x1a8] sm:$0xff] 0.0
      %128 = vst [vmem:[#allocation2 + $0x1b0] sm:$0xff] 0.0
      %129 = vst [vmem:[#allocation2 + $0x1b8] sm:$0xff] 0.0
      %130 = vst [vmem:[#allocation2 + $0x1c0] sm:$0xff] 0.0
      %131 = vst [vmem:[#allocation2 + $0x1c8] sm:$0xff] 0.0
      %132 = vst [vmem:[#allocation2 + $0x1d0] sm:$0xff] 0.0
      %133 = vst [vmem:[#allocation2 + $0x1d8] sm:$0xff] 0.0
      %134 = vst [vmem:[#allocation2 + $0x1e0] sm:$0xff] 0.0
      %135 = vst [vmem:[#allocation2 + $0x1e8] sm:$0xff] 0.0
      %136 = vst [vmem:[#allocation2 + $0x1f0] sm:$0xff] 0.0
      %137 = vst [vmem:[#allocation2 + $0x1f8] sm:$0xff] 0.0
    $region37: #{bottleneck_forward.2} parent=1 // pred_fallthru
      _
    %v138 = vld [vmem:[#allocation2] sm:$0xff]
    %v139 = vld [vmem:[#allocation2 + $0x8] sm:$0xff]
    %v140 = vld [vmem:[#allocation2 + $0x10] sm:$0xff]
    %v141 = vld [vmem:[#allocation2 + $0x18] sm:$0xff]
    %v142 = vld [vmem:[#allocation2 + $0x20] sm:$0xff]
    %v143 = vld [vmem:[#allocation2 + $0x28] sm:$0xff]
    %v144 = vld [vmem:[#allocation2 + $0x30] sm:$0xff]
    %v145 = vld [vmem:[#allocation2 + $0x38] sm:$0xff]
    %v146 = vld [vmem:[#allocation2 + $0x40] sm:$0xff]
    %v147 = vld [vmem:[#allocation2 + $0x48] sm:$0xff]
    %v148 = vld [vmem:[#allocation2 + $0x50] sm:$0xff]
    %v149 = vld [vmem:[#allocation2 + $0x58] sm:$0xff]
    %v150 = vld [vmem:[#allocation2 + $0x60] sm:$0xff]
    %v151 = vld [vmem:[#allocation2 + $0x68] sm:$0xff]
    %v152 = vld [vmem:[#allocation2 + $0x70] sm:$0xff]
    %v153 = vld [vmem:[#allocation2 + $0x78] sm:$0xff]
    %v154 = vld [vmem:[#allocation2 + $0x80] sm:$0xff]
    %v155 = vld [vmem:[#allocation2 + $0x88] sm:$0xff]
    %v156 = vld [vmem:[#allocation2 + $0x90] sm:$0xff]
    %v157 = vld [vmem:[#allocation2 + $0x98] sm:$0xff]
    %v158 = vld [vmem:[#allocation2 + $0xa0] sm:$0xff]
    %v159 = vld [vmem:[#allocation2 + $0xa8] sm:$0xff]
    %v160 = vld [vmem:[#allocation2 + $0xb0] sm:$0xff]
    %v161 = vld [vmem:[#allocation2 + $0xb8] sm:$0xff]
    %v162 = vld [vmem:[#allocation2 + $0xc0] sm:$0xff]
    %v163 = vld [vmem:[#allocation2 + $0xc8] sm:$0xff]
    %v164 = vld [vmem:[#allocation2 + $0xd0] sm:$0xff]
    %v165 = vld [vmem:[#allocation2 + $0xd8] sm:$0xff]
    %v166 = vld [vmem:[#allocation2 + $0xe0] sm:$0xff]
    %v167 = vld [vmem:[#allocation2 + $0xe8] sm:$0xff]
    %v168 = vld [vmem:[#allocation2 + $0xf0] sm:$0xff]
    %v169 = vld [vmem:[#allocation2 + $0xf8] sm:$0xff]
    %v170 = vld [vmem:[#allocation2 + $0x100] sm:$0xff]
    %v171 = vld [vmem:[#allocation2 + $0x108] sm:$0xff]
    %v172 = vld [vmem:[#allocation2 + $0x110] sm:$0xff]
    %v173 = vld [vmem:[#allocation2 + $0x118] sm:$0xff]
    %v174 = vld [vmem:[#allocation2 + $0x120] sm:$0xff]
    %v175 = vld [vmem:[#allocation2 + $0x128] sm:$0xff]
    %v176 = vld [vmem:[#allocation2 + $0x130] sm:$0xff]
    %v177 = vld [vmem:[#allocation2 + $0x138] sm:$0xff]
    %v178 = vld [vmem:[#allocation2 + $0x140] sm:$0xff]
    %v179 = vld [vmem:[#allocation2 + $0x148] sm:$0xff]
    %v180 = vld [vmem:[#allocation2 + $0x150] sm:$0xff]
    %v181 = vld [vmem:[#allocation2 + $0x158] sm:$0xff]
    %v182 = vld [vmem:[#allocation2 + $0x160] sm:$0xff]
    %v183 = vld [vmem:[#allocation2 + $0x168] sm:$0xff]
    %v184 = vld [vmem:[#allocation2 + $0x170] sm:$0xff]
    %v185 = vld [vmem:[#allocation2 + $0x178] sm:$0xff]
    %v186 = vld [vmem:[#allocation2 + $0x180] sm:$0xff]
    %v187 = vld [vmem:[#allocation2 + $0x188] sm:$0xff]
    %v188 = vld [vmem:[#allocation2 + $0x190] sm:$0xff]
    %v189 = vld [vmem:[#allocation2 + $0x198] sm:$0xff]
    %v190 = vld [vmem:[#allocation2 + $0x1a0] sm:$0xff]
    %v191 = vld [vmem:[#allocation2 + $0x1a8] sm:$0xff]
    %v192 = vld [vmem:[#allocation2 + $0x1b0] sm:$0xff]
    %v193 = vld [vmem:[#allocation2 + $0x1b8] sm:$0xff]
    %v194 = vld [vmem:[#allocation2 + $0x1c0] sm:$0xff]
    %v195 = vld [vmem:[#allocation2 + $0x1c8] sm:$0xff]
    %v196 = vld [vmem:[#allocation2 + $0x1d0] sm:$0xff]
    %v197 = vld [vmem:[#allocation2 + $0x1d8] sm:$0xff]
    %v198 = vld [vmem:[#allocation2 + $0x1e0] sm:$0xff]
    %v199 = vld [vmem:[#allocation2 + $0x1e8] sm:$0xff]
    %v200 = vld [vmem:[#allocation2 + $0x1f0] sm:$0xff]
    %v201 = vld [vmem:[#allocation2 + $0x1f8] sm:$0xff]
    %v202 = vld [vmem:[#allocation3] sm:$0xf]
    %v203 = vld [vmem:[#allocation3 + $0x4] sm:$0xf]
    %v204 = vld [vmem:[#allocation3 + $0x8] sm:$0xf]
    %v205 = vld [vmem:[#allocation3 + $0xc] sm:$0xf]
    %v206 = vld [vmem:[#allocation3 + $0x10] sm:$0xf]
    %v207 = vld [vmem:[#allocation3 + $0x14] sm:$0xf]
    %v208 = vld [vmem:[#allocation3 + $0x18] sm:$0xf]
    %v209 = vld [vmem:[#allocation3 + $0x1c] sm:$0xf]
    %v210 = vld [vmem:[#allocation3 + $0x20] sm:$0xf]
    %v211 = vld [vmem:[#allocation3 + $0x24] sm:$0xf]
    %v212 = vld [vmem:[#allocation3 + $0x28] sm:$0xf]
    %v213 = vld [vmem:[#allocation3 + $0x2c] sm:$0xf]
    %v214 = vld [vmem:[#allocation3 + $0x30] sm:$0xf]
    %v215 = vld [vmem:[#allocation3 + $0x34] sm:$0xf]
    %v216 = vld [vmem:[#allocation3 + $0x38] sm:$0xf]
    %v217 = vld [vmem:[#allocation3 + $0x3c] sm:$0xf]
    %v218 = vld [vmem:[#allocation3 + $0x40] sm:$0xf]
    %v219 = vld [vmem:[#allocation3 + $0x44] sm:$0xf]
    %v220 = vld [vmem:[#allocation3 + $0x48] sm:$0xf]
    %v221 = vld [vmem:[#allocation3 + $0x4c] sm:$0xf]
    %v222 = vld [vmem:[#allocation3 + $0x50] sm:$0xf]
    %v223 = vld [vmem:[#allocation3 + $0x54] sm:$0xf]
    %v224 = vld [vmem:[#allocation3 + $0x58] sm:$0xf]
    %v225 = vld [vmem:[#allocation3 + $0x5c] sm:$0xf]
    %v226 = vld [vmem:[#allocation3 + $0x60] sm:$0xf]
    %v227 = vld [vmem:[#allocation3 + $0x64] sm:$0xf]
    %v228 = vld [vmem:[#allocation3 + $0x68] sm:$0xf]
    %v229 = vld [vmem:[#allocation3 + $0x6c] sm:$0xf]
    %v230 = vld [vmem:[#allocation3 + $0x70] sm:$0xf]
    %v231 = vld [vmem:[#allocation3 + $0x74] sm:$0xf]
    %v232 = vld [vmem:[#allocation3 + $0x78] sm:$0xf]
    %v233 = vld [vmem:[#allocation3 + $0x7c] sm:$0xf]
    %v234 = vld [vmem:[#allocation3 + $0x80] sm:$0xf]
    %v235 = vld [vmem:[#allocation3 + $0x84] sm:$0xf]
    %v236 = vld [vmem:[#allocation3 + $0x88] sm:$0xf]
    %v237 = vld [vmem:[#allocation3 + $0x8c] sm:$0xf]
    %v238 = vld [vmem:[#allocation3 + $0x90] sm:$0xf]
    %v239 = vld [vmem:[#allocation3 + $0x94] sm:$0xf]
    %v240 = vld [vmem:[#allocation3 + $0x98] sm:$0xf]
    %v241 = vld [vmem:[#allocation3 + $0x9c] sm:$0xf]
    %v242 = vld [vmem:[#allocation3 + $0xa0] sm:$0xf]
    %v243 = vld [vmem:[#allocation3 + $0xa4] sm:$0xf]
    %v244 = vld [vmem:[#allocation3 + $0xa8] sm:$0xf]
    %v245 = vld [vmem:[#allocation3 + $0xac] sm:$0xf]
    %v246 = vld [vmem:[#allocation3 + $0xb0] sm:$0xf]
    %v247 = vld [vmem:[#allocation3 + $0xb4] sm:$0xf]
    %v248 = vld [vmem:[#allocation3 + $0xb8] sm:$0xf]
    %v249 = vld [vmem:[#allocation3 + $0xbc] sm:$0xf]
    %v250 = vld [vmem:[#allocation3 + $0xc0] sm:$0xf]
    %v251 = vld [vmem:[#allocation3 + $0xc4] sm:$0xf]
    %v252 = vld [vmem:[#allocation3 + $0xc8] sm:$0xf]
    %v253 = vld [vmem:[#allocation3 + $0xcc] sm:$0xf]
    %v254 = vld [vmem:[#allocation3 + $0xd0] sm:$0xf]
    %v255 = vld [vmem:[#allocation3 + $0xd4] sm:$0xf]
    %v256 = vld [vmem:[#allocation3 + $0xd8] sm:$0xf]
    %v257 = vld [vmem:[#allocation3 + $0xdc] sm:$0xf]
    %v258 = vld [vmem:[#allocation3 + $0xe0] sm:$0xf]
    %v259 = vld [vmem:[#allocation3 + $0xe4] sm:$0xf]
    %v260 = vld [vmem:[#allocation3 + $0xe8] sm:$0xf]
    %v261 = vld [vmem:[#allocation3 + $0xec] sm:$0xf]
    %v262 = vld [vmem:[#allocation3 + $0xf0] sm:$0xf]
    %v263 = vld [vmem:[#allocation3 + $0xf4] sm:$0xf]
    %v264 = vld [vmem:[#allocation3 + $0xf8] sm:$0xf]
    %v265 = vld [vmem:[#allocation3 + $0xfc] sm:$0xf]
    %v266 = vld [vmem:[#allocation6] sm:$0xf]
    %v267 = vld [vmem:[#allocation6 + $0x4] sm:$0xf]
    %v268 = vld [vmem:[#allocation6 + $0x8] sm:$0xf]
    %v269 = vld [vmem:[#allocation6 + $0xc] sm:$0xf]
    %v334 = vunpack.c.l.b16 %v202
    %v335 = vunpack.c.l.b16 %v203
    %v336 = vunpack.c.l.b16 %v204
    %v337 = vunpack.c.l.b16 %v205
    %v338 = vunpack.c.l.b16 %v206
    %v339 = vunpack.c.l.b16 %v207
    %v340 = vunpack.c.l.b16 %v208
    %v341 = vunpack.c.l.b16 %v209
    %v342 = vunpack.c.l.b16 %v210
    %v343 = vunpack.c.l.b16 %v211
    %v344 = vunpack.c.l.b16 %v212
    %v345 = vunpack.c.l.b16 %v213
    %v346 = vunpack.c.l.b16 %v214
    %v347 = vunpack.c.l.b16 %v215
    %v348 = vunpack.c.l.b16 %v216
    %v349 = vunpack.c.l.b16 %v217
    %v350 = vunpack.c.l.b16 %v218
    %v351 = vunpack.c.l.b16 %v219
    %v352 = vunpack.c.l.b16 %v220
    %v353 = vunpack.c.l.b16 %v221
    %v354 = vunpack.c.l.b16 %v222
    %v355 = vunpack.c.l.b16 %v223
    %v356 = vunpack.c.l.b16 %v224
    %v357 = vunpack.c.l.b16 %v225
    %v358 = vunpack.c.l.b16 %v226
    %v359 = vunpack.c.l.b16 %v227
    %v360 = vunpack.c.l.b16 %v228
    %v361 = vunpack.c.l.b16 %v229
    %v362 = vunpack.c.l.b16 %v230
    %v363 = vunpack.c.l.b16 %v231
    %v364 = vunpack.c.l.b16 %v232
    %v365 = vunpack.c.l.b16 %v233
    %v366 = vunpack.c.l.b16 %v234
    %v367 = vunpack.c.l.b16 %v235
    %v368 = vunpack.c.l.b16 %v236
    %v369 = vunpack.c.l.b16 %v237
    %v370 = vunpack.c.l.b16 %v238
    %v371 = vunpack.c.l.b16 %v239
    %v372 = vunpack.c.l.b16 %v240
    %v373 = vunpack.c.l.b16 %v241
    %v374 = vunpack.c.l.b16 %v242
    %v375 = vunpack.c.l.b16 %v243
    %v376 = vunpack.c.l.b16 %v244
    %v377 = vunpack.c.l.b16 %v245
    %v378 = vunpack.c.l.b16 %v246
    %v379 = vunpack.c.l.b16 %v247
    %v380 = vunpack.c.l.b16 %v248
    %v381 = vunpack.c.l.b16 %v249
    %v382 = vunpack.c.l.b16 %v250
    %v383 = vunpack.c.l.b16 %v251
    %v384 = vunpack.c.l.b16 %v252
    %v385 = vunpack.c.l.b16 %v253
    %v386 = vunpack.c.l.b16 %v254
    %v387 = vunpack.c.l.b16 %v255
    %v388 = vunpack.c.l.b16 %v256
    %v389 = vunpack.c.l.b16 %v257
    %v390 = vunpack.c.l.b16 %v258
    %v391 = vunpack.c.l.b16 %v259
    %v392 = vunpack.c.l.b16 %v260
    %v393 = vunpack.c.l.b16 %v261
    %v394 = vunpack.c.l.b16 %v262
    %v395 = vunpack.c.l.b16 %v263
    %v396 = vunpack.c.l.b16 %v264
    %v397 = vunpack.c.l.b16 %v265
    %v398 = vpack.c.b16 %v335, %v334
    %v399 = vpack.c.b16 %v337, %v336
    %v400 = vpack.c.b16 %v339, %v338
    %v401 = vpack.c.b16 %v341, %v340
    %v402 = vpack.c.b16 %v343, %v342
    %v403 = vpack.c.b16 %v345, %v344
    %v404 = vpack.c.b16 %v347, %v346
    %v405 = vpack.c.b16 %v349, %v348
    %v406 = vpack.c.b16 %v351, %v350
    %v407 = vpack.c.b16 %v353, %v352
    %v408 = vpack.c.b16 %v355, %v354
    %v409 = vpack.c.b16 %v357, %v356
    %v410 = vpack.c.b16 %v359, %v358
    %v411 = vpack.c.b16 %v361, %v360
    %v412 = vpack.c.b16 %v363, %v362
    %v413 = vpack.c.b16 %v365, %v364
    %v414 = vpack.c.b16 %v367, %v366
    %v415 = vpack.c.b16 %v369, %v368
    %v416 = vpack.c.b16 %v371, %v370
    %v417 = vpack.c.b16 %v373, %v372
    %v418 = vpack.c.b16 %v375, %v374
    %v419 = vpack.c.b16 %v377, %v376
    %v420 = vpack.c.b16 %v379, %v378
    %v421 = vpack.c.b16 %v381, %v380
    %v422 = vpack.c.b16 %v383, %v382
    %v423 = vpack.c.b16 %v385, %v384
    %v424 = vpack.c.b16 %v387, %v386
    %v425 = vpack.c.b16 %v389, %v388
    %v426 = vpack.c.b16 %v391, %v390
    %v427 = vpack.c.b16 %v393, %v392
    %v428 = vpack.c.b16 %v395, %v394
    %v429 = vpack.c.b16 %v397, %v396
    %v434 = vunpack.c.l.b16 %v266
    %v435 = vunpack.c.l.b16 %v267
    %v436 = vunpack.c.l.b16 %v268
    %v437 = vunpack.c.l.b16 %v269
    %v438 = vpack.c.b16 %v435, %v434
    %v439 = vpack.c.b16 %v437, %v436
    %vm442 = vcmask 261120
    %v444 = vsel %vm442, %v398, 0
    %v447 = vsel %vm442, %v399, 0
    %v450 = vsel %vm442, %v400, 0
    %v453 = vsel %vm442, %v401, 0
    %v456 = vsel %vm442, %v402, 0
    %v459 = vsel %vm442, %v403, 0
    %v462 = vsel %vm442, %v404, 0
    %v465 = vsel %vm442, %v405, 0
    %v468 = vsel %vm442, %v406, 0
    %v471 = vsel %vm442, %v407, 0
    %v474 = vsel %vm442, %v408, 0
    %v477 = vsel %vm442, %v409, 0
    %v480 = vsel %vm442, %v410, 0
    %v483 = vsel %vm442, %v411, 0
    %v486 = vsel %vm442, %v412, 0
    %v489 = vsel %vm442, %v413, 0
    %v492 = vsel %vm442, %v414, 0
    %v495 = vsel %vm442, %v415, 0
    %v498 = vsel %vm442, %v416, 0
    %v501 = vsel %vm442, %v417, 0
    %v504 = vsel %vm442, %v418, 0
    %v507 = vsel %vm442, %v419, 0
    %v510 = vsel %vm442, %v420, 0
    %v513 = vsel %vm442, %v421, 0
    %v516 = vsel %vm442, %v422, 0
    %v519 = vsel %vm442, %v423, 0
    %v522 = vsel %vm442, %v424, 0
    %v525 = vsel %vm442, %v425, 0
    %v528 = vsel %vm442, %v426, 0
    %v531 = vsel %vm442, %v427, 0
    %v534 = vsel %vm442, %v428, 0
    %v537 = vsel %vm442, %v429, 0
    %539 = vmatprep.subr.bf16.mxu0 0
    %540 = vmatpush1.bf16.msra.mxu0 %v438
    %541 = vmatprep.subr.bf16.mxu0 0
    %542 = vmatpush1.bf16.msra.mxu0 %v439
    %543 = vmatprep.subr.bf16.mxu0 0
    %544 = vmatpush1.bf16.msra.mxu0 0
    %545 = vmatprep.subr.bf16.mxu0 0
    %546 = vmatpush1.bf16.msra.mxu0 0
    %547 = vmatprep.subr.bf16.mxu0 0
    %548 = vmatpush1.bf16.msra.mxu0 0
    %549 = vmatprep.subr.bf16.mxu0 0
    %550 = vmatpush1.bf16.msra.mxu0 0
    %551 = vmatprep.subr.bf16.mxu0 0
    %552 = vmatpush1.bf16.msra.mxu0 0
    %553 = vmatprep.subr.bf16.mxu0 0
    %554 = vmatpush1.bf16.msra.mxu0 0
    %555 = vmatprep.subr.bf16.mxu0 0
    %556 = vmatpush1.bf16.msra.mxu0 0
    %557 = vmatprep.subr.bf16.mxu0 0
    %558 = vmatpush1.bf16.msra.mxu0 0
    %559 = vmatprep.subr.bf16.mxu0 0
    %560 = vmatpush1.bf16.msra.mxu0 0
    %561 = vmatprep.subr.bf16.mxu0 0
    %562 = vmatpush1.bf16.msra.mxu0 0
    %563 = vmatprep.subr.bf16.mxu0 0
    %564 = vmatpush1.bf16.msra.mxu0 0
    %565 = vmatprep.subr.bf16.mxu0 0
    %566 = vmatpush1.bf16.msra.mxu0 0
    %567 = vmatprep.subr.bf16.mxu0 0
    %568 = vmatpush1.bf16.msra.mxu0 0
    %569 = vmatprep.subr.bf16.mxu0 0
    %570 = vmatpush1.bf16.msra.mxu0 0
    %571 = vmatprep.mubr.bf16.mxu0 0
    %572 = vmatmul.mubr.bf16.gmra.mrb[0].mxu0 %v444
    %v573 = vpop.f32.mrb[0].mxu0
    %v574 = vadd.f32 0.0, %v573
    %v575 = vpop.f32.mrb[0].mxu0
    %v576 = vpop.f32.mrb[0].mxu0
    %v577 = vadd.f32 0.0, %v576
    %v578 = vpop.f32.mrb[0].mxu0
    %579 = vmatprep.mubr.bf16.mxu0 0
    %580 = vmatmul.mubr.bf16.gmra.mrb[0].mxu0 %v447
    %v581 = vpop.f32.mrb[0].mxu0
    %v582 = vadd.f32 0.0, %v581
    %v583 = vpop.f32.mrb[0].mxu0
    %v584 = vpop.f32.mrb[0].mxu0
    %v585 = vadd.f32 0.0, %v584
    %v586 = vpop.f32.mrb[0].mxu0
    %587 = vmatprep.mubr.bf16.mxu0 0
    %588 = vmatmul.mubr.bf16.gmra.mrb[0].mxu0 %v450
    %v589 = vpop.f32.mrb[0].mxu0
    %v590 = vadd.f32 0.0, %v589
    %v591 = vpop.f32.mrb[0].mxu0
    %v592 = vpop.f32.mrb[0].mxu0
    %v593 = vadd.f32 0.0, %v592
    %v594 = vpop.f32.mrb[0].mxu0
    %595 = vmatprep.mubr.bf16.mxu0 0
    %596 = vmatmul.mubr.bf16.gmra.mrb[0].mxu0 %v453
    %v597 = vpop.f32.mrb[0].mxu0
    %v598 = vadd.f32 0.0, %v597
    %v599 = vpop.f32.mrb[0].mxu0
    %v600 = vpop.f32.mrb[0].mxu0
    %v601 = vadd.f32 0.0, %v600
    %v602 = vpop.f32.mrb[0].mxu0
    %603 = vmatprep.mubr.bf16.mxu0 0
    %604 = vmatmul.mubr.bf16.gmra.mrb[0].mxu0 %v456
    %v605 = vpop.f32.mrb[0].mxu0
    %v606 = vadd.f32 0.0, %v605
    %v607 = vpop.f32.mrb[0].mxu0
    %v608 = vpop.f32.mrb[0].mxu0
    %v609 = vadd.f32 0.0, %v608
    %v610 = vpop.f32.mrb[0].mxu0
    %611 = vmatprep.mubr.bf16.mxu0 0
    %612 = vmatmul.mubr.bf16.gmra.mrb[0].mxu0 %v459
    %v613 = vpop.f32.mrb[0].mxu0
    %v614 = vadd.f32 0.0, %v613
    %v615 = vpop.f32.mrb[0].mxu0
    %v616 = vpop.f32.mrb[0].mxu0
    %v617 = vadd.f32 0.0, %v616
    %v618 = vpop.f32.mrb[0].mxu0
    %619 = vmatprep.mubr.bf16.mxu0 0
    %620 = vmatmul.mubr.bf16.gmra.mrb[0].mxu0 %v462
    %v621 = vpop.f32.mrb[0].mxu0
    %v622 = vadd.f32 0.0, %v621
    %v623 = vpop.f32.mrb[0].mxu0
    %v624 = vpop.f32.mrb[0].mxu0
    %v625 = vadd.f32 0.0, %v624
    %v626 = vpop.f32.mrb[0].mxu0
    %627 = vmatprep.mubr.bf16.mxu0 0
    %628 = vmatmul.mubr.bf16.gmra.mrb[0].mxu0 %v465
    %v629 = vpop.f32.mrb[0].mxu0
    %v630 = vadd.f32 0.0, %v629
    %v631 = vpop.f32.mrb[0].mxu0
    %v632 = vpop.f32.mrb[0].mxu0
    %v633 = vadd.f32 0.0, %v632
    %v634 = vpop.f32.mrb[0].mxu0
    %635 = vmatprep.mubr.bf16.mxu0 0
    %636 = vmatmul.mubr.bf16.gmra.mrb[0].mxu0 %v468
    %v637 = vpop.f32.mrb[0].mxu0
    %v638 = vadd.f32 0.0, %v637
    %v639 = vpop.f32.mrb[0].mxu0
    %v640 = vpop.f32.mrb[0].mxu0
    %v641 = vadd.f32 0.0, %v640
    %v642 = vpop.f32.mrb[0].mxu0
    %643 = vmatprep.mubr.bf16.mxu0 0
    %644 = vmatmul.mubr.bf16.gmra.mrb[0].mxu0 %v471
    %v645 = vpop.f32.mrb[0].mxu0
    %v646 = vadd.f32 0.0, %v645
    %v647 = vpop.f32.mrb[0].mxu0
    %v648 = vpop.f32.mrb[0].mxu0
    %v649 = vadd.f32 0.0, %v648
    %v650 = vpop.f32.mrb[0].mxu0
    %651 = vmatprep.mubr.bf16.mxu0 0
    %652 = vmatmul.mubr.bf16.gmra.mrb[0].mxu0 %v474
    %v653 = vpop.f32.mrb[0].mxu0
    %v654 = vadd.f32 0.0, %v653
    %v655 = vpop.f32.mrb[0].mxu0
    %v656 = vpop.f32.mrb[0].mxu0
    %v657 = vadd.f32 0.0, %v656
    %v658 = vpop.f32.mrb[0].mxu0
    %659 = vmatprep.mubr.bf16.mxu0 0
    %660 = vmatmul.mubr.bf16.gmra.mrb[0].mxu0 %v477
    %v661 = vpop.f32.mrb[0].mxu0
    %v662 = vadd.f32 0.0, %v661
    %v663 = vpop.f32.mrb[0].mxu0
    %v664 = vpop.f32.mrb[0].mxu0
    %v665 = vadd.f32 0.0, %v664
    %v666 = vpop.f32.mrb[0].mxu0
    %667 = vmatprep.mubr.bf16.mxu0 0
    %668 = vmatmul.mubr.bf16.gmra.mrb[0].mxu0 %v480
    %v669 = vpop.f32.mrb[0].mxu0
    %v670 = vadd.f32 0.0, %v669
    %v671 = vpop.f32.mrb[0].mxu0
    %v672 = vpop.f32.mrb[0].mxu0
    %v673 = vadd.f32 0.0, %v672
    %v674 = vpop.f32.mrb[0].mxu0
    %675 = vmatprep.mubr.bf16.mxu0 0
    %676 = vmatmul.mubr.bf16.gmra.mrb[0].mxu0 %v483
    %v677 = vpop.f32.mrb[0].mxu0
    %v678 = vadd.f32 0.0, %v677
    %v679 = vpop.f32.mrb[0].mxu0
    %v680 = vpop.f32.mrb[0].mxu0
    %v681 = vadd.f32 0.0, %v680
    %v682 = vpop.f32.mrb[0].mxu0
    %683 = vmatprep.mubr.bf16.mxu0 0
    %684 = vmatmul.mubr.bf16.gmra.mrb[0].mxu0 %v486
    %v685 = vpop.f32.mrb[0].mxu0
    %v686 = vadd.f32 0.0, %v685
    %v687 = vpop.f32.mrb[0].mxu0
    %v688 = vpop.f32.mrb[0].mxu0
    %v689 = vadd.f32 0.0, %v688
    %v690 = vpop.f32.mrb[0].mxu0
    %691 = vmatprep.mubr.bf16.mxu0 0
    %692 = vmatmul.mubr.bf16.gmra.mrb[0].mxu0 %v489
    %v693 = vpop.f32.mrb[0].mxu0
    %v694 = vadd.f32 0.0, %v693
    %v695 = vpop.f32.mrb[0].mxu0
    %v696 = vpop.f32.mrb[0].mxu0
    %v697 = vadd.f32 0.0, %v696
    %v698 = vpop.f32.mrb[0].mxu0
    %699 = vmatprep.mubr.bf16.mxu0 0
    %700 = vmatmul.mubr.bf16.gmra.mrb[0].mxu0 %v492
    %v701 = vpop.f32.mrb[0].mxu0
    %v702 = vadd.f32 0.0, %v701
    %v703 = vpop.f32.mrb[0].mxu0
    %v704 = vpop.f32.mrb[0].mxu0
    %v705 = vadd.f32 0.0, %v704
    %v706 = vpop.f32.mrb[0].mxu0
    %707 = vmatprep.mubr.bf16.mxu0 0
    %708 = vmatmul.mubr.bf16.gmra.mrb[0].mxu0 %v495
    %v709 = vpop.f32.mrb[0].mxu0
    %v710 = vadd.f32 0.0, %v709
    %v711 = vpop.f32.mrb[0].mxu0
    %v712 = vpop.f32.mrb[0].mxu0
    %v713 = vadd.f32 0.0, %v712
    %v714 = vpop.f32.mrb[0].mxu0
    %715 = vmatprep.mubr.bf16.mxu0 0
    %716 = vmatmul.mubr.bf16.gmra.mrb[0].mxu0 %v498
    %v717 = vpop.f32.mrb[0].mxu0
    %v718 = vadd.f32 0.0, %v717
    %v719 = vpop.f32.mrb[0].mxu0
    %v720 = vpop.f32.mrb[0].mxu0
    %v721 = vadd.f32 0.0, %v720
    %v722 = vpop.f32.mrb[0].mxu0
    %723 = vmatprep.mubr.bf16.mxu0 0
    %724 = vmatmul.mubr.bf16.gmra.mrb[0].mxu0 %v501
    %v725 = vpop.f32.mrb[0].mxu0
    %v726 = vadd.f32 0.0, %v725
    %v727 = vpop.f32.mrb[0].mxu0
    %v728 = vpop.f32.mrb[0].mxu0
    %v729 = vadd.f32 0.0, %v728
    %v730 = vpop.f32.mrb[0].mxu0
    %731 = vmatprep.mubr.bf16.mxu0 0
    %732 = vmatmul.mubr.bf16.gmra.mrb[0].mxu0 %v504
    %v733 = vpop.f32.mrb[0].mxu0
    %v734 = vadd.f32 0.0, %v733
    %v735 = vpop.f32.mrb[0].mxu0
    %v736 = vpop.f32.mrb[0].mxu0
    %v737 = vadd.f32 0.0, %v736
    %v738 = vpop.f32.mrb[0].mxu0
    %739 = vmatprep.mubr.bf16.mxu0 0
    %740 = vmatmul.mubr.bf16.gmra.mrb[0].mxu0 %v507
    %v741 = vpop.f32.mrb[0].mxu0
    %v742 = vadd.f32 0.0, %v741
    %v743 = vpop.f32.mrb[0].mxu0
    %v744 = vpop.f32.mrb[0].mxu0
    %v745 = vadd.f32 0.0, %v744
    %v746 = vpop.f32.mrb[0].mxu0
    %747 = vmatprep.mubr.bf16.mxu0 0
    %748 = vmatmul.mubr.bf16.gmra.mrb[0].mxu0 %v510
    %v749 = vpop.f32.mrb[0].mxu0
    %v750 = vadd.f32 0.0, %v749
    %v751 = vpop.f32.mrb[0].mxu0
    %v752 = vpop.f32.mrb[0].mxu0
    %v753 = vadd.f32 0.0, %v752
    %v754 = vpop.f32.mrb[0].mxu0
    %755 = vmatprep.mubr.bf16.mxu0 0
    %756 = vmatmul.mubr.bf16.gmra.mrb[0].mxu0 %v513
    %v757 = vpop.f32.mrb[0].mxu0
    %v758 = vadd.f32 0.0, %v757
    %v759 = vpop.f32.mrb[0].mxu0
    %v760 = vpop.f32.mrb[0].mxu0
    %v761 = vadd.f32 0.0, %v760
    %v762 = vpop.f32.mrb[0].mxu0
    %763 = vmatprep.mubr.bf16.mxu0 0
    %764 = vmatmul.mubr.bf16.gmra.mrb[0].mxu0 %v516
    %v765 = vpop.f32.mrb[0].mxu0
    %v766 = vadd.f32 0.0, %v765
    %v767 = vpop.f32.mrb[0].mxu0
    %v768 = vpop.f32.mrb[0].mxu0
    %v769 = vadd.f32 0.0, %v768
    %v770 = vpop.f32.mrb[0].mxu0
    %771 = vmatprep.mubr.bf16.mxu0 0
    %772 = vmatmul.mubr.bf16.gmra.mrb[0].mxu0 %v519
    %v773 = vpop.f32.mrb[0].mxu0
    %v774 = vadd.f32 0.0, %v773
    %v775 = vpop.f32.mrb[0].mxu0
    %v776 = vpop.f32.mrb[0].mxu0
    %v777 = vadd.f32 0.0, %v776
    %v778 = vpop.f32.mrb[0].mxu0
    %779 = vmatprep.mubr.bf16.mxu0 0
    %780 = vmatmul.mubr.bf16.gmra.mrb[0].mxu0 %v522
    %v781 = vpop.f32.mrb[0].mxu0
    %v782 = vadd.f32 0.0, %v781
    %v783 = vpop.f32.mrb[0].mxu0
    %v784 = vpop.f32.mrb[0].mxu0
    %v785 = vadd.f32 0.0, %v784
    %v786 = vpop.f32.mrb[0].mxu0
    %787 = vmatprep.mubr.bf16.mxu0 0
    %788 = vmatmul.mubr.bf16.gmra.mrb[0].mxu0 %v525
    %v789 = vpop.f32.mrb[0].mxu0
    %v790 = vadd.f32 0.0, %v789
    %v791 = vpop.f32.mrb[0].mxu0
    %v792 = vpop.f32.mrb[0].mxu0
    %v793 = vadd.f32 0.0, %v792
    %v794 = vpop.f32.mrb[0].mxu0
    %795 = vmatprep.mubr.bf16.mxu0 0
    %796 = vmatmul.mubr.bf16.gmra.mrb[0].mxu0 %v528
    %v797 = vpop.f32.mrb[0].mxu0
    %v798 = vadd.f32 0.0, %v797
    %v799 = vpop.f32.mrb[0].mxu0
    %v800 = vpop.f32.mrb[0].mxu0
    %v801 = vadd.f32 0.0, %v800
    %v802 = vpop.f32.mrb[0].mxu0
    %803 = vmatprep.mubr.bf16.mxu0 0
    %804 = vmatmul.mubr.bf16.gmra.mrb[0].mxu0 %v531
    %v805 = vpop.f32.mrb[0].mxu0
    %v806 = vadd.f32 0.0, %v805
    %v807 = vpop.f32.mrb[0].mxu0
    %v808 = vpop.f32.mrb[0].mxu0
    %v809 = vadd.f32 0.0, %v808
    %v810 = vpop.f32.mrb[0].mxu0
    %811 = vmatprep.mubr.bf16.mxu0 0
    %812 = vmatmul.mubr.bf16.gmra.mrb[0].mxu0 %v534
    %v813 = vpop.f32.mrb[0].mxu0
    %v814 = vadd.f32 0.0, %v813
    %v815 = vpop.f32.mrb[0].mxu0
    %v816 = vpop.f32.mrb[0].mxu0
    %v817 = vadd.f32 0.0, %v816
    %v818 = vpop.f32.mrb[0].mxu0
    %819 = vmatprep.mubr.bf16.mxu0 0
    %820 = vmatmul.mubr.bf16.gmra.mrb[0].mxu0 %v537
    %v821 = vpop.f32.mrb[0].mxu0
    %v822 = vadd.f32 0.0, %v821
    %v823 = vpop.f32.mrb[0].mxu0
    %v824 = vpop.f32.mrb[0].mxu0
    %v825 = vadd.f32 0.0, %v824
    %v826 = vpop.f32.mrb[0].mxu0
    %827 = vdwg.mxu0
    %v828 = vadd.f32 %v138, %v574
    %v829 = vadd.f32 %v139, %v577
    %v830 = vadd.f32 %v140, %v582
    %v831 = vadd.f32 %v141, %v585
    %v832 = vadd.f32 %v142, %v590
    %v833 = vadd.f32 %v143, %v593
    %v834 = vadd.f32 %v144, %v598
    %v835 = vadd.f32 %v145, %v601
    %v836 = vadd.f32 %v146, %v606
    %v837 = vadd.f32 %v147, %v609
    %v838 = vadd.f32 %v148, %v614
    %v839 = vadd.f32 %v149, %v617
    %v840 = vadd.f32 %v150, %v622
    %v841 = vadd.f32 %v151, %v625
    %v842 = vadd.f32 %v152, %v630
    %v843 = vadd.f32 %v153, %v633
    %v844 = vadd.f32 %v154, %v638
    %v845 = vadd.f32 %v155, %v641
    %v846 = vadd.f32 %v156, %v646
    %v847 = vadd.f32 %v157, %v649
    %v848 = vadd.f32 %v158, %v654
    %v849 = vadd.f32 %v159, %v657
    %v850 = vadd.f32 %v160, %v662
    %v851 = vadd.f32 %v161, %v665
    %v852 = vadd.f32 %v162, %v670
    %v853 = vadd.f32 %v163, %v673
    %v854 = vadd.f32 %v164, %v678
    %v855 = vadd.f32 %v165, %v681
    %v856 = vadd.f32 %v166, %v686
    %v857 = vadd.f32 %v167, %v689
    %v858 = vadd.f32 %v168, %v694
    %v859 = vadd.f32 %v169, %v697
    %v860 = vadd.f32 %v170, %v702
    %v861 = vadd.f32 %v171, %v705
    %v862 = vadd.f32 %v172, %v710
    %v863 = vadd.f32 %v173, %v713
    %v864 = vadd.f32 %v174, %v718
    %v865 = vadd.f32 %v175, %v721
    %v866 = vadd.f32 %v176, %v726
    %v867 = vadd.f32 %v177, %v729
    %v868 = vadd.f32 %v178, %v734
    %v869 = vadd.f32 %v179, %v737
    %v870 = vadd.f32 %v180, %v742
    %v871 = vadd.f32 %v181, %v745
    %v872 = vadd.f32 %v182, %v750
    %v873 = vadd.f32 %v183, %v753
    %v874 = vadd.f32 %v184, %v758
    %v875 = vadd.f32 %v185, %v761
    %v876 = vadd.f32 %v186, %v766
    %v877 = vadd.f32 %v187, %v769
    %v878 = vadd.f32 %v188, %v774
    %v879 = vadd.f32 %v189, %v777
    %v880 = vadd.f32 %v190, %v782
    %v881 = vadd.f32 %v191, %v785
    %v882 = vadd.f32 %v192, %v790
    %v883 = vadd.f32 %v193, %v793
    %v884 = vadd.f32 %v194, %v798
    %v885 = vadd.f32 %v195, %v801
    %v886 = vadd.f32 %v196, %v806
    %v887 = vadd.f32 %v197, %v809
    %v888 = vadd.f32 %v198, %v814
    %v889 = vadd.f32 %v199, %v817
    %v890 = vadd.f32 %v200, %v822
    %v891 = vadd.f32 %v201, %v825
    %892 = vst [vmem:[#allocation2] sm:$0xff] %v828
    %893 = vst [vmem:[#allocation2 + $0x8] sm:$0xff] %v829
    %894 = vst [vmem:[#allocation2 + $0x10] sm:$0xff] %v830
    %895 = vst [vmem:[#allocation2 + $0x18] sm:$0xff] %v831
    %896 = vst [vmem:[#allocation2 + $0x20] sm:$0xff] %v832
    %897 = vst [vmem:[#allocation2 + $0x28] sm:$0xff] %v833
    %898 = vst [vmem:[#allocation2 + $0x30] sm:$0xff] %v834
    %899 = vst [vmem:[#allocation2 + $0x38] sm:$0xff] %v835
    %900 = vst [vmem:[#allocation2 + $0x40] sm:$0xff] %v836
    %901 = vst [vmem:[#allocation2 + $0x48] sm:$0xff] %v837
    %902 = vst [vmem:[#allocation2 + $0x50] sm:$0xff] %v838
    %903 = vst [vmem:[#allocation2 + $0x58] sm:$0xff] %v839
    %904 = vst [vmem:[#allocation2 + $0x60] sm:$0xff] %v840
    %905 = vst [vmem:[#allocation2 + $0x68] sm:$0xff] %v841
    %906 = vst [vmem:[#allocation2 + $0x70] sm:$0xff] %v842
    %907 = vst [vmem:[#allocation2 + $0x78] sm:$0xff] %v843
    %908 = vst [vmem:[#allocation2 + $0x80] sm:$0xff] %v844
    %909 = vst [vmem:[#allocation2 + $0x88] sm:$0xff] %v845
    %910 = vst [vmem:[#allocation2 + $0x90] sm:$0xff] %v846
    %911 = vst [vmem:[#allocation2 + $0x98] sm:$0xff] %v847
    %912 = vst [vmem:[#allocation2 + $0xa0] sm:$0xff] %v848
    %913 = vst [vmem:[#allocation2 + $0xa8] sm:$0xff] %v849
    %914 = vst [vmem:[#allocation2 + $0xb0] sm:$0xff] %v850
    %915 = vst [vmem:[#allocation2 + $0xb8] sm:$0xff] %v851
    %916 = vst [vmem:[#allocation2 + $0xc0] sm:$0xff] %v852
    %917 = vst [vmem:[#allocation2 + $0xc8] sm:$0xff] %v853
    %918 = vst [vmem:[#allocation2 + $0xd0] sm:$0xff] %v854
    %919 = vst [vmem:[#allocation2 + $0xd8] sm:$0xff] %v855
    %920 = vst [vmem:[#allocation2 + $0xe0] sm:$0xff] %v856
    %921 = vst [vmem:[#allocation2 + $0xe8] sm:$0xff] %v857
    %922 = vst [vmem:[#allocation2 + $0xf0] sm:$0xff] %v858
    %923 = vst [vmem:[#allocation2 + $0xf8] sm:$0xff] %v859
    %924 = vst [vmem:[#allocation2 + $0x100] sm:$0xff] %v860
    %925 = vst [vmem:[#allocation2 + $0x108] sm:$0xff] %v861
    %926 = vst [vmem:[#allocation2 + $0x110] sm:$0xff] %v862
    %927 = vst [vmem:[#allocation2 + $0x118] sm:$0xff] %v863
    %928 = vst [vmem:[#allocation2 + $0x120] sm:$0xff] %v864
    %929 = vst [vmem:[#allocation2 + $0x128] sm:$0xff] %v865
    %930 = vst [vmem:[#allocation2 + $0x130] sm:$0xff] %v866
    %931 = vst [vmem:[#allocation2 + $0x138] sm:$0xff] %v867
    %932 = vst [vmem:[#allocation2 + $0x140] sm:$0xff] %v868
    %933 = vst [vmem:[#allocation2 + $0x148] sm:$0xff] %v869
    %934 = vst [vmem:[#allocation2 + $0x150] sm:$0xff] %v870
    %935 = vst [vmem:[#allocation2 + $0x158] sm:$0xff] %v871
    %936 = vst [vmem:[#allocation2 + $0x160] sm:$0xff] %v872
    %937 = vst [vmem:[#allocation2 + $0x168] sm:$0xff] %v873
    %938 = vst [vmem:[#allocation2 + $0x170] sm:$0xff] %v874
    %939 = vst [vmem:[#allocation2 + $0x178] sm:$0xff] %v875
    %940 = vst [vmem:[#allocation2 + $0x180] sm:$0xff] %v876
    %941 = vst [vmem:[#allocation2 + $0x188] sm:$0xff] %v877
    %942 = vst [vmem:[#allocation2 + $0x190] sm:$0xff] %v878
    %943 = vst [vmem:[#allocation2 + $0x198] sm:$0xff] %v879
    %944 = vst [vmem:[#allocation2 + $0x1a0] sm:$0xff] %v880
    %945 = vst [vmem:[#allocation2 + $0x1a8] sm:$0xff] %v881
    %946 = vst [vmem:[#allocation2 + $0x1b0] sm:$0xff] %v882
    %947 = vst [vmem:[#allocation2 + $0x1b8] sm:$0xff] %v883
    %948 = vst [vmem:[#allocation2 + $0x1c0] sm:$0xff] %v884
    %949 = vst [vmem:[#allocation2 + $0x1c8] sm:$0xff] %v885
    %950 = vst [vmem:[#allocation2 + $0x1d0] sm:$0xff] %v886
    %951 = vst [vmem:[#allocation2 + $0x1d8] sm:$0xff] %v887
    %952 = vst [vmem:[#allocation2 + $0x1e0] sm:$0xff] %v888
    %953 = vst [vmem:[#allocation2 + $0x1e8] sm:$0xff] %v889
    %954 = vst [vmem:[#allocation2 + $0x1f0] sm:$0xff] %v890
    %955 = vst [vmem:[#allocation2 + $0x1f8] sm:$0xff] %v891
    // Predicated region
    $region38: #{bottleneck_forward.2} parent=1 // pred_check
      %p956 = pneg %p70
    $region39: #{bottleneck_forward.2} parent=1 // pred_check_branch
      %958 = sbr.rel (%p956) target = $region41
    $region40: #{bottleneck_forward.2} parent=1 // pred_region
      %v959 = vld [vmem:[#allocation2] sm:$0xff]
      %v960 = vld [vmem:[#allocation2 + $0x8] sm:$0xff]
      %v961 = vld [vmem:[#allocation2 + $0x10] sm:$0xff]
      %v962 = vld [vmem:[#allocation2 + $0x18] sm:$0xff]
      %v963 = vld [vmem:[#allocation2 + $0x20] sm:$0xff]
      %v964 = vld [vmem:[#allocation2 + $0x28] sm:$0xff]
      %v965 = vld [vmem:[#allocation2 + $0x30] sm:$0xff]
      %v966 = vld [vmem:[#allocation2 + $0x38] sm:$0xff]
      %v967 = vld [vmem:[#allocation2 + $0x40] sm:$0xff]
      %v968 = vld [vmem:[#allocation2 + $0x48] sm:$0xff]
      %v969 = vld [vmem:[#allocation2 + $0x50] sm:$0xff]
      %v970 = vld [vmem:[#allocation2 + $0x58] sm:$0xff]
      %v971 = vld [vmem:[#allocation2 + $0x60] sm:$0xff]
      %v972 = vld [vmem:[#allocation2 + $0x68] sm:$0xff]
      %v973 = vld [vmem:[#allocation2 + $0x70] sm:$0xff]
      %v974 = vld [vmem:[#allocation2 + $0x78] sm:$0xff]
      %v975 = vld [vmem:[#allocation2 + $0x80] sm:$0xff]
      %v976 = vld [vmem:[#allocation2 + $0x88] sm:$0xff]
      %v977 = vld [vmem:[#allocation2 + $0x90] sm:$0xff]
      %v978 = vld [vmem:[#allocation2 + $0x98] sm:$0xff]
      %v979 = vld [vmem:[#allocation2 + $0xa0] sm:$0xff]
      %v980 = vld [vmem:[#allocation2 + $0xa8] sm:$0xff]
      %v981 = vld [vmem:[#allocation2 + $0xb0] sm:$0xff]
      %v982 = vld [vmem:[#allocation2 + $0xb8] sm:$0xff]
      %v983 = vld [vmem:[#allocation2 + $0xc0] sm:$0xff]
      %v984 = vld [vmem:[#allocation2 + $0xc8] sm:$0xff]
      %v985 = vld [vmem:[#allocation2 + $0xd0] sm:$0xff]
      %v986 = vld [vmem:[#allocation2 + $0xd8] sm:$0xff]
      %v987 = vld [vmem:[#allocation2 + $0xe0] sm:$0xff]
      %v988 = vld [vmem:[#allocation2 + $0xe8] sm:$0xff]
      %v989 = vld [vmem:[#allocation2 + $0xf0] sm:$0xff]
      %v990 = vld [vmem:[#allocation2 + $0xf8] sm:$0xff]
      %v991 = vld [vmem:[#allocation2 + $0x100] sm:$0xff]
      %v992 = vld [vmem:[#allocation2 + $0x108] sm:$0xff]
      %v993 = vld [vmem:[#allocation2 + $0x110] sm:$0xff]
      %v994 = vld [vmem:[#allocation2 + $0x118] sm:$0xff]
      %v995 = vld [vmem:[#allocation2 + $0x120] sm:$0xff]
      %v996 = vld [vmem:[#allocation2 + $0x128] sm:$0xff]
      %v997 = vld [vmem:[#allocation2 + $0x130] sm:$0xff]
      %v998 = vld [vmem:[#allocation2 + $0x138] sm:$0xff]
      %v999 = vld [vmem:[#allocation2 + $0x140] sm:$0xff]
      %v1000 = vld [vmem:[#allocation2 + $0x148] sm:$0xff]
      %v1001 = vld [vmem:[#allocation2 + $0x150] sm:$0xff]
      %v1002 = vld [vmem:[#allocation2 + $0x158] sm:$0xff]
      %v1003 = vld [vmem:[#allocation2 + $0x160] sm:$0xff]
      %v1004 = vld [vmem:[#allocation2 + $0x168] sm:$0xff]
      %v1005 = vld [vmem:[#allocation2 + $0x170] sm:$0xff]
      %v1006 = vld [vmem:[#allocation2 + $0x178] sm:$0xff]
      %v1007 = vld [vmem:[#allocation2 + $0x180] sm:$0xff]
      %v1008 = vld [vmem:[#allocation2 + $0x188] sm:$0xff]
      %v1009 = vld [vmem:[#allocation2 + $0x190] sm:$0xff]
      %v1010 = vld [vmem:[#allocation2 + $0x198] sm:$0xff]
      %v1011 = vld [vmem:[#allocation2 + $0x1a0] sm:$0xff]
      %v1012 = vld [vmem:[#allocation2 + $0x1a8] sm:$0xff]
      %v1013 = vld [vmem:[#allocation2 + $0x1b0] sm:$0xff]
      %v1014 = vld [vmem:[#allocation2 + $0x1b8] sm:$0xff]
      %v1015 = vld [vmem:[#allocation2 + $0x1c0] sm:$0xff]
      %v1016 = vld [vmem:[#allocation2 + $0x1c8] sm:$0xff]
      %v1017 = vld [vmem:[#allocation2 + $0x1d0] sm:$0xff]
      %v1018 = vld [vmem:[#allocation2 + $0x1d8] sm:$0xff]
      %v1019 = vld [vmem:[#allocation2 + $0x1e0] sm:$0xff]
      %v1020 = vld [vmem:[#allocation2 + $0x1e8] sm:$0xff]
      %v1021 = vld [vmem:[#allocation2 + $0x1f0] sm:$0xff]
      %v1022 = vld [vmem:[#allocation2 + $0x1f8] sm:$0xff]
      %v1023 = vld [vmem:[#allocation8] sm:$0x1]
      %v1024 = vld [vmem:[#allocation9] sm:$0x1]
      %v1025 = vadd.f32 %v959, %v960
      %v1026 = vadd.f32 %v1025, %v961
      %v1027 = vadd.f32 %v1026, %v962
      %v1028 = vadd.f32 %v1027, %v963
      %v1029 = vadd.f32 %v1028, %v964
      %v1030 = vadd.f32 %v1029, %v965
      %v1031 = vadd.f32 %v1030, %v966
      %v1032 = vadd.f32 %v1031, %v967
      %v1033 = vadd.f32 %v1032, %v968
      %v1034 = vadd.f32 %v1033, %v969
      %v1035 = vadd.f32 %v1034, %v970
      %v1036 = vadd.f32 %v1035, %v971
      %v1037 = vadd.f32 %v1036, %v972
      %v1038 = vadd.f32 %v1037, %v973
      %v1039 = vadd.f32 %v1038, %v974
      %v1040 = vadd.f32 %v1039, %v975
      %v1041 = vadd.f32 %v1040, %v976
      %v1042 = vadd.f32 %v1041, %v977
      %v1043 = vadd.f32 %v1042, %v978
      %v1044 = vadd.f32 %v1043, %v979
      %v1045 = vadd.f32 %v1044, %v980
      %v1046 = vadd.f32 %v1045, %v981
      %v1047 = vadd.f32 %v1046, %v982
      %v1048 = vadd.f32 %v1047, %v983
      %v1049 = vadd.f32 %v1048, %v984
      %v1050 = vadd.f32 %v1049, %v985
      %v1051 = vadd.f32 %v1050, %v986
      %v1052 = vadd.f32 %v1051, %v987
      %v1053 = vadd.f32 %v1052, %v988
      %v1054 = vadd.f32 %v1053, %v989
      %v1055 = vadd.f32 %v1054, %v990
      %v1056 = vadd.f32 %v1055, %v991
      %v1057 = vadd.f32 %v1056, %v992
      %v1058 = vadd.f32 %v1057, %v993
      %v1059 = vadd.f32 %v1058, %v994
      %v1060 = vadd.f32 %v1059, %v995
      %v1061 = vadd.f32 %v1060, %v996
      %v1062 = vadd.f32 %v1061, %v997
      %v1063 = vadd.f32 %v1062, %v998
      %v1064 = vadd.f32 %v1063, %v999
      %v1065 = vadd.f32 %v1064, %v1000
      %v1066 = vadd.f32 %v1065, %v1001
      %v1067 = vadd.f32 %v1066, %v1002
      %v1068 = vadd.f32 %v1067, %v1003
      %v1069 = vadd.f32 %v1068, %v1004
      %v1070 = vadd.f32 %v1069, %v1005
      %v1071 = vadd.f32 %v1070, %v1006
      %v1072 = vadd.f32 %v1071, %v1007
      %v1073 = vadd.f32 %v1072, %v1008
      %v1074 = vadd.f32 %v1073, %v1009
      %v1075 = vadd.f32 %v1074, %v1010
      %v1076 = vadd.f32 %v1075, %v1011
      %v1077 = vadd.f32 %v1076, %v1012
      %v1078 = vadd.f32 %v1077, %v1013
      %v1079 = vadd.f32 %v1078, %v1014
      %v1080 = vadd.f32 %v1079, %v1015
      %v1081 = vadd.f32 %v1080, %v1016
      %v1082 = vadd.f32 %v1081, %v1017
      %v1083 = vadd.f32 %v1082, %v1018
      %v1084 = vadd.f32 %v1083, %v1019
      %v1085 = vadd.f32 %v1084, %v1020
      %v1086 = vadd.f32 %v1085, %v1021
      %v1087 = vadd.f32 %v1086, %v1022
      %v1088 = vrot.slane %v1087, 4
      %v1089 = vadd.f32 %v1087, %v1088
      %v1090 = vrot.slane %v1089, 2
      %v1091 = vadd.f32 %v1089, %v1090
      %v1092 = vrot.slane %v1091, 1
      %v1093 = vadd.f32 %v1091, %v1092
      %v1094 = vrcp.pop 512.0
      %v1095 = vmul.f32 %v1093, %v1094
      %v1096 = vmul.f32 %v959, %v959
      %v1097 = vmul.f32 %v960, %v960
      %v1098 = vmul.f32 %v961, %v961
      %v1099 = vmul.f32 %v962, %v962
      %v1100 = vmul.f32 %v963, %v963
      %v1101 = vmul.f32 %v964, %v964
      %v1102 = vmul.f32 %v965, %v965
      %v1103 = vmul.f32 %v966, %v966
      %v1104 = vmul.f32 %v967, %v967
      %v1105 = vmul.f32 %v968, %v968
      %v1106 = vmul.f32 %v969, %v969
      %v1107 = vmul.f32 %v970, %v970
      %v1108 = vmul.f32 %v971, %v971
      %v1109 = vmul.f32 %v972, %v972
      %v1110 = vmul.f32 %v973, %v973
      %v1111 = vmul.f32 %v974, %v974
      %v1112 = vmul.f32 %v975, %v975
      %v1113 = vmul.f32 %v976, %v976
      %v1114 = vmul.f32 %v977, %v977
      %v1115 = vmul.f32 %v978, %v978
      %v1116 = vmul.f32 %v979, %v979
      %v1117 = vmul.f32 %v980, %v980
      %v1118 = vmul.f32 %v981, %v981
      %v1119 = vmul.f32 %v982, %v982
      %v1120 = vmul.f32 %v983, %v983
      %v1121 = vmul.f32 %v984, %v984
      %v1122 = vmul.f32 %v985, %v985
      %v1123 = vmul.f32 %v986, %v986
      %v1124 = vmul.f32 %v987, %v987
      %v1125 = vmul.f32 %v988, %v988
      %v1126 = vmul.f32 %v989, %v989
      %v1127 = vmul.f32 %v990, %v990
      %v1128 = vmul.f32 %v991, %v991
      %v1129 = vmul.f32 %v992, %v992
      %v1130 = vmul.f32 %v993, %v993
      %v1131 = vmul.f32 %v994, %v994
      %v1132 = vmul.f32 %v995, %v995
      %v1133 = vmul.f32 %v996, %v996
      %v1134 = vmul.f32 %v997, %v997
      %v1135 = vmul.f32 %v998, %v998
      %v1136 = vmul.f32 %v999, %v999
      %v1137 = vmul.f32 %v1000, %v1000
      %v1138 = vmul.f32 %v1001, %v1001
      %v1139 = vmul.f32 %v1002, %v1002
      %v1140 = vmul.f32 %v1003, %v1003
      %v1141 = vmul.f32 %v1004, %v1004
      %v1142 = vmul.f32 %v1005, %v1005
      %v1143 = vmul.f32 %v1006, %v1006
      %v1144 = vmul.f32 %v1007, %v1007
      %v1145 = vmul.f32 %v1008, %v1008
      %v1146 = vmul.f32 %v1009, %v1009
      %v1147 = vmul.f32 %v1010, %v1010
      %v1148 = vmul.f32 %v1011, %v1011
      %v1149 = vmul.f32 %v1012, %v1012
      %v1150 = vmul.f32 %v1013, %v1013
      %v1151 = vmul.f32 %v1014, %v1014
      %v1152 = vmul.f32 %v1015, %v1015
      %v1153 = vmul.f32 %v1016, %v1016
      %v1154 = vmul.f32 %v1017, %v1017
      %v1155 = vmul.f32 %v1018, %v1018
      %v1156 = vmul.f32 %v1019, %v1019
      %v1157 = vmul.f32 %v1020, %v1020
      %v1158 = vmul.f32 %v1021, %v1021
      %v1159 = vmul.f32 %v1022, %v1022
      %v1160 = vadd.f32 %v1096, %v1097
      %v1161 = vadd.f32 %v1160, %v1098
      %v1162 = vadd.f32 %v1161, %v1099
      %v1163 = vadd.f32 %v1162, %v1100
      %v1164 = vadd.f32 %v1163, %v1101
      %v1165 = vadd.f32 %v1164, %v1102
      %v1166 = vadd.f32 %v1165, %v1103
      %v1167 = vadd.f32 %v1166, %v1104
      %v1168 = vadd.f32 %v1167, %v1105
      %v1169 = vadd.f32 %v1168, %v1106
      %v1170 = vadd.f32 %v1169, %v1107
      %v1171 = vadd.f32 %v1170, %v1108
      %v1172 = vadd.f32 %v1171, %v1109
      %v1173 = vadd.f32 %v1172, %v1110
      %v1174 = vadd.f32 %v1173, %v1111
      %v1175 = vadd.f32 %v1174, %v1112
      %v1176 = vadd.f32 %v1175, %v1113
      %v1177 = vadd.f32 %v1176, %v1114
      %v1178 = vadd.f32 %v1177, %v1115
      %v1179 = vadd.f32 %v1178, %v1116
      %v1180 = vadd.f32 %v1179, %v1117
      %v1181 = vadd.f32 %v1180, %v1118
      %v1182 = vadd.f32 %v1181, %v1119
      %v1183 = vadd.f32 %v1182, %v1120
      %v1184 = vadd.f32 %v1183, %v1121
      %v1185 = vadd.f32 %v1184, %v1122
      %v1186 = vadd.f32 %v1185, %v1123
      %v1187 = vadd.f32 %v1186, %v1124
      %v1188 = vadd.f32 %v1187, %v1125
      %v1189 = vadd.f32 %v1188, %v1126
      %v1190 = vadd.f32 %v1189, %v1127
      %v1191 = vadd.f32 %v1190, %v1128
      %v1192 = vadd.f32 %v1191, %v1129
      %v1193 = vadd.f32 %v1192, %v1130
      %v1194 = vadd.f32 %v1193, %v1131
      %v1195 = vadd.f32 %v1194, %v1132
      %v1196 = vadd.f32 %v1195, %v1133
      %v1197 = vadd.f32 %v1196, %v1134
      %v1198 = vadd.f32 %v1197, %v1135
      %v1199 = vadd.f32 %v1198, %v1136
      %v1200 = vadd.f32 %v1199, %v1137
      %v1201 = vadd.f32 %v1200, %v1138
      %v1202 = vadd.f32 %v1201, %v1139
      %v1203 = vadd.f32 %v1202, %v1140
      %v1204 = vadd.f32 %v1203, %v1141
      %v1205 = vadd.f32 %v1204, %v1142
      %v1206 = vadd.f32 %v1205, %v1143
      %v1207 = vadd.f32 %v1206, %v1144
      %v1208 = vadd.f32 %v1207, %v1145
      %v1209 = vadd.f32 %v1208, %v1146
      %v1210 = vadd.f32 %v1209, %v1147
      %v1211 = vadd.f32 %v1210, %v1148
      %v1212 = vadd.f32 %v1211, %v1149
      %v1213 = vadd.f32 %v1212, %v1150
      %v1214 = vadd.f32 %v1213, %v1151
      %v1215 = vadd.f32 %v1214, %v1152
      %v1216 = vadd.f32 %v1215, %v1153
      %v1217 = vadd.f32 %v1216, %v1154
      %v1218 = vadd.f32 %v1217, %v1155
      %v1219 = vadd.f32 %v1218, %v1156
      %v1220 = vadd.f32 %v1219, %v1157
      %v1221 = vadd.f32 %v1220, %v1158
      %v1222 = vadd.f32 %v1221, %v1159
      %v1223 = vrot.slane %v1222, 4
      %v1224 = vadd.f32 %v1222, %v1223
      %v1225 = vrot.slane %v1224, 2
      %v1226 = vadd.f32 %v1224, %v1225
      %v1227 = vrot.slane %v1226, 1
      %v1228 = vadd.f32 %v1226, %v1227
      %v1229 = vmul.f32 %v1228, %v1094
      %v1230 = vmul.f32 %v1095, %v1095
      %v1231 = vsub.f32 %v1229, %v1230
      %v1232 = vmax.f32 %v1231, 0.0
      %v1233 = vadd.f32 %v1232, 1e-05
      %v1234 = vrsqrt.pop %v1233
      %v1235 = vmul.f32 %v1023, %v1234
      %v1237 = vlaneseq
      %v1238 = vshrl.u32 %v1237, 7
      %v1239 = vsub.s32 0, %v1238
      %v1240 = vrot.slane %v1235, %v1239
      %v1242 = vmul.f32 %v959, %v1240
      %v1243 = vmul.f32 %v960, %v1240
      %v1244 = vmul.f32 %v961, %v1240
      %v1245 = vmul.f32 %v962, %v1240
      %v1246 = vmul.f32 %v963, %v1240
      %v1247 = vmul.f32 %v964, %v1240
      %v1248 = vmul.f32 %v965, %v1240
      %v1249 = vmul.f32 %v966, %v1240
      %v1250 = vmul.f32 %v967, %v1240
      %v1251 = vmul.f32 %v968, %v1240
      %v1252 = vmul.f32 %v969, %v1240
      %v1253 = vmul.f32 %v970, %v1240
      %v1254 = vmul.f32 %v971, %v1240
      %v1255 = vmul.f32 %v972, %v1240
      %v1256 = vmul.f32 %v973, %v1240
      %v1257 = vmul.f32 %v974, %v1240
      %v1258 = vmul.f32 %v975, %v1240
      %v1259 = vmul.f32 %v976, %v1240
      %v1260 = vmul.f32 %v977, %v1240
      %v1261 = vmul.f32 %v978, %v1240
      %v1262 = vmul.f32 %v979, %v1240
      %v1263 = vmul.f32 %v980, %v1240
      %v1264 = vmul.f32 %v981, %v1240
      %v1265 = vmul.f32 %v982, %v1240
      %v1266 = vmul.f32 %v983, %v1240
      %v1267 = vmul.f32 %v984, %v1240
      %v1268 = vmul.f32 %v985, %v1240
      %v1269 = vmul.f32 %v986, %v1240
      %v1270 = vmul.f32 %v987, %v1240
      %v1271 = vmul.f32 %v988, %v1240
      %v1272 = vmul.f32 %v989, %v1240
      %v1273 = vmul.f32 %v990, %v1240
      %v1274 = vmul.f32 %v991, %v1240
      %v1275 = vmul.f32 %v992, %v1240
      %v1276 = vmul.f32 %v993, %v1240
      %v1277 = vmul.f32 %v994, %v1240
      %v1278 = vmul.f32 %v995, %v1240
      %v1279 = vmul.f32 %v996, %v1240
      %v1280 = vmul.f32 %v997, %v1240
      %v1281 = vmul.f32 %v998, %v1240
      %v1282 = vmul.f32 %v999, %v1240
      %v1283 = vmul.f32 %v1000, %v1240
      %v1284 = vmul.f32 %v1001, %v1240
      %v1285 = vmul.f32 %v1002, %v1240
      %v1286 = vmul.f32 %v1003, %v1240
      %v1287 = vmul.f32 %v1004, %v1240
      %v1288 = vmul.f32 %v1005, %v1240
      %v1289 = vmul.f32 %v1006, %v1240
      %v1290 = vmul.f32 %v1007, %v1240
      %v1291 = vmul.f32 %v1008, %v1240
      %v1292 = vmul.f32 %v1009, %v1240
      %v1293 = vmul.f32 %v1010, %v1240
      %v1294 = vmul.f32 %v1011, %v1240
      %v1295 = vmul.f32 %v1012, %v1240
      %v1296 = vmul.f32 %v1013, %v1240
      %v1297 = vmul.f32 %v1014, %v1240
      %v1298 = vmul.f32 %v1015, %v1240
      %v1299 = vmul.f32 %v1016, %v1240
      %v1300 = vmul.f32 %v1017, %v1240
      %v1301 = vmul.f32 %v1018, %v1240
      %v1302 = vmul.f32 %v1019, %v1240
      %v1303 = vmul.f32 %v1020, %v1240
      %v1304 = vmul.f32 %v1021, %v1240
      %v1305 = vmul.f32 %v1022, %v1240
      %v1306 = vmul.f32 %v1095, %v1235
      %v1307 = vsub.f32 %v1024, %v1306
      %v1309 = vlaneseq
      %v1310 = vshrl.u32 %v1309, 7
      %v1311 = vsub.s32 0, %v1310
      %v1312 = vrot.slane %v1307, %v1311
      %v1314 = vadd.f32 %v1242, %v1312
      %v1315 = vadd.f32 %v1243, %v1312
      %v1316 = vadd.f32 %v1244, %v1312
      %v1317 = vadd.f32 %v1245, %v1312
      %v1318 = vadd.f32 %v1246, %v1312
      %v1319 = vadd.f32 %v1247, %v1312
      %v1320 = vadd.f32 %v1248, %v1312
      %v1321 = vadd.f32 %v1249, %v1312
      %v1322 = vadd.f32 %v1250, %v1312
      %v1323 = vadd.f32 %v1251, %v1312
      %v1324 = vadd.f32 %v1252, %v1312
      %v1325 = vadd.f32 %v1253, %v1312
      %v1326 = vadd.f32 %v1254, %v1312
      %v1327 = vadd.f32 %v1255, %v1312
      %v1328 = vadd.f32 %v1256, %v1312
      %v1329 = vadd.f32 %v1257, %v1312
      %v1330 = vadd.f32 %v1258, %v1312
      %v1331 = vadd.f32 %v1259, %v1312
      %v1332 = vadd.f32 %v1260, %v1312
      %v1333 = vadd.f32 %v1261, %v1312
      %v1334 = vadd.f32 %v1262, %v1312
      %v1335 = vadd.f32 %v1263, %v1312
      %v1336 = vadd.f32 %v1264, %v1312
      %v1337 = vadd.f32 %v1265, %v1312
      %v1338 = vadd.f32 %v1266, %v1312
      %v1339 = vadd.f32 %v1267, %v1312
      %v1340 = vadd.f32 %v1268, %v1312
      %v1341 = vadd.f32 %v1269, %v1312
      %v1342 = vadd.f32 %v1270, %v1312
      %v1343 = vadd.f32 %v1271, %v1312
      %v1344 = vadd.f32 %v1272, %v1312
      %v1345 = vadd.f32 %v1273, %v1312
      %v1346 = vadd.f32 %v1274, %v1312
      %v1347 = vadd.f32 %v1275, %v1312
      %v1348 = vadd.f32 %v1276, %v1312
      %v1349 = vadd.f32 %v1277, %v1312
      %v1350 = vadd.f32 %v1278, %v1312
      %v1351 = vadd.f32 %v1279, %v1312
      %v1352 = vadd.f32 %v1280, %v1312
      %v1353 = vadd.f32 %v1281, %v1312
      %v1354 = vadd.f32 %v1282, %v1312
      %v1355 = vadd.f32 %v1283, %v1312
      %v1356 = vadd.f32 %v1284, %v1312
      %v1357 = vadd.f32 %v1285, %v1312
      %v1358 = vadd.f32 %v1286, %v1312
      %v1359 = vadd.f32 %v1287, %v1312
      %v1360 = vadd.f32 %v1288, %v1312
      %v1361 = vadd.f32 %v1289, %v1312
      %v1362 = vadd.f32 %v1290, %v1312
      %v1363 = vadd.f32 %v1291, %v1312
      %v1364 = vadd.f32 %v1292, %v1312
      %v1365 = vadd.f32 %v1293, %v1312
      %v1366 = vadd.f32 %v1294, %v1312
      %v1367 = vadd.f32 %v1295, %v1312
      %v1368 = vadd.f32 %v1296, %v1312
      %v1369 = vadd.f32 %v1297, %v1312
      %v1370 = vadd.f32 %v1298, %v1312
      %v1371 = vadd.f32 %v1299, %v1312
      %v1372 = vadd.f32 %v1300, %v1312
      %v1373 = vadd.f32 %v1301, %v1312
      %v1374 = vadd.f32 %v1302, %v1312
      %v1375 = vadd.f32 %v1303, %v1312
      %v1376 = vadd.f32 %v1304, %v1312
      %v1377 = vadd.f32 %v1305, %v1312
      %v1378 = vxor.u32 %v1314, 2147483648
      %v1379 = vxor.u32 %v1315, 2147483648
      %v1380 = vxor.u32 %v1316, 2147483648
      %v1381 = vxor.u32 %v1317, 2147483648
      %v1382 = vxor.u32 %v1318, 2147483648
      %v1383 = vxor.u32 %v1319, 2147483648
      %v1384 = vxor.u32 %v1320, 2147483648
      %v1385 = vxor.u32 %v1321, 2147483648
      %v1386 = vxor.u32 %v1322, 2147483648
      %v1387 = vxor.u32 %v1323, 2147483648
      %v1388 = vxor.u32 %v1324, 2147483648
      %v1389 = vxor.u32 %v1325, 2147483648
      %v1390 = vxor.u32 %v1326, 2147483648
      %v1391 = vxor.u32 %v1327, 2147483648
      %v1392 = vxor.u32 %v1328, 2147483648
      %v1393 = vxor.u32 %v1329, 2147483648
      %v1394 = vxor.u32 %v1330, 2147483648
      %v1395 = vxor.u32 %v1331, 2147483648
      %v1396 = vxor.u32 %v1332, 2147483648
      %v1397 = vxor.u32 %v1333, 2147483648
      %v1398 = vxor.u32 %v1334, 2147483648
      %v1399 = vxor.u32 %v1335, 2147483648
      %v1400 = vxor.u32 %v1336, 2147483648
      %v1401 = vxor.u32 %v1337, 2147483648
      %v1402 = vxor.u32 %v1338, 2147483648
      %v1403 = vxor.u32 %v1339, 2147483648
      %v1404 = vxor.u32 %v1340, 2147483648
      %v1405 = vxor.u32 %v1341, 2147483648
      %v1406 = vxor.u32 %v1342, 2147483648
      %v1407 = vxor.u32 %v1343, 2147483648
      %v1408 = vxor.u32 %v1344, 2147483648
      %v1409 = vxor.u32 %v1345, 2147483648
      %v1410 = vxor.u32 %v1346, 2147483648
      %v1411 = vxor.u32 %v1347, 2147483648
      %v1412 = vxor.u32 %v1348, 2147483648
      %v1413 = vxor.u32 %v1349, 2147483648
      %v1414 = vxor.u32 %v1350, 2147483648
      %v1415 = vxor.u32 %v1351, 2147483648
      %v1416 = vxor.u32 %v1352, 2147483648
      %v1417 = vxor.u32 %v1353, 2147483648
      %v1418 = vxor.u32 %v1354, 2147483648
      %v1419 = vxor.u32 %v1355, 2147483648
      %v1420 = vxor.u32 %v1356, 2147483648
      %v1421 = vxor.u32 %v1357, 2147483648
      %v1422 = vxor.u32 %v1358, 2147483648
      %v1423 = vxor.u32 %v1359, 2147483648
      %v1424 = vxor.u32 %v1360, 2147483648
      %v1425 = vxor.u32 %v1361, 2147483648
      %v1426 = vxor.u32 %v1362, 2147483648
      %v1427 = vxor.u32 %v1363, 2147483648
      %v1428 = vxor.u32 %v1364, 2147483648
      %v1429 = vxor.u32 %v1365, 2147483648
      %v1430 = vxor.u32 %v1366, 2147483648
      %v1431 = vxor.u32 %v1367, 2147483648
      %v1432 = vxor.u32 %v1368, 2147483648
      %v1433 = vxor.u32 %v1369, 2147483648
      %v1434 = vxor.u32 %v1370, 2147483648
      %v1435 = vxor.u32 %v1371, 2147483648
      %v1436 = vxor.u32 %v1372, 2147483648
      %v1437 = vxor.u32 %v1373, 2147483648
      %v1438 = vxor.u32 %v1374, 2147483648
      %v1439 = vxor.u32 %v1375, 2147483648
      %v1440 = vxor.u32 %v1376, 2147483648
      %v1441 = vxor.u32 %v1377, 2147483648
      %v1442 = vmul.f32 %v1378, 1.442695
      %v1443 = vpow.pop %v1442
      %v1444 = vmul.f32 %v1379, 1.442695
      %v1445 = vpow.pop %v1444
      %v1446 = vmul.f32 %v1380, 1.442695
      %v1447 = vpow.pop %v1446
      %v1448 = vmul.f32 %v1381, 1.442695
      %v1449 = vpow.pop %v1448
      %v1450 = vmul.f32 %v1382, 1.442695
      %v1451 = vpow.pop %v1450
      %v1452 = vmul.f32 %v1383, 1.442695
      %v1453 = vpow.pop %v1452
      %v1454 = vmul.f32 %v1384, 1.442695
      %v1455 = vpow.pop %v1454
      %v1456 = vmul.f32 %v1385, 1.442695
      %v1457 = vpow.pop %v1456
      %v1458 = vmul.f32 %v1386, 1.442695
      %v1459 = vpow.pop %v1458
      %v1460 = vmul.f32 %v1387, 1.442695
      %v1461 = vpow.pop %v1460
      %v1462 = vmul.f32 %v1388, 1.442695
      %v1463 = vpow.pop %v1462
      %v1464 = vmul.f32 %v1389, 1.442695
      %v1465 = vpow.pop %v1464
      %v1466 = vmul.f32 %v1390, 1.442695
      %v1467 = vpow.pop %v1466
      %v1468 = vmul.f32 %v1391, 1.442695
      %v1469 = vpow.pop %v1468
      %v1470 = vmul.f32 %v1392, 1.442695
      %v1471 = vpow.pop %v1470
      %v1472 = vmul.f32 %v1393, 1.442695
      %v1473 = vpow.pop %v1472
      %v1474 = vmul.f32 %v1394, 1.442695
      %v1475 = vpow.pop %v1474
      %v1476 = vmul.f32 %v1395, 1.442695
      %v1477 = vpow.pop %v1476
      %v1478 = vmul.f32 %v1396, 1.442695
      %v1479 = vpow.pop %v1478
      %v1480 = vmul.f32 %v1397, 1.442695
      %v1481 = vpow.pop %v1480
      %v1482 = vmul.f32 %v1398, 1.442695
      %v1483 = vpow.pop %v1482
      %v1484 = vmul.f32 %v1399, 1.442695
      %v1485 = vpow.pop %v1484
      %v1486 = vmul.f32 %v1400, 1.442695
      %v1487 = vpow.pop %v1486
      %v1488 = vmul.f32 %v1401, 1.442695
      %v1489 = vpow.pop %v1488
      %v1490 = vmul.f32 %v1402, 1.442695
      %v1491 = vpow.pop %v1490
      %v1492 = vmul.f32 %v1403, 1.442695
      %v1493 = vpow.pop %v1492
      %v1494 = vmul.f32 %v1404, 1.442695
      %v1495 = vpow.pop %v1494
      %v1496 = vmul.f32 %v1405, 1.442695
      %v1497 = vpow.pop %v1496
      %v1498 = vmul.f32 %v1406, 1.442695
      %v1499 = vpow.pop %v1498
      %v1500 = vmul.f32 %v1407, 1.442695
      %v1501 = vpow.pop %v1500
      %v1502 = vmul.f32 %v1408, 1.442695
      %v1503 = vpow.pop %v1502
      %v1504 = vmul.f32 %v1409, 1.442695
      %v1505 = vpow.pop %v1504
      %v1506 = vmul.f32 %v1410, 1.442695
      %v1507 = vpow.pop %v1506
      %v1508 = vmul.f32 %v1411, 1.442695
      %v1509 = vpow.pop %v1508
      %v1510 = vmul.f32 %v1412, 1.442695
      %v1511 = vpow.pop %v1510
      %v1512 = vmul.f32 %v1413, 1.442695
      %v1513 = vpow.pop %v1512
      %v1514 = vmul.f32 %v1414, 1.442695
      %v1515 = vpow.pop %v1514
      %v1516 = vmul.f32 %v1415, 1.442695
      %v1517 = vpow.pop %v1516
      %v1518 = vmul.f32 %v1416, 1.442695
      %v1519 = vpow.pop %v1518
      %v1520 = vmul.f32 %v1417, 1.442695
      %v1521 = vpow.pop %v1520
      %v1522 = vmul.f32 %v1418, 1.442695
      %v1523 = vpow.pop %v1522
      %v1524 = vmul.f32 %v1419, 1.442695
      %v1525 = vpow.pop %v1524
      %v1526 = vmul.f32 %v1420, 1.442695
      %v1527 = vpow.pop %v1526
      %v1528 = vmul.f32 %v1421, 1.442695
      %v1529 = vpow.pop %v1528
      %v1530 = vmul.f32 %v1422, 1.442695
      %v1531 = vpow.pop %v1530
      %v1532 = vmul.f32 %v1423, 1.442695
      %v1533 = vpow.pop %v1532
      %v1534 = vmul.f32 %v1424, 1.442695
      %v1535 = vpow.pop %v1534
      %v1536 = vmul.f32 %v1425, 1.442695
      %v1537 = vpow.pop %v1536
      %v1538 = vmul.f32 %v1426, 1.442695
      %v1539 = vpow.pop %v1538
      %v1540 = vmul.f32 %v1427, 1.442695
      %v1541 = vpow.pop %v1540
      %v1542 = vmul.f32 %v1428, 1.442695
      %v1543 = vpow.pop %v1542
      %v1544 = vmul.f32 %v1429, 1.442695
      %v1545 = vpow.pop %v1544
      %v1546 = vmul.f32 %v1430, 1.442695
      %v1547 = vpow.pop %v1546
      %v1548 = vmul.f32 %v1431, 1.442695
      %v1549 = vpow.pop %v1548
      %v1550 = vmul.f32 %v1432, 1.442695
      %v1551 = vpow.pop %v1550
      %v1552 = vmul.f32 %v1433, 1.442695
      %v1553 = vpow.pop %v1552
      %v1554 = vmul.f32 %v1434, 1.442695
      %v1555 = vpow.pop %v1554
      %v1556 = vmul.f32 %v1435, 1.442695
      %v1557 = vpow.pop %v1556
      %v1558 = vmul.f32 %v1436, 1.442695
      %v1559 = vpow.pop %v1558
      %v1560 = vmul.f32 %v1437, 1.442695
      %v1561 = vpow.pop %v1560
      %v1562 = vmul.f32 %v1438, 1.442695
      %v1563 = vpow.pop %v1562
      %v1564 = vmul.f32 %v1439, 1.442695
      %v1565 = vpow.pop %v1564
      %v1566 = vmul.f32 %v1440, 1.442695
      %v1567 = vpow.pop %v1566
      %v1568 = vmul.f32 %v1441, 1.442695
      %v1569 = vpow.pop %v1568
      %v1570 = vadd.f32 %v1443, 1.0
      %v1571 = vadd.f32 %v1445, 1.0
      %v1572 = vadd.f32 %v1447, 1.0
      %v1573 = vadd.f32 %v1449, 1.0
      %v1574 = vadd.f32 %v1451, 1.0
      %v1575 = vadd.f32 %v1453, 1.0
      %v1576 = vadd.f32 %v1455, 1.0
      %v1577 = vadd.f32 %v1457, 1.0
      %v1578 = vadd.f32 %v1459, 1.0
      %v1579 = vadd.f32 %v1461, 1.0
      %v1580 = vadd.f32 %v1463, 1.0
      %v1581 = vadd.f32 %v1465, 1.0
      %v1582 = vadd.f32 %v1467, 1.0
      %v1583 = vadd.f32 %v1469, 1.0
      %v1584 = vadd.f32 %v1471, 1.0
      %v1585 = vadd.f32 %v1473, 1.0
      %v1586 = vadd.f32 %v1475, 1.0
      %v1587 = vadd.f32 %v1477, 1.0
      %v1588 = vadd.f32 %v1479, 1.0
      %v1589 = vadd.f32 %v1481, 1.0
      %v1590 = vadd.f32 %v1483, 1.0
      %v1591 = vadd.f32 %v1485, 1.0
      %v1592 = vadd.f32 %v1487, 1.0
      %v1593 = vadd.f32 %v1489, 1.0
      %v1594 = vadd.f32 %v1491, 1.0
      %v1595 = vadd.f32 %v1493, 1.0
      %v1596 = vadd.f32 %v1495, 1.0
      %v1597 = vadd.f32 %v1497, 1.0
      %v1598 = vadd.f32 %v1499, 1.0
      %v1599 = vadd.f32 %v1501, 1.0
      %v1600 = vadd.f32 %v1503, 1.0
      %v1601 = vadd.f32 %v1505, 1.0
      %v1602 = vadd.f32 %v1507, 1.0
      %v1603 = vadd.f32 %v1509, 1.0
      %v1604 = vadd.f32 %v1511, 1.0
      %v1605 = vadd.f32 %v1513, 1.0
      %v1606 = vadd.f32 %v1515, 1.0
      %v1607 = vadd.f32 %v1517, 1.0
      %v1608 = vadd.f32 %v1519, 1.0
      %v1609 = vadd.f32 %v1521, 1.0
      %v1610 = vadd.f32 %v1523, 1.0
      %v1611 = vadd.f32 %v1525, 1.0
      %v1612 = vadd.f32 %v1527, 1.0
      %v1613 = vadd.f32 %v1529, 1.0
      %v1614 = vadd.f32 %v1531, 1.0
      %v1615 = vadd.f32 %v1533, 1.0
      %v1616 = vadd.f32 %v1535, 1.0
      %v1617 = vadd.f32 %v1537, 1.0
      %v1618 = vadd.f32 %v1539, 1.0
      %v1619 = vadd.f32 %v1541, 1.0
      %v1620 = vadd.f32 %v1543, 1.0
      %v1621 = vadd.f32 %v1545, 1.0
      %v1622 = vadd.f32 %v1547, 1.0
      %v1623 = vadd.f32 %v1549, 1.0
      %v1624 = vadd.f32 %v1551, 1.0
      %v1625 = vadd.f32 %v1553, 1.0
      %v1626 = vadd.f32 %v1555, 1.0
      %v1627 = vadd.f32 %v1557, 1.0
      %v1628 = vadd.f32 %v1559, 1.0
      %v1629 = vadd.f32 %v1561, 1.0
      %v1630 = vadd.f32 %v1563, 1.0
      %v1631 = vadd.f32 %v1565, 1.0
      %v1632 = vadd.f32 %v1567, 1.0
      %v1633 = vadd.f32 %v1569, 1.0
      %v1634 = vrcp.pop %v1570
      %v1635 = vmul.f32 1.0, %v1634
      %v1636 = vrcp.pop %v1571
      %v1637 = vmul.f32 1.0, %v1636
      %v1638 = vrcp.pop %v1572
      %v1639 = vmul.f32 1.0, %v1638
      %v1640 = vrcp.pop %v1573
      %v1641 = vmul.f32 1.0, %v1640
      %v1642 = vrcp.pop %v1574
      %v1643 = vmul.f32 1.0, %v1642
      %v1644 = vrcp.pop %v1575
      %v1645 = vmul.f32 1.0, %v1644
      %v1646 = vrcp.pop %v1576
      %v1647 = vmul.f32 1.0, %v1646
      %v1648 = vrcp.pop %v1577
      %v1649 = vmul.f32 1.0, %v1648
      %v1650 = vrcp.pop %v1578
      %v1651 = vmul.f32 1.0, %v1650
      %v1652 = vrcp.pop %v1579
      %v1653 = vmul.f32 1.0, %v1652
      %v1654 = vrcp.pop %v1580
      %v1655 = vmul.f32 1.0, %v1654
      %v1656 = vrcp.pop %v1581
      %v1657 = vmul.f32 1.0, %v1656
      %v1658 = vrcp.pop %v1582
      %v1659 = vmul.f32 1.0, %v1658
      %v1660 = vrcp.pop %v1583
      %v1661 = vmul.f32 1.0, %v1660
      %v1662 = vrcp.pop %v1584
      %v1663 = vmul.f32 1.0, %v1662
      %v1664 = vrcp.pop %v1585
      %v1665 = vmul.f32 1.0, %v1664
      %v1666 = vrcp.pop %v1586
      %v1667 = vmul.f32 1.0, %v1666
      %v1668 = vrcp.pop %v1587
      %v1669 = vmul.f32 1.0, %v1668
      %v1670 = vrcp.pop %v1588
      %v1671 = vmul.f32 1.0, %v1670
      %v1672 = vrcp.pop %v1589
      %v1673 = vmul.f32 1.0, %v1672
      %v1674 = vrcp.pop %v1590
      %v1675 = vmul.f32 1.0, %v1674
      %v1676 = vrcp.pop %v1591
      %v1677 = vmul.f32 1.0, %v1676
      %v1678 = vrcp.pop %v1592
      %v1679 = vmul.f32 1.0, %v1678
      %v1680 = vrcp.pop %v1593
      %v1681 = vmul.f32 1.0, %v1680
      %v1682 = vrcp.pop %v1594
      %v1683 = vmul.f32 1.0, %v1682
      %v1684 = vrcp.pop %v1595
      %v1685 = vmul.f32 1.0, %v1684
      %v1686 = vrcp.pop %v1596
      %v1687 = vmul.f32 1.0, %v1686
      %v1688 = vrcp.pop %v1597
      %v1689 = vmul.f32 1.0, %v1688
      %v1690 = vrcp.pop %v1598
      %v1691 = vmul.f32 1.0, %v1690
      %v1692 = vrcp.pop %v1599
      %v1693 = vmul.f32 1.0, %v1692
      %v1694 = vrcp.pop %v1600
      %v1695 = vmul.f32 1.0, %v1694
      %v1696 = vrcp.pop %v1601
      %v1697 = vmul.f32 1.0, %v1696
      %v1698 = vrcp.pop %v1602
      %v1699 = vmul.f32 1.0, %v1698
      %v1700 = vrcp.pop %v1603
      %v1701 = vmul.f32 1.0, %v1700
      %v1702 = vrcp.pop %v1604
      %v1703 = vmul.f32 1.0, %v1702
      %v1704 = vrcp.pop %v1605
      %v1705 = vmul.f32 1.0, %v1704
      %v1706 = vrcp.pop %v1606
      %v1707 = vmul.f32 1.0, %v1706
      %v1708 = vrcp.pop %v1607
      %v1709 = vmul.f32 1.0, %v1708
      %v1710 = vrcp.pop %v1608
      %v1711 = vmul.f32 1.0, %v1710
      %v1712 = vrcp.pop %v1609
      %v1713 = vmul.f32 1.0, %v1712
      %v1714 = vrcp.pop %v1610
      %v1715 = vmul.f32 1.0, %v1714
      %v1716 = vrcp.pop %v1611
      %v1717 = vmul.f32 1.0, %v1716
      %v1718 = vrcp.pop %v1612
      %v1719 = vmul.f32 1.0, %v1718
      %v1720 = vrcp.pop %v1613
      %v1721 = vmul.f32 1.0, %v1720
      %v1722 = vrcp.pop %v1614
      %v1723 = vmul.f32 1.0, %v1722
      %v1724 = vrcp.pop %v1615
      %v1725 = vmul.f32 1.0, %v1724
      %v1726 = vrcp.pop %v1616
      %v1727 = vmul.f32 1.0, %v1726
      %v1728 = vrcp.pop %v1617
      %v1729 = vmul.f32 1.0, %v1728
      %v1730 = vrcp.pop %v1618
      %v1731 = vmul.f32 1.0, %v1730
      %v1732 = vrcp.pop %v1619
      %v1733 = vmul.f32 1.0, %v1732
      %v1734 = vrcp.pop %v1620
      %v1735 = vmul.f32 1.0, %v1734
      %v1736 = vrcp.pop %v1621
      %v1737 = vmul.f32 1.0, %v1736
      %v1738 = vrcp.pop %v1622
      %v1739 = vmul.f32 1.0, %v1738
      %v1740 = vrcp.pop %v1623
      %v1741 = vmul.f32 1.0, %v1740
      %v1742 = vrcp.pop %v1624
      %v1743 = vmul.f32 1.0, %v1742
      %v1744 = vrcp.pop %v1625
      %v1745 = vmul.f32 1.0, %v1744
      %v1746 = vrcp.pop %v1626
      %v1747 = vmul.f32 1.0, %v1746
      %v1748 = vrcp.pop %v1627
      %v1749 = vmul.f32 1.0, %v1748
      %v1750 = vrcp.pop %v1628
      %v1751 = vmul.f32 1.0, %v1750
      %v1752 = vrcp.pop %v1629
      %v1753 = vmul.f32 1.0, %v1752
      %v1754 = vrcp.pop %v1630
      %v1755 = vmul.f32 1.0, %v1754
      %v1756 = vrcp.pop %v1631
      %v1757 = vmul.f32 1.0, %v1756
      %v1758 = vrcp.pop %v1632
      %v1759 = vmul.f32 1.0, %v1758
      %v1760 = vrcp.pop %v1633
      %v1761 = vmul.f32 1.0, %v1760
      %v1762 = vpack.c.bf16 %v1637, %v1635
      %v1763 = vpack.c.bf16 %v1641, %v1639
      %v1764 = vpack.c.bf16 %v1645, %v1643
      %v1765 = vpack.c.bf16 %v1649, %v1647
      %v1766 = vpack.c.bf16 %v1653, %v1651
      %v1767 = vpack.c.bf16 %v1657, %v1655
      %v1768 = vpack.c.bf16 %v1661, %v1659
      %v1769 = vpack.c.bf16 %v1665, %v1663
      %v1770 = vpack.c.bf16 %v1669, %v1667
      %v1771 = vpack.c.bf16 %v1673, %v1671
      %v1772 = vpack.c.bf16 %v1677, %v1675
      %v1773 = vpack.c.bf16 %v1681, %v1679
      %v1774 = vpack.c.bf16 %v1685, %v1683
      %v1775 = vpack.c.bf16 %v1689, %v1687
      %v1776 = vpack.c.bf16 %v1693, %v1691
      %v1777 = vpack.c.bf16 %v1697, %v1695
      %v1778 = vpack.c.bf16 %v1701, %v1699
      %v1779 = vpack.c.bf16 %v1705, %v1703
      %v1780 = vpack.c.bf16 %v1709, %v1707
      %v1781 = vpack.c.bf16 %v1713, %v1711
      %v1782 = vpack.c.bf16 %v1717, %v1715
      %v1783 = vpack.c.bf16 %v1721, %v1719
      %v1784 = vpack.c.bf16 %v1725, %v1723
      %v1785 = vpack.c.bf16 %v1729, %v1727
      %v1786 = vpack.c.bf16 %v1733, %v1731
      %v1787 = vpack.c.bf16 %v1737, %v1735
      %v1788 = vpack.c.bf16 %v1741, %v1739
      %v1789 = vpack.c.bf16 %v1745, %v1743
      %v1790 = vpack.c.bf16 %v1749, %v1747
      %v1791 = vpack.c.bf16 %v1753, %v1751
      %v1792 = vpack.c.bf16 %v1757, %v1755
      %v1793 = vpack.c.bf16 %v1761, %v1759
      %v1826 = vunpack.c.l.b16 %v1762
      %v1827 = vunpack.c.h.b16 %v1762
      %v1828 = vunpack.c.l.b16 %v1763
      %v1829 = vunpack.c.h.b16 %v1763
      %v1830 = vunpack.c.l.b16 %v1764
      %v1831 = vunpack.c.h.b16 %v1764
      %v1832 = vunpack.c.l.b16 %v1765
      %v1833 = vunpack.c.h.b16 %v1765
      %v1834 = vunpack.c.l.b16 %v1766
      %v1835 = vunpack.c.h.b16 %v1766
      %v1836 = vunpack.c.l.b16 %v1767
      %v1837 = vunpack.c.h.b16 %v1767
      %v1838 = vunpack.c.l.b16 %v1768
      %v1839 = vunpack.c.h.b16 %v1768
      %v1840 = vunpack.c.l.b16 %v1769
      %v1841 = vunpack.c.h.b16 %v1769
      %v1842 = vunpack.c.l.b16 %v1770
      %v1843 = vunpack.c.h.b16 %v1770
      %v1844 = vunpack.c.l.b16 %v1771
      %v1845 = vunpack.c.h.b16 %v1771
      %v1846 = vunpack.c.l.b16 %v1772
      %v1847 = vunpack.c.h.b16 %v1772
      %v1848 = vunpack.c.l.b16 %v1773
      %v1849 = vunpack.c.h.b16 %v1773
      %v1850 = vunpack.c.l.b16 %v1774
      %v1851 = vunpack.c.h.b16 %v1774
      %v1852 = vunpack.c.l.b16 %v1775
      %v1853 = vunpack.c.h.b16 %v1775
      %v1854 = vunpack.c.l.b16 %v1776
      %v1855 = vunpack.c.h.b16 %v1776
      %v1856 = vunpack.c.l.b16 %v1777
      %v1857 = vunpack.c.h.b16 %v1777
      %v1858 = vunpack.c.l.b16 %v1778
      %v1859 = vunpack.c.h.b16 %v1778
      %v1860 = vunpack.c.l.b16 %v1779
      %v1861 = vunpack.c.h.b16 %v1779
      %v1862 = vunpack.c.l.b16 %v1780
      %v1863 = vunpack.c.h.b16 %v1780
      %v1864 = vunpack.c.l.b16 %v1781
      %v1865 = vunpack.c.h.b16 %v1781
      %v1866 = vunpack.c.l.b16 %v1782
      %v1867 = vunpack.c.h.b16 %v1782
      %v1868 = vunpack.c.l.b16 %v1783
      %v1869 = vunpack.c.h.b16 %v1783
      %v1870 = vunpack.c.l.b16 %v1784
      %v1871 = vunpack.c.h.b16 %v1784
      %v1872 = vunpack.c.l.b16 %v1785
      %v1873 = vunpack.c.h.b16 %v1785
      %v1874 = vunpack.c.l.b16 %v1786
      %v1875 = vunpack.c.h.b16 %v1786
      %v1876 = vunpack.c.l.b16 %v1787
      %v1877 = vunpack.c.h.b16 %v1787
      %v1878 = vunpack.c.l.b16 %v1788
      %v1879 = vunpack.c.h.b16 %v1788
      %v1880 = vunpack.c.l.b16 %v1789
      %v1881 = vunpack.c.h.b16 %v1789
      %v1882 = vunpack.c.l.b16 %v1790
      %v1883 = vunpack.c.h.b16 %v1790
      %v1884 = vunpack.c.l.b16 %v1791
      %v1885 = vunpack.c.h.b16 %v1791
      %v1886 = vunpack.c.l.b16 %v1792
      %v1887 = vunpack.c.h.b16 %v1792
      %v1888 = vunpack.c.l.b16 %v1793
      %v1889 = vunpack.c.h.b16 %v1793
      %v1890 = vpack.c.b16 %v1826, %v1826
      %v1891 = vpack.c.b16 %v1827, %v1827
      %v1892 = vpack.c.b16 %v1828, %v1828
      %v1893 = vpack.c.b16 %v1829, %v1829
      %v1894 = vpack.c.b16 %v1830, %v1830
      %v1895 = vpack.c.b16 %v1831, %v1831
      %v1896 = vpack.c.b16 %v1832, %v1832
      %v1897 = vpack.c.b16 %v1833, %v1833
      %v1898 = vpack.c.b16 %v1834, %v1834
      %v1899 = vpack.c.b16 %v1835, %v1835
      %v1900 = vpack.c.b16 %v1836, %v1836
      %v1901 = vpack.c.b16 %v1837, %v1837
      %v1902 = vpack.c.b16 %v1838, %v1838
      %v1903 = vpack.c.b16 %v1839, %v1839
      %v1904 = vpack.c.b16 %v1840, %v1840
      %v1905 = vpack.c.b16 %v1841, %v1841
      %v1906 = vpack.c.b16 %v1842, %v1842
      %v1907 = vpack.c.b16 %v1843, %v1843
      %v1908 = vpack.c.b16 %v1844, %v1844
      %v1909 = vpack.c.b16 %v1845, %v1845
      %v1910 = vpack.c.b16 %v1846, %v1846
      %v1911 = vpack.c.b16 %v1847, %v1847
      %v1912 = vpack.c.b16 %v1848, %v1848
      %v1913 = vpack.c.b16 %v1849, %v1849
      %v1914 = vpack.c.b16 %v1850, %v1850
      %v1915 = vpack.c.b16 %v1851, %v1851
      %v1916 = vpack.c.b16 %v1852, %v1852
      %v1917 = vpack.c.b16 %v1853, %v1853
      %v1918 = vpack.c.b16 %v1854, %v1854
      %v1919 = vpack.c.b16 %v1855, %v1855
      %v1920 = vpack.c.b16 %v1856, %v1856
      %v1921 = vpack.c.b16 %v1857, %v1857
      %v1922 = vpack.c.b16 %v1858, %v1858
      %v1923 = vpack.c.b16 %v1859, %v1859
      %v1924 = vpack.c.b16 %v1860, %v1860
      %v1925 = vpack.c.b16 %v1861, %v1861
      %v1926 = vpack.c.b16 %v1862, %v1862
      %v1927 = vpack.c.b16 %v1863, %v1863
      %v1928 = vpack.c.b16 %v1864, %v1864
      %v1929 = vpack.c.b16 %v1865, %v1865
      %v1930 = vpack.c.b16 %v1866, %v1866
      %v1931 = vpack.c.b16 %v1867, %v1867
      %v1932 = vpack.c.b16 %v1868, %v1868
      %v1933 = vpack.c.b16 %v1869, %v1869
      %v1934 = vpack.c.b16 %v1870, %v1870
      %v1935 = vpack.c.b16 %v1871, %v1871
      %v1936 = vpack.c.b16 %v1872, %v1872
      %v1937 = vpack.c.b16 %v1873, %v1873
      %v1938 = vpack.c.b16 %v1874, %v1874
      %v1939 = vpack.c.b16 %v1875, %v1875
      %v1940 = vpack.c.b16 %v1876, %v1876
      %v1941 = vpack.c.b16 %v1877, %v1877
      %v1942 = vpack.c.b16 %v1878, %v1878
      %v1943 = vpack.c.b16 %v1879, %v1879
      %v1944 = vpack.c.b16 %v1880, %v1880
      %v1945 = vpack.c.b16 %v1881, %v1881
      %v1946 = vpack.c.b16 %v1882, %v1882
      %v1947 = vpack.c.b16 %v1883, %v1883
      %v1948 = vpack.c.b16 %v1884, %v1884
      %v1949 = vpack.c.b16 %v1885, %v1885
      %v1950 = vpack.c.b16 %v1886, %v1886
      %v1951 = vpack.c.b16 %v1887, %v1887
      %v1952 = vpack.c.b16 %v1888, %v1888
      %v1953 = vpack.c.b16 %v1889, %v1889
      %2018 = vst [vmem:[#allocation11] sm:$0xf] %v1890
      %2019 = vst [vmem:[#allocation11 + $0x4] sm:$0xf] %v1891
      %2020 = vst [vmem:[#allocation11 + $0x8] sm:$0xf] %v1892
      %2021 = vst [vmem:[#allocation11 + $0xc] sm:$0xf] %v1893
      %2022 = vst [vmem:[#allocation11 + $0x10] sm:$0xf] %v1894
      %2023 = vst [vmem:[#allocation11 + $0x14] sm:$0xf] %v1895
      %2024 = vst [vmem:[#allocation11 + $0x18] sm:$0xf] %v1896
      %2025 = vst [vmem:[#allocation11 + $0x1c] sm:$0xf] %v1897
      %2026 = vst [vmem:[#allocation11 + $0x20] sm:$0xf] %v1898
      %2027 = vst [vmem:[#allocation11 + $0x24] sm:$0xf] %v1899
      %2028 = vst [vmem:[#allocation11 + $0x28] sm:$0xf] %v1900
      %2029 = vst [vmem:[#allocation11 + $0x2c] sm:$0xf] %v1901
      %2030 = vst [vmem:[#allocation11 + $0x30] sm:$0xf] %v1902
      %2031 = vst [vmem:[#allocation11 + $0x34] sm:$0xf] %v1903
      %2032 = vst [vmem:[#allocation11 + $0x38] sm:$0xf] %v1904
      %2033 = vst [vmem:[#allocation11 + $0x3c] sm:$0xf] %v1905
      %2034 = vst [vmem:[#allocation11 + $0x40] sm:$0xf] %v1906
      %2035 = vst [vmem:[#allocation11 + $0x44] sm:$0xf] %v1907
      %2036 = vst [vmem:[#allocation11 + $0x48] sm:$0xf] %v1908
      %2037 = vst [vmem:[#allocation11 + $0x4c] sm:$0xf] %v1909
      %2038 = vst [vmem:[#allocation11 + $0x50] sm:$0xf] %v1910
      %2039 = vst [vmem:[#allocation11 + $0x54] sm:$0xf] %v1911
      %2040 = vst [vmem:[#allocation11 + $0x58] sm:$0xf] %v1912
      %2041 = vst [vmem:[#allocation11 + $0x5c] sm:$0xf] %v1913
      %2042 = vst [vmem:[#allocation11 + $0x60] sm:$0xf] %v1914
      %2043 = vst [vmem:[#allocation11 + $0x64] sm:$0xf] %v1915
      %2044 = vst [vmem:[#allocation11 + $0x68] sm:$0xf] %v1916
      %2045 = vst [vmem:[#allocation11 + $0x6c] sm:$0xf] %v1917
      %2046 = vst [vmem:[#allocation11 + $0x70] sm:$0xf] %v1918
      %2047 = vst [vmem:[#allocation11 + $0x74] sm:$0xf] %v1919
      %2048 = vst [vmem:[#allocation11 + $0x78] sm:$0xf] %v1920
      %2049 = vst [vmem:[#allocation11 + $0x7c] sm:$0xf] %v1921
      %2050 = vst [vmem:[#allocation11 + $0x80] sm:$0xf] %v1922
      %2051 = vst [vmem:[#allocation11 + $0x84] sm:$0xf] %v1923
      %2052 = vst [vmem:[#allocation11 + $0x88] sm:$0xf] %v1924
      %2053 = vst [vmem:[#allocation11 + $0x8c] sm:$0xf] %v1925
      %2054 = vst [vmem:[#allocation11 + $0x90] sm:$0xf] %v1926
      %2055 = vst [vmem:[#allocation11 + $0x94] sm:$0xf] %v1927
      %2056 = vst [vmem:[#allocation11 + $0x98] sm:$0xf] %v1928
      %2057 = vst [vmem:[#allocation11 + $0x9c] sm:$0xf] %v1929
      %2058 = vst [vmem:[#allocation11 + $0xa0] sm:$0xf] %v1930
      %2059 = vst [vmem:[#allocation11 + $0xa4] sm:$0xf] %v1931
      %2060 = vst [vmem:[#allocation11 + $0xa8] sm:$0xf] %v1932
      %2061 = vst [vmem:[#allocation11 + $0xac] sm:$0xf] %v1933
      %2062 = vst [vmem:[#allocation11 + $0xb0] sm:$0xf] %v1934
      %2063 = vst [vmem:[#allocation11 + $0xb4] sm:$0xf] %v1935
      %2064 = vst [vmem:[#allocation11 + $0xb8] sm:$0xf] %v1936
      %2065 = vst [vmem:[#allocation11 + $0xbc] sm:$0xf] %v1937
      %2066 = vst [vmem:[#allocation11 + $0xc0] sm:$0xf] %v1938
      %2067 = vst [vmem:[#allocation11 + $0xc4] sm:$0xf] %v1939
      %2068 = vst [vmem:[#allocation11 + $0xc8] sm:$0xf] %v1940
      %2069 = vst [vmem:[#allocation11 + $0xcc] sm:$0xf] %v1941
      %2070 = vst [vmem:[#allocation11 + $0xd0] sm:$0xf] %v1942
      %2071 = vst [vmem:[#allocation11 + $0xd4] sm:$0xf] %v1943
      %2072 = vst [vmem:[#allocation11 + $0xd8] sm:$0xf] %v1944
      %2073 = vst [vmem:[#allocation11 + $0xdc] sm:$0xf] %v1945
      %2074 = vst [vmem:[#allocation11 + $0xe0] sm:$0xf] %v1946
      %2075 = vst [vmem:[#allocation11 + $0xe4] sm:$0xf] %v1947
      %2076 = vst [vmem:[#allocation11 + $0xe8] sm:$0xf] %v1948
      %2077 = vst [vmem:[#allocation11 + $0xec] sm:$0xf] %v1949
      %2078 = vst [vmem:[#allocation11 + $0xf0] sm:$0xf] %v1950
      %2079 = vst [vmem:[#allocation11 + $0xf4] sm:$0xf] %v1951
      %2080 = vst [vmem:[#allocation11 + $0xf8] sm:$0xf] %v1952
      %2081 = vst [vmem:[#allocation11 + $0xfc] sm:$0xf] %v1953
    $region41: #{bottleneck_forward.2} parent=1 // pred_fallthru
      _
    // Predicated region
    $region42: #{bottleneck_forward.2} parent=1 // pred_check
      _
    $region43: #{bottleneck_forward.2} parent=1 // pred_check_branch
      %2083 = sbr.rel (0) target = $region45
    $region44: #{bottleneck_forward.2} parent=1 // pred_region
      %s2085 = ssub.s32 4096, 4096
      %2086 = vsyncadd [#allocation5], %s2085
      %s2087 = sshll.u32 [#allocation11], 4
      %s2088 = int_to_ptr.vmem [resolvable:$true] %s2087
      %2093 = dma.vmem_to_hbm [thread:$0]  %s2088, 4096, %s4, [#allocation5], 64, 64, 4
    $region45: #{bottleneck_forward.2} parent=1 // pred_fallthru
      _
    // Predicated region
    $region46: #{bottleneck_forward.2} parent=1 // pred_check
      _
    $region47: #{bottleneck_forward.2} parent=1 // pred_check_branch
      %2095 = sbr.rel (0) target = $region49
    $region48: #{bottleneck_forward.2} parent=1 // pred_region
      %2096 = dma.done [#allocation5], 4096
    $region49: #{bottleneck_forward.2} parent=1 // pred_fallthru
      _
    %2097 = vsyncpa [#allocation4], 1
    %2098 = vsyncpa [#allocation7], 1
    %2099 = vsyncpa [#allocation10], 1
    %2100 = vsyncpa [#allocation5], 1

// kernel: bottleneck_forward.3
$region0: #{bottleneck_forward.3}
  #allocation0 [shape = 'u32[]', space=smem, size = 0x4, offset = 0x4, fixed_abs, tag = 'smem constant byte address 0x4 - core index']
  #allocation1 [shape = 'u32[144,128]{1,0:T(1,128)}', space=vmem, size = 0x12000, scoped, tag = 'internal scratch']
  %s0 = inlined_call_operand.hbm [shape: bf16[8,9,9,16], index: 0, kind: input, shape index: {}]
  %s1 = inlined_call_operand.hbm [shape: bf16[9,16,128], index: 1, kind: input, shape index: {}]
  %s2 = inlined_call_operand.hbm [shape: f32[1,128], index: 2, kind: input, shape index: {}]
  %s3 = inlined_call_operand.hbm [shape: f32[1,128], index: 3, kind: input, shape index: {}]
  %s4 = inlined_call_operand.hbm [shape: bf16[128,128], index: 4, kind: input, shape index: {}]
  %s5 = inlined_call_operand.hbm [shape: f32[1,128], index: 5, kind: input, shape index: {}]
  %s6 = inlined_call_operand.hbm [shape: f32[1,128], index: 6, kind: input, shape index: {}]
  %s7 = inlined_call_operand.hbm [shape: bf16[128,32], index: 7, kind: input, shape index: {}]
  %s8 = inlined_call_operand.hbm [shape: bf16[32,128], index: 8, kind: input, shape index: {}]
  %s9 = inlined_call_operand.hbm [shape: f32[1,128], index: 9, kind: input, shape index: {}]
  %s10 = inlined_call_operand.hbm [shape: f32[1,128], index: 10, kind: input, shape index: {}]
  %s11 = inlined_call_operand.hbm [shape: f32[128,128], index: 11, kind: output, shape index: {}]
  %s12 = sld [smem:[#allocation0]]
  $region98: #{bottleneck_forward.3} parent=0
    _
  %s14 = ssub.s32 1, %s12
  %s15 = scalar_select 0, %s14, %s12
  $region1: #{bottleneck_forward.3} parent=0
    #allocation2 [shape = 'u8[294912]{0}', space=vmem, size = 0x48000, scoped, tag = 'input window, operand 0, single buffered']
    #allocation3 [shape = 's32[1]{0}', space=sflag, size = 0x4, scoped, tag = 'scoped memory for bottleneck_forward.3']
    #allocation4 [shape = 's32[1]{0}', space=sflag, size = 0x4, scoped, tag = 'scoped memory for bottleneck_forward.3']
    #allocation5 [shape = 'u8[36864]{0}', space=vmem, size = 0x9000, scoped, tag = 'input window, operand 1, single buffered']
    #allocation6 [shape = 's32[1]{0}', space=sflag, size = 0x4, scoped, tag = 'scoped memory for bottleneck_forward.3']
    #allocation7 [shape = 'u8[512]{0}', space=vmem, size = 0x400, scoped, tag = 'input window, operand 2, single buffered']
    #allocation8 [shape = 'u8[512]{0}', space=vmem, size = 0x400, scoped, tag = 'input window, operand 3, single buffered']
    #allocation9 [shape = 's32[1]{0}', space=sflag, size = 0x4, scoped, tag = 'scoped memory for bottleneck_forward.3']
    #allocation10 [shape = 'u8[32768]{0}', space=vmem, size = 0x8000, scoped, tag = 'input window, operand 4, single buffered']
    #allocation11 [shape = 'u8[512]{0}', space=vmem, size = 0x400, scoped, tag = 'input window, operand 5, single buffered']
    #allocation12 [shape = 's32[1]{0}', space=sflag, size = 0x4, scoped, tag = 'scoped memory for bottleneck_forward.3']
    #allocation13 [shape = 'u8[512]{0}', space=vmem, size = 0x400, scoped, tag = 'input window, operand 6, single buffered']
    #allocation14 [shape = 'u8[32768]{0}', space=vmem, size = 0x8000, scoped, tag = 'input window, operand 7, single buffered']
    #allocation15 [shape = 's32[1]{0}', space=sflag, size = 0x4, scoped, tag = 'scoped memory for bottleneck_forward.3']
    #allocation16 [shape = 'u8[8192]{0}', space=vmem, size = 0x2000, scoped, tag = 'input window, operand 8, single buffered']
    #allocation17 [shape = 'u8[512]{0}', space=vmem, size = 0x400, scoped, tag = 'input window, operand 9, single buffered']
    #allocation18 [shape = 's32[1]{0}', space=sflag, size = 0x4, scoped, tag = 'scoped memory for bottleneck_forward.3']
    #allocation19 [shape = 'u8[512]{0}', space=vmem, size = 0x400, scoped, tag = 'input window, operand 10, single buffered']
    #allocation20 [shape = 'u8[65536]{0}', space=vmem, size = 0x10000, scoped, tag = 'output window, operand 0, single buffered']
    %16 = vsyncpa [#allocation3], 0
    %17 = vsyncpa [#allocation6], 0
    %18 = vsyncpa [#allocation9], 0
    %19 = vsyncpa [#allocation12], 0
    %20 = vsyncpa [#allocation15], 0
    %21 = vsyncpa [#allocation18], 0
    %22 = vsyncpa [#allocation4], 0
    // Predicated region
    $region2: #{bottleneck_forward.3} parent=1 // pred_check
      _
    $region3: #{bottleneck_forward.3} parent=1 // pred_check_branch
      %24 = sbr.rel (0) target = $region5
    $region4: #{bottleneck_forward.3} parent=1 // pred_region
      %s26 = ssub.s32 9216, 9216
      %27 = vsyncadd [#allocation3], %s26
      %s28 = sshll.u32 [#allocation2], 4
      %s29 = int_to_ptr.vmem [resolvable:$true] %s28
      %34 = dma.hbm_to_vmem [thread:$0]  %s0, 9216, %s29, [#allocation3], 64, 64, 4
    $region5: #{bottleneck_forward.3} parent=1 // pred_fallthru
      _
    // Predicated region
    $region6: #{bottleneck_forward.3} parent=1 // pred_check
      _
    $region7: #{bottleneck_forward.3} parent=1 // pred_check_branch
      %36 = sbr.rel (0) target = $region9
    $region8: #{bottleneck_forward.3} parent=1 // pred_region
      %s38 = ssub.s32 1152, 1152
      %39 = vsyncadd [#allocation6], %s38
      %s40 = sshll.u32 [#allocation5], 4
      %s41 = int_to_ptr.vmem [resolvable:$true] %s40
      %46 = dma.hbm_to_vmem [thread:$0]  %s1, 1152, %s41, [#allocation6], 64, 64, 4
    $region9: #{bottleneck_forward.3} parent=1 // pred_fallthru
      _
    // Predicated region
    $region10: #{bottleneck_forward.3} parent=1 // pred_check
      _
    $region11: #{bottleneck_forward.3} parent=1 // pred_check_branch
      %48 = sbr.rel (0) target = $region13
    $region12: #{bottleneck_forward.3} parent=1 // pred_region
      %s50 = ssub.s32 16, 16
      %51 = vsyncadd [#allocation6], %s50
      %s53 = sshll.u32 [#allocation7], 4
      %s54 = int_to_ptr.vmem [resolvable:$true] %s53
      %56 = dma.hbm_to_vmem [thread:$0]  %s2, 16, %s54, [#allocation6]
    $region13: #{bottleneck_forward.3} parent=1 // pred_fallthru
      _
    // Predicated region
    $region14: #{bottleneck_forward.3} parent=1 // pred_check
      _
    $region15: #{bottleneck_forward.3} parent=1 // pred_check_branch
      %58 = sbr.rel (0) target = $region17
    $region16: #{bottleneck_forward.3} parent=1 // pred_region
      %s60 = ssub.s32 16, 16
      %61 = vsyncadd [#allocation9], %s60
      %s63 = sshll.u32 [#allocation8], 4
      %s64 = int_to_ptr.vmem [resolvable:$true] %s63
      %66 = dma.hbm_to_vmem [thread:$0]  %s3, 16, %s64, [#allocation9]
    $region17: #{bottleneck_forward.3} parent=1 // pred_fallthru
      _
    // Predicated region
    $region18: #{bottleneck_forward.3} parent=1 // pred_check
      _
    $region19: #{bottleneck_forward.3} parent=1 // pred_check_branch
      %68 = sbr.rel (0) target = $region21
    $region20: #{bottleneck_forward.3} parent=1 // pred_region
      %s70 = ssub.s32 1024, 1024
      %71 = vsyncadd [#allocation9], %s70
      %s72 = sshll.u32 [#allocation10], 4
      %s73 = int_to_ptr.vmem [resolvable:$true] %s72
      %78 = dma.hbm_to_vmem [thread:$0]  %s4, 1024, %s73, [#allocation9], 64, 64, 4
    $region21: #{bottleneck_forward.3} parent=1 // pred_fallthru
      _
    // Predicated region
    $region22: #{bottleneck_forward.3} parent=1 // pred_check
      _
    $region23: #{bottleneck_forward.3} parent=1 // pred_check_branch
      %80 = sbr.rel (0) target = $region25
    $region24: #{bottleneck_forward.3} parent=1 // pred_region
      %s82 = ssub.s32 16, 16
      %83 = vsyncadd [#allocation12], %s82
      %s85 = sshll.u32 [#allocation11], 4
      %s86 = int_to_ptr.vmem [resolvable:$true] %s85
      %88 = dma.hbm_to_vmem [thread:$0]  %s5, 16, %s86, [#allocation12]
    $region25: #{bottleneck_forward.3} parent=1 // pred_fallthru
      _
    // Predicated region
    $region26: #{bottleneck_forward.3} parent=1 // pred_check
      _
    $region27: #{bottleneck_forward.3} parent=1 // pred_check_branch
      %90 = sbr.rel (0) target = $region29
    $region28: #{bottleneck_forward.3} parent=1 // pred_region
      %s92 = ssub.s32 16, 16
      %93 = vsyncadd [#allocation12], %s92
      %s95 = sshll.u32 [#allocation13], 4
      %s96 = int_to_ptr.vmem [resolvable:$true] %s95
      %98 = dma.hbm_to_vmem [thread:$0]  %s6, 16, %s96, [#allocation12]
    $region29: #{bottleneck_forward.3} parent=1 // pred_fallthru
      _
    // Predicated region
    $region30: #{bottleneck_forward.3} parent=1 // pred_check
      _
    $region31: #{bottleneck_forward.3} parent=1 // pred_check_branch
      %100 = sbr.rel (0) target = $region33
    $region32: #{bottleneck_forward.3} parent=1 // pred_region
      %s102 = ssub.s32 1024, 1024
      %103 = vsyncadd [#allocation15], %s102
      %s104 = sshll.u32 [#allocation14], 4
      %s105 = int_to_ptr.vmem [resolvable:$true] %s104
      %110 = dma.hbm_to_vmem [thread:$0]  %s7, 1024, %s105, [#allocation15], 64, 64, 4
    $region33: #{bottleneck_forward.3} parent=1 // pred_fallthru
      _
    // Predicated region
    $region34: #{bottleneck_forward.3} parent=1 // pred_check
      _
    $region35: #{bottleneck_forward.3} parent=1 // pred_check_branch
      %112 = sbr.rel (0) target = $region37
    $region36: #{bottleneck_forward.3} parent=1 // pred_region
      %s114 = ssub.s32 256, 256
      %115 = vsyncadd [#allocation15], %s114
      %s116 = sshll.u32 [#allocation16], 4
      %s117 = int_to_ptr.vmem [resolvable:$true] %s116
      %122 = dma.hbm_to_vmem [thread:$0]  %s8, 256, %s117, [#allocation15], 64, 64, 4
    $region37: #{bottleneck_forward.3} parent=1 // pred_fallthru
      _
    // Predicated region
    $region38: #{bottleneck_forward.3} parent=1 // pred_check
      _
    $region39: #{bottleneck_forward.3} parent=1 // pred_check_branch
      %124 = sbr.rel (0) target = $region41
    $region40: #{bottleneck_forward.3} parent=1 // pred_region
      %s126 = ssub.s32 16, 16
      %127 = vsyncadd [#allocation18], %s126
      %s129 = sshll.u32 [#allocation17], 4
      %s130 = int_to_ptr.vmem [resolvable:$true] %s129
      %132 = dma.hbm_to_vmem [thread:$0]  %s9, 16, %s130, [#allocation18]
    $region41: #{bottleneck_forward.3} parent=1 // pred_fallthru
      _
    // Predicated region
    $region42: #{bottleneck_forward.3} parent=1 // pred_check
      _
    $region43: #{bottleneck_forward.3} parent=1 // pred_check_branch
      %134 = sbr.rel (0) target = $region45
    $region44: #{bottleneck_forward.3} parent=1 // pred_region
      %s136 = ssub.s32 16, 16
      %137 = vsyncadd [#allocation18], %s136
      %s139 = sshll.u32 [#allocation19], 4
      %s140 = int_to_ptr.vmem [resolvable:$true] %s139
      %142 = dma.hbm_to_vmem [thread:$0]  %s10, 16, %s140, [#allocation18]
    $region45: #{bottleneck_forward.3} parent=1 // pred_fallthru
      _
    // Predicated region
    $region46: #{bottleneck_forward.3} parent=1 // pred_check
      _
    $region47: #{bottleneck_forward.3} parent=1 // pred_check_branch
      %144 = sbr.rel (0) target = $region49
    $region48: #{bottleneck_forward.3} parent=1 // pred_region
      %145 = dma.done [#allocation3], 9216
    $region49: #{bottleneck_forward.3} parent=1 // pred_fallthru
      _
    // Predicated region
    $region50: #{bottleneck_forward.3} parent=1 // pred_check
      _
    $region51: #{bottleneck_forward.3} parent=1 // pred_check_branch
      %147 = sbr.rel (0) target = $region53
    $region52: #{bottleneck_forward.3} parent=1 // pred_region
      %148 = dma.done [#allocation6], 1152
    $region53: #{bottleneck_forward.3} parent=1 // pred_fallthru
      _
    // Predicated region
    $region54: #{bottleneck_forward.3} parent=1 // pred_check
      _
    $region55: #{bottleneck_forward.3} parent=1 // pred_check_branch
      %150 = sbr.rel (0) target = $region57
    $region56: #{bottleneck_forward.3} parent=1 // pred_region
      %151 = dma.done [#allocation6], 16
    $region57: #{bottleneck_forward.3} parent=1 // pred_fallthru
      _
    // Predicated region
    $region58: #{bottleneck_forward.3} parent=1 // pred_check
      _
    $region59: #{bottleneck_forward.3} parent=1 // pred_check_branch
      %153 = sbr.rel (0) target = $region61
    $region60: #{bottleneck_forward.3} parent=1 // pred_region
      %154 = dma.done [#allocation9], 16
    $region61: #{bottleneck_forward.3} parent=1 // pred_fallthru
      _
    // Predicated region
    $region62: #{bottleneck_forward.3} parent=1 // pred_check
      _
    $region63: #{bottleneck_forward.3} parent=1 // pred_check_branch
      %156 = sbr.rel (0) target = $region65
    $region64: #{bottleneck_forward.3} parent=1 // pred_region
      %157 = dma.done [#allocation9], 1024
    $region65: #{bottleneck_forward.3} parent=1 // pred_fallthru
      _
    // Predicated region
    $region66: #{bottleneck_forward.3} parent=1 // pred_check
      _
    $region67: #{bottleneck_forward.3} parent=1 // pred_check_branch
      %159 = sbr.rel (0) target = $region69
    $region68: #{bottleneck_forward.3} parent=1 // pred_region
      %160 = dma.done [#allocation12], 16
    $region69: #{bottleneck_forward.3} parent=1 // pred_fallthru
      _
    // Predicated region
    $region70: #{bottleneck_forward.3} parent=1 // pred_check
      _
    $region71: #{bottleneck_forward.3} parent=1 // pred_check_branch
      %162 = sbr.rel (0) target = $region73
    $region72: #{bottleneck_forward.3} parent=1 // pred_region
      %163 = dma.done [#allocation12], 16
    $region73: #{bottleneck_forward.3} parent=1 // pred_fallthru
      _
    // Predicated region
    $region74: #{bottleneck_forward.3} parent=1 // pred_check
      _
    $region75: #{bottleneck_forward.3} parent=1 // pred_check_branch
      %165 = sbr.rel (0) target = $region77
    $region76: #{bottleneck_forward.3} parent=1 // pred_region
      %166 = dma.done [#allocation15], 1024
    $region77: #{bottleneck_forward.3} parent=1 // pred_fallthru
      _
    // Predicated region
    $region78: #{bottleneck_forward.3} parent=1 // pred_check
      _
    $region79: #{bottleneck_forward.3} parent=1 // pred_check_branch
      %168 = sbr.rel (0) target = $region81
    $region80: #{bottleneck_forward.3} parent=1 // pred_region
      %169 = dma.done [#allocation15], 256
    $region81: #{bottleneck_forward.3} parent=1 // pred_fallthru
      _
    // Predicated region
    $region82: #{bottleneck_forward.3} parent=1 // pred_check
      _
    $region83: #{bottleneck_forward.3} parent=1 // pred_check_branch
      %171 = sbr.rel (0) target = $region85
    $region84: #{bottleneck_forward.3} parent=1 // pred_region
      %172 = dma.done [#allocation18], 16
    $region85: #{bottleneck_forward.3} parent=1 // pred_fallthru
      _
    // Predicated region
    $region86: #{bottleneck_forward.3} parent=1 // pred_check
      _
    $region87: #{bottleneck_forward.3} parent=1 // pred_check_branch
      %174 = sbr.rel (0) target = $region89
    $region88: #{bottleneck_forward.3} parent=1 // pred_region
      %175 = dma.done [#allocation18], 16
    $region89: #{bottleneck_forward.3} parent=1 // pred_fallthru
      _
    %v177 = vld [vmem:[#allocation2] sm:$0xf]
    %v178 = vld [vmem:[#allocation2 + $0x4] sm:$0x1]
    %v179 = vld [vmem:[#allocation2 + $0x8] sm:$0xf]
    %v180 = vld [vmem:[#allocation2 + $0xc] sm:$0x1]
    %v181 = vld [vmem:[#allocation2 + $0x10] sm:$0xf]
    %v182 = vld [vmem:[#allocation2 + $0x14] sm:$0x1]
    %v183 = vld [vmem:[#allocation2 + $0x18] sm:$0xf]
    %v184 = vld [vmem:[#allocation2 + $0x1c] sm:$0x1]
    %v185 = vld [vmem:[#allocation2 + $0x20] sm:$0xf]
    %v186 = vld [vmem:[#allocation2 + $0x24] sm:$0x1]
    %v187 = vld [vmem:[#allocation2 + $0x28] sm:$0xf]
    %v188 = vld [vmem:[#allocation2 + $0x2c] sm:$0x1]
    %v189 = vld [vmem:[#allocation2 + $0x30] sm:$0xf]
    %v190 = vld [vmem:[#allocation2 + $0x34] sm:$0x1]
    %v191 = vld [vmem:[#allocation2 + $0x38] sm:$0xf]
    %v192 = vld [vmem:[#allocation2 + $0x3c] sm:$0x1]
    %v193 = vld [vmem:[#allocation2 + $0x40] sm:$0xf]
    %v194 = vld [vmem:[#allocation2 + $0x44] sm:$0x1]
    %v195 = vld [vmem:[#allocation2 + $0x48] sm:$0xf]
    %v196 = vld [vmem:[#allocation2 + $0x4c] sm:$0x1]
    %v197 = vld [vmem:[#allocation2 + $0x50] sm:$0xf]
    %v198 = vld [vmem:[#allocation2 + $0x54] sm:$0x1]
    %v199 = vld [vmem:[#allocation2 + $0x58] sm:$0xf]
    %v200 = vld [vmem:[#allocation2 + $0x5c] sm:$0x1]
    %v201 = vld [vmem:[#allocation2 + $0x60] sm:$0xf]
    %v202 = vld [vmem:[#allocation2 + $0x64] sm:$0x1]
    %v203 = vld [vmem:[#allocation2 + $0x68] sm:$0xf]
    %v204 = vld [vmem:[#allocation2 + $0x6c] sm:$0x1]
    %v205 = vld [vmem:[#allocation2 + $0x70] sm:$0xf]
    %v206 = vld [vmem:[#allocation2 + $0x74] sm:$0x1]
    %v207 = vld [vmem:[#allocation2 + $0x78] sm:$0xf]
    %v208 = vld [vmem:[#allocation2 + $0x7c] sm:$0x1]
    %v209 = vld [vmem:[#allocation2 + $0x80] sm:$0xf]
    %v210 = vld [vmem:[#allocation2 + $0x84] sm:$0x1]
    %v211 = vld [vmem:[#allocation2 + $0x88] sm:$0xf]
    %v212 = vld [vmem:[#allocation2 + $0x8c] sm:$0x1]
    %v213 = vld [vmem:[#allocation2 + $0x90] sm:$0xf]
    %v214 = vld [vmem:[#allocation2 + $0x98] sm:$0xf]
    %v215 = vld [vmem:[#allocation2 + $0xa0] sm:$0xf]
    %v216 = vld [vmem:[#allocation2 + $0xa8] sm:$0xf]
    %v217 = vld [vmem:[#allocation2 + $0xb0] sm:$0xf]
    %v218 = vld [vmem:[#allocation2 + $0xb8] sm:$0xf]
    %v219 = vld [vmem:[#allocation2 + $0xc0] sm:$0xf]
    %v220 = vld [vmem:[#allocation2 + $0xc8] sm:$0xf]
    %v221 = vld [vmem:[#allocation2 + $0xd0] sm:$0xf]
    %v222 = vld [vmem:[#allocation2 + $0xd8] sm:$0xf]
    %v223 = vld [vmem:[#allocation2 + $0xe0] sm:$0xf]
    %v224 = vld [vmem:[#allocation2 + $0xe8] sm:$0xf]
    %v225 = vld [vmem:[#allocation2 + $0xf0] sm:$0xf]
    %v226 = vld [vmem:[#allocation2 + $0xf8] sm:$0xf]
    %v227 = vld [vmem:[#allocation2 + $0x100] sm:$0xf]
    %v228 = vld [vmem:[#allocation2 + $0x108] sm:$0xf]
    %v229 = vld [vmem:[#allocation2 + $0x110] sm:$0xf]
    %v230 = vld [vmem:[#allocation2 + $0x118] sm:$0xf]
    %v231 = vld [vmem:[#allocation2 + $0x120] sm:$0xf]
    %v232 = vld [vmem:[#allocation2 + $0x124] sm:$0x1]
    %v233 = vld [vmem:[#allocation2 + $0x128] sm:$0xf]
    %v234 = vld [vmem:[#allocation2 + $0x12c] sm:$0x1]
    %v235 = vld [vmem:[#allocation2 + $0x130] sm:$0xf]
    %v236 = vld [vmem:[#allocation2 + $0x134] sm:$0x1]
    %v237 = vld [vmem:[#allocation2 + $0x138] sm:$0xf]
    %v238 = vld [vmem:[#allocation2 + $0x13c] sm:$0x1]
    %v239 = vld [vmem:[#allocation2 + $0x140] sm:$0xf]
    %v240 = vld [vmem:[#allocation2 + $0x144] sm:$0x1]
    %v241 = vld [vmem:[#allocation2 + $0x148] sm:$0xf]
    %v242 = vld [vmem:[#allocation2 + $0x14c] sm:$0x1]
    %v243 = vld [vmem:[#allocation2 + $0x150] sm:$0xf]
    %v244 = vld [vmem:[#allocation2 + $0x154] sm:$0x1]
    %v245 = vld [vmem:[#allocation2 + $0x158] sm:$0xf]
    %v246 = vld [vmem:[#allocation2 + $0x15c] sm:$0x1]
    %v247 = vld [vmem:[#allocation2 + $0x168] sm:$0xf]
    %v248 = vld [vmem:[#allocation2 + $0x16c] sm:$0x1]
    %v249 = vld [vmem:[#allocation2 + $0x170] sm:$0xf]
    %v250 = vld [vmem:[#allocation2 + $0x174] sm:$0x1]
    %v251 = vld [vmem:[#allocation2 + $0x178] sm:$0xf]
    %v252 = vld [vmem:[#allocation2 + $0x17c] sm:$0x1]
    %v253 = vld [vmem:[#allocation2 + $0x180] sm:$0xf]
    %v254 = vld [vmem:[#allocation2 + $0x184] sm:$0x1]
    %v255 = vld [vmem:[#allocation2 + $0x188] sm:$0xf]
    %v256 = vld [vmem:[#allocation2 + $0x18c] sm:$0x1]
    %v257 = vld [vmem:[#allocation2 + $0x190] sm:$0xf]
    %v258 = vld [vmem:[#allocation2 + $0x194] sm:$0x1]
    %v259 = vld [vmem:[#allocation2 + $0x198] sm:$0xf]
    %v260 = vld [vmem:[#allocation2 + $0x19c] sm:$0x1]
    %v261 = vld [vmem:[#allocation2 + $0x1a0] sm:$0xf]
    %v262 = vld [vmem:[#allocation2 + $0x1a4] sm:$0x1]
    %v263 = vld [vmem:[#allocation2 + $0x1b0] sm:$0xf]
    %v264 = vld [vmem:[#allocation2 + $0x1b8] sm:$0xf]
    %v265 = vld [vmem:[#allocation2 + $0x1c0] sm:$0xf]
    %v266 = vld [vmem:[#allocation2 + $0x1c8] sm:$0xf]
    %v267 = vld [vmem:[#allocation2 + $0x1d0] sm:$0xf]
    %v268 = vld [vmem:[#allocation2 + $0x1d8] sm:$0xf]
    %v269 = vld [vmem:[#allocation2 + $0x1e0] sm:$0xf]
    %v270 = vld [vmem:[#allocation2 + $0x1e8] sm:$0xf]
    %v271 = vld [vmem:[#allocation2 + $0x1f8] sm:$0xf]
    %v272 = vld [vmem:[#allocation2 + $0x200] sm:$0xf]
    %v273 = vld [vmem:[#allocation2 + $0x208] sm:$0xf]
    %v274 = vld [vmem:[#allocation2 + $0x210] sm:$0xf]
    %v275 = vld [vmem:[#allocation2 + $0x218] sm:$0xf]
    %v276 = vld [vmem:[#allocation2 + $0x220] sm:$0xf]
    %v277 = vld [vmem:[#allocation2 + $0x228] sm:$0xf]
    %v278 = vld [vmem:[#allocation2 + $0x230] sm:$0xf]
    %v279 = vld [vmem:[#allocation5] sm:$0xf]
    %v280 = vld [vmem:[#allocation5 + $0x4] sm:$0xf]
    %v281 = vld [vmem:[#allocation5 + $0x8] sm:$0xf]
    %v282 = vld [vmem:[#allocation5 + $0xc] sm:$0xf]
    %v283 = vld [vmem:[#allocation5 + $0x10] sm:$0xf]
    %v284 = vld [vmem:[#allocation5 + $0x14] sm:$0xf]
    %v285 = vld [vmem:[#allocation5 + $0x18] sm:$0xf]
    %v286 = vld [vmem:[#allocation5 + $0x1c] sm:$0xf]
    %v287 = vld [vmem:[#allocation5 + $0x20] sm:$0xf]
    %v288 = vld [vmem:[#allocation5 + $0x24] sm:$0xf]
    %v289 = vld [vmem:[#allocation5 + $0x28] sm:$0xf]
    %v290 = vld [vmem:[#allocation5 + $0x2c] sm:$0xf]
    %v291 = vld [vmem:[#allocation5 + $0x30] sm:$0xf]
    %v292 = vld [vmem:[#allocation5 + $0x34] sm:$0xf]
    %v293 = vld [vmem:[#allocation5 + $0x38] sm:$0xf]
    %v294 = vld [vmem:[#allocation5 + $0x3c] sm:$0xf]
    %v295 = vld [vmem:[#allocation5 + $0x40] sm:$0xf]
    %v296 = vld [vmem:[#allocation5 + $0x44] sm:$0xf]
    %v297 = vld [vmem:[#allocation7] sm:$0x1]
    %v298 = vld [vmem:[#allocation8] sm:$0x1]
    %v315 = vunpack.c.l.b16 %v213
    %v316 = vunpack.c.l.b16 %v214
    %v317 = vunpack.c.l.b16 %v215
    %v318 = vunpack.c.l.b16 %v216
    %v319 = vunpack.c.l.b16 %v217
    %v320 = vunpack.c.l.b16 %v218
    %v321 = vunpack.c.l.b16 %v219
    %v322 = vunpack.c.l.b16 %v220
    %v323 = vunpack.c.l.b16 %v222
    %v324 = vunpack.c.l.b16 %v223
    %v325 = vunpack.c.l.b16 %v224
    %v326 = vunpack.c.l.b16 %v225
    %v327 = vunpack.c.l.b16 %v226
    %v328 = vunpack.c.l.b16 %v227
    %v329 = vunpack.c.l.b16 %v228
    %v330 = vunpack.c.l.b16 %v229
    %v331 = vpack.c.b16 %v316, %v315
    %v332 = vpack.c.b16 %v318, %v317
    %v333 = vpack.c.b16 %v320, %v319
    %v334 = vpack.c.b16 %v322, %v321
    %v335 = vpack.c.b16 %v324, %v323
    %v336 = vpack.c.b16 %v326, %v325
    %v337 = vpack.c.b16 %v328, %v327
    %v338 = vpack.c.b16 %v330, %v329
    %v341 = vunpack.c.l.b16 %v281
    %v342 = vunpack.c.l.b16 %v282
    %v343 = vpack.c.b16 %v342, %v341
    %vm345 = vcmask 130048
    %v347 = vsel %vm345, %v331, 0
    %v350 = vsel %vm345, %v332, 0
    %v353 = vsel %vm345, %v333, 0
    %v356 = vsel %vm345, %v334, 0
    %v359 = vsel %vm345, %v335, 0
    %v362 = vsel %vm345, %v336, 0
    %v365 = vsel %vm345, %v337, 0
    %v368 = vsel %vm345, %v338, 0
    %370 = vmatprep.subr.bf16.mxu0 0
    %371 = vmatpush1.bf16.msra.mxu0 %v343
    %372 = vmatprep.subr.bf16.mxu0 0
    %373 = vmatpush1.bf16.msra.mxu0 0
    %374 = vmatprep.subr.bf16.mxu0 0
    %375 = vmatpush1.bf16.msra.mxu0 0
    %376 = vmatprep.subr.bf16.mxu0 0
    %377 = vmatpush1.bf16.msra.mxu0 0
    %378 = vmatprep.subr.bf16.mxu0 0
    %379 = vmatpush1.bf16.msra.mxu0 0
    %380 = vmatprep.subr.bf16.mxu0 0
    %381 = vmatpush1.bf16.msra.mxu0 0
    %382 = vmatprep.subr.bf16.mxu0 0
    %383 = vmatpush1.bf16.msra.mxu0 0
    %384 = vmatprep.subr.bf16.mxu0 0
    %385 = vmatpush1.bf16.msra.mxu0 0
    %386 = vmatprep.subr.bf16.mxu0 0
    %387 = vmatpush1.bf16.msra.mxu0 0
    %388 = vmatprep.subr.bf16.mxu0 0
    %389 = vmatpush1.bf16.msra.mxu0 0
    %390 = vmatprep.subr.bf16.mxu0 0
    %391 = vmatpush1.bf16.msra.mxu0 0
    %392 = vmatprep.subr.bf16.mxu0 0
    %393 = vmatpush1.bf16.msra.mxu0 0
    %394 = vmatprep.subr.bf16.mxu0 0
    %395 = vmatpush1.bf16.msra.mxu0 0
    %396 = vmatprep.subr.bf16.mxu0 0
    %397 = vmatpush1.bf16.msra.mxu0 0
    %398 = vmatprep.subr.bf16.mxu0 0
    %399 = vmatpush1.bf16.msra.mxu0 0
    %400 = vmatprep.subr.bf16.mxu0 0
    %401 = vmatpush1.bf16.msra.mxu0 0
    %402 = vmatprep.mubr.bf16.mxu0 0
    %403 = vmatmul.mubr.bf16.gmra.mrb[0].mxu0 %v347
    %v404 = vpop.f32.mrb[0].mxu0
    %v405 = vadd.f32 0.0, %v404
    %v406 = vpop.f32.mrb[0].mxu0
    %v407 = vpop.f32.mrb[0].mxu0
    %v408 = vadd.f32 0.0, %v407
    %v409 = vpop.f32.mrb[0].mxu0
    %410 = vmatprep.mubr.bf16.mxu0 0
    %411 = vmatmul.mubr.bf16.gmra.mrb[0].mxu0 %v350
    %v412 = vpop.f32.mrb[0].mxu0
    %v413 = vadd.f32 0.0, %v412
    %v414 = vpop.f32.mrb[0].mxu0
    %v415 = vpop.f32.mrb[0].mxu0
    %v416 = vadd.f32 0.0, %v415
    %v417 = vpop.f32.mrb[0].mxu0
    %418 = vmatprep.mubr.bf16.mxu0 0
    %419 = vmatmul.mubr.bf16.gmra.mrb[0].mxu0 %v353
    %v420 = vpop.f32.mrb[0].mxu0
    %v421 = vadd.f32 0.0, %v420
    %v422 = vpop.f32.mrb[0].mxu0
    %v423 = vpop.f32.mrb[0].mxu0
    %v424 = vadd.f32 0.0, %v423
    %v425 = vpop.f32.mrb[0].mxu0
    %426 = vmatprep.mubr.bf16.mxu0 0
    %427 = vmatmul.mubr.bf16.gmra.mrb[0].mxu0 %v356
    %v428 = vpop.f32.mrb[0].mxu0
    %v429 = vadd.f32 0.0, %v428
    %v430 = vpop.f32.mrb[0].mxu0
    %v431 = vpop.f32.mrb[0].mxu0
    %v432 = vadd.f32 0.0, %v431
    %v433 = vpop.f32.mrb[0].mxu0
    %434 = vmatprep.mubr.bf16.mxu0 0
    %435 = vmatmul.mubr.bf16.gmra.mrb[0].mxu0 %v359
    %v436 = vpop.f32.mrb[0].mxu0
    %v437 = vadd.f32 0.0, %v436
    %v438 = vpop.f32.mrb[0].mxu0
    %v439 = vpop.f32.mrb[0].mxu0
    %v440 = vadd.f32 0.0, %v439
    %v441 = vpop.f32.mrb[0].mxu0
    %442 = vmatprep.mubr.bf16.mxu0 0
    %443 = vmatmul.mubr.bf16.gmra.mrb[0].mxu0 %v362
    %v444 = vpop.f32.mrb[0].mxu0
    %v445 = vadd.f32 0.0, %v444
    %v446 = vpop.f32.mrb[0].mxu0
    %v447 = vpop.f32.mrb[0].mxu0
    %v448 = vadd.f32 0.0, %v447
    %v449 = vpop.f32.mrb[0].mxu0
    %450 = vmatprep.mubr.bf16.mxu0 0
    %451 = vmatmul.mubr.bf16.gmra.mrb[0].mxu0 %v365
    %v452 = vpop.f32.mrb[0].mxu0
    %v453 = vadd.f32 0.0, %v452
    %v454 = vpop.f32.mrb[0].mxu0
    %v455 = vpop.f32.mrb[0].mxu0
    %v456 = vadd.f32 0.0, %v455
    %v457 = vpop.f32.mrb[0].mxu0
    %458 = vmatprep.mubr.bf16.mxu0 0
    %459 = vmatmul.mubr.bf16.gmra.mrb[0].mxu0 %v368
    %v460 = vpop.f32.mrb[0].mxu0
    %v461 = vadd.f32 0.0, %v460
    %v462 = vpop.f32.mrb[0].mxu0
    %v463 = vpop.f32.mrb[0].mxu0
    %v464 = vadd.f32 0.0, %v463
    %v465 = vpop.f32.mrb[0].mxu0
    %466 = vdwg.mxu0
    %v483 = vunpack.c.l.b16 %v177
    %v484 = vunpack.c.l.b16 %v179
    %v485 = vunpack.c.l.b16 %v181
    %v486 = vunpack.c.l.b16 %v183
    %v487 = vunpack.c.l.b16 %v185
    %v488 = vunpack.c.l.b16 %v187
    %v489 = vunpack.c.l.b16 %v189
    %v490 = vunpack.c.l.b16 %v191
    %v491 = vunpack.c.l.b16 %v195
    %v492 = vunpack.c.l.b16 %v197
    %v493 = vunpack.c.l.b16 %v199
    %v494 = vunpack.c.l.b16 %v201
    %v495 = vunpack.c.l.b16 %v203
    %v496 = vunpack.c.l.b16 %v205
    %v497 = vunpack.c.l.b16 %v207
    %v498 = vunpack.c.l.b16 %v209
    %v499 = vpack.c.b16 %v484, %v483
    %v500 = vpack.c.b16 %v486, %v485
    %v501 = vpack.c.b16 %v488, %v487
    %v502 = vpack.c.b16 %v490, %v489
    %v503 = vpack.c.b16 %v492, %v491
    %v504 = vpack.c.b16 %v494, %v493
    %v505 = vpack.c.b16 %v496, %v495
    %v506 = vpack.c.b16 %v498, %v497
    %v509 = vunpack.c.l.b16 %v279
    %v510 = vunpack.c.l.b16 %v280
    %v511 = vpack.c.b16 %v510, %v509
    %v514 = vsel %vm345, %v499, 0
    %v517 = vsel %vm345, %v500, 0
    %v520 = vsel %vm345, %v501, 0
    %v523 = vsel %vm345, %v502, 0
    %v526 = vsel %vm345, %v503, 0
    %v529 = vsel %vm345, %v504, 0
    %v532 = vsel %vm345, %v505, 0
    %v535 = vsel %vm345, %v506, 0
    %537 = vmatprep.subr.bf16.mxu0 0
    %538 = vmatpush1.bf16.msra.mxu0 %v511
    %539 = vmatprep.subr.bf16.mxu0 0
    %540 = vmatpush1.bf16.msra.mxu0 0
    %541 = vmatprep.subr.bf16.mxu0 0
    %542 = vmatpush1.bf16.msra.mxu0 0
    %543 = vmatprep.subr.bf16.mxu0 0
    %544 = vmatpush1.bf16.msra.mxu0 0
    %545 = vmatprep.subr.bf16.mxu0 0
    %546 = vmatpush1.bf16.msra.mxu0 0
    %547 = vmatprep.subr.bf16.mxu0 0
    %548 = vmatpush1.bf16.msra.mxu0 0
    %549 = vmatprep.subr.bf16.mxu0 0
    %550 = vmatpush1.bf16.msra.mxu0 0
    %551 = vmatprep.subr.bf16.mxu0 0
    %552 = vmatpush1.bf16.msra.mxu0 0
    %553 = vmatprep.subr.bf16.mxu0 0
    %554 = vmatpush1.bf16.msra.mxu0 0
    %555 = vmatprep.subr.bf16.mxu0 0
    %556 = vmatpush1.bf16.msra.mxu0 0
    %557 = vmatprep.subr.bf16.mxu0 0
    %558 = vmatpush1.bf16.msra.mxu0 0
    %559 = vmatprep.subr.bf16.mxu0 0
    %560 = vmatpush1.bf16.msra.mxu0 0
    %561 = vmatprep.subr.bf16.mxu0 0
    %562 = vmatpush1.bf16.msra.mxu0 0
    %563 = vmatprep.subr.bf16.mxu0 0
    %564 = vmatpush1.bf16.msra.mxu0 0
    %565 = vmatprep.subr.bf16.mxu0 0
    %566 = vmatpush1.bf16.msra.mxu0 0
    %567 = vmatprep.subr.bf16.mxu0 0
    %568 = vmatpush1.bf16.msra.mxu0 0
    %569 = vmatprep.mubr.bf16.mxu0 0
    %570 = vmatmul.mubr.bf16.gmra.mrb[0].mxu0 %v514
    %v571 = vpop.f32.mrb[0].mxu0
    %v572 = vadd.f32 %v405, %v571
    %v573 = vpop.f32.mrb[0].mxu0
    %v574 = vpop.f32.mrb[0].mxu0
    %v575 = vadd.f32 %v408, %v574
    %v576 = vpop.f32.mrb[0].mxu0
    %577 = vmatprep.mubr.bf16.mxu0 0
    %578 = vmatmul.mubr.bf16.gmra.mrb[0].mxu0 %v517
    %v579 = vpop.f32.mrb[0].mxu0
    %v580 = vadd.f32 %v413, %v579
    %v581 = vpop.f32.mrb[0].mxu0
    %v582 = vpop.f32.mrb[0].mxu0
    %v583 = vadd.f32 %v416, %v582
    %v584 = vpop.f32.mrb[0].mxu0
    %585 = vmatprep.mubr.bf16.mxu0 0
    %586 = vmatmul.mubr.bf16.gmra.mrb[0].mxu0 %v520
    %v587 = vpop.f32.mrb[0].mxu0
    %v588 = vadd.f32 %v421, %v587
    %v589 = vpop.f32.mrb[0].mxu0
    %v590 = vpop.f32.mrb[0].mxu0
    %v591 = vadd.f32 %v424, %v590
    %v592 = vpop.f32.mrb[0].mxu0
    %593 = vmatprep.mubr.bf16.mxu0 0
    %594 = vmatmul.mubr.bf16.gmra.mrb[0].mxu0 %v523
    %v595 = vpop.f32.mrb[0].mxu0
    %v596 = vadd.f32 %v429, %v595
    %v597 = vpop.f32.mrb[0].mxu0
    %v598 = vpop.f32.mrb[0].mxu0
    %v599 = vadd.f32 %v432, %v598
    %v600 = vpop.f32.mrb[0].mxu0
    %601 = vmatprep.mubr.bf16.mxu0 0
    %602 = vmatmul.mubr.bf16.gmra.mrb[0].mxu0 %v526
    %v603 = vpop.f32.mrb[0].mxu0
    %v604 = vadd.f32 %v437, %v603
    %v605 = vpop.f32.mrb[0].mxu0
    %v606 = vpop.f32.mrb[0].mxu0
    %v607 = vadd.f32 %v440, %v606
    %v608 = vpop.f32.mrb[0].mxu0
    %609 = vmatprep.mubr.bf16.mxu0 0
    %610 = vmatmul.mubr.bf16.gmra.mrb[0].mxu0 %v529
    %v611 = vpop.f32.mrb[0].mxu0
    %v612 = vadd.f32 %v445, %v611
    %v613 = vpop.f32.mrb[0].mxu0
    %v614 = vpop.f32.mrb[0].mxu0
    %v615 = vadd.f32 %v448, %v614
    %v616 = vpop.f32.mrb[0].mxu0
    %617 = vmatprep.mubr.bf16.mxu0 0
    %618 = vmatmul.mubr.bf16.gmra.mrb[0].mxu0 %v532
    %v619 = vpop.f32.mrb[0].mxu0
    %v620 = vadd.f32 %v453, %v619
    %v621 = vpop.f32.mrb[0].mxu0
    %v622 = vpop.f32.mrb[0].mxu0
    %v623 = vadd.f32 %v456, %v622
    %v624 = vpop.f32.mrb[0].mxu0
    %625 = vmatprep.mubr.bf16.mxu0 0
    %626 = vmatmul.mubr.bf16.gmra.mrb[0].mxu0 %v535
    %v627 = vpop.f32.mrb[0].mxu0
    %v628 = vadd.f32 %v461, %v627
    %v629 = vpop.f32.mrb[0].mxu0
    %v630 = vpop.f32.mrb[0].mxu0
    %v631 = vadd.f32 %v464, %v630
    %v632 = vpop.f32.mrb[0].mxu0
    %633 = vdwg.mxu0
    %vm634 = vsmask.f32 3328
    %vm635 = vsmask.f32 7440
    %vm636 = vmor %vm634, %vm635
    %v638 = vshrl.u32 %v177, 16
    %v640 = vrot.slane %v638, 4
    %v641 = vshll.u32 %v177, 16
    %v643 = vrot.slane %v641, 5
    %v644 = vor.u32 %v640, %v643
    %v645 = vrot.slane %v644, 4
    %v647 = vshll.u32 %v178, 16
    %v649 = vrot.slane %v647, 5
    %v650 = vsel %vm636, %v645, %v649
    %v652 = vshrl.u32 %v179, 16
    %v654 = vrot.slane %v652, 4
    %v655 = vshll.u32 %v179, 16
    %v657 = vrot.slane %v655, 5
    %v658 = vor.u32 %v654, %v657
    %v659 = vrot.slane %v658, 4
    %v661 = vshll.u32 %v180, 16
    %v663 = vrot.slane %v661, 5
    %v664 = vsel %vm636, %v659, %v663
    %v666 = vshrl.u32 %v181, 16
    %v668 = vrot.slane %v666, 4
    %v669 = vshll.u32 %v181, 16
    %v671 = vrot.slane %v669, 5
    %v672 = vor.u32 %v668, %v671
    %v673 = vrot.slane %v672, 4
    %v675 = vshll.u32 %v182, 16
    %v677 = vrot.slane %v675, 5
    %v678 = vsel %vm636, %v673, %v677
    %v680 = vshrl.u32 %v183, 16
    %v682 = vrot.slane %v680, 4
    %v683 = vshll.u32 %v183, 16
    %v685 = vrot.slane %v683, 5
    %v686 = vor.u32 %v682, %v685
    %v687 = vrot.slane %v686, 4
    %v689 = vshll.u32 %v184, 16
    %v691 = vrot.slane %v689, 5
    %v692 = vsel %vm636, %v687, %v691
    %v694 = vshrl.u32 %v185, 16
    %v696 = vrot.slane %v694, 4
    %v697 = vshll.u32 %v185, 16
    %v699 = vrot.slane %v697, 5
    %v700 = vor.u32 %v696, %v699
    %v701 = vrot.slane %v700, 4
    %v703 = vshll.u32 %v186, 16
    %v705 = vrot.slane %v703, 5
    %v706 = vsel %vm636, %v701, %v705
    %v708 = vshrl.u32 %v187, 16
    %v710 = vrot.slane %v708, 4
    %v711 = vshll.u32 %v187, 16
    %v713 = vrot.slane %v711, 5
    %v714 = vor.u32 %v710, %v713
    %v715 = vrot.slane %v714, 4
    %v717 = vshll.u32 %v188, 16
    %v719 = vrot.slane %v717, 5
    %v720 = vsel %vm636, %v715, %v719
    %v722 = vshrl.u32 %v189, 16
    %v724 = vrot.slane %v722, 4
    %v725 = vshll.u32 %v189, 16
    %v727 = vrot.slane %v725, 5
    %v728 = vor.u32 %v724, %v727
    %v729 = vrot.slane %v728, 4
    %v731 = vshll.u32 %v190, 16
    %v733 = vrot.slane %v731, 5
    %v734 = vsel %vm636, %v729, %v733
    %v736 = vshrl.u32 %v191, 16
    %v738 = vrot.slane %v736, 4
    %v739 = vshll.u32 %v191, 16
    %v741 = vrot.slane %v739, 5
    %v742 = vor.u32 %v738, %v741
    %v743 = vrot.slane %v742, 4
    %v745 = vshll.u32 %v192, 16
    %v747 = vrot.slane %v745, 5
    %v748 = vsel %vm636, %v743, %v747
    %v750 = vshrl.u32 %v195, 16
    %v752 = vrot.slane %v750, 4
    %v753 = vshll.u32 %v195, 16
    %v755 = vrot.slane %v753, 5
    %v756 = vor.u32 %v752, %v755
    %v757 = vrot.slane %v756, 4
    %v759 = vshll.u32 %v196, 16
    %v761 = vrot.slane %v759, 5
    %v762 = vsel %vm636, %v757, %v761
    %v764 = vshrl.u32 %v197, 16
    %v766 = vrot.slane %v764, 4
    %v767 = vshll.u32 %v197, 16
    %v769 = vrot.slane %v767, 5
    %v770 = vor.u32 %v766, %v769
    %v771 = vrot.slane %v770, 4
    %v773 = vshll.u32 %v198, 16
    %v775 = vrot.slane %v773, 5
    %v776 = vsel %vm636, %v771, %v775
    %v778 = vshrl.u32 %v199, 16
    %v780 = vrot.slane %v778, 4
    %v781 = vshll.u32 %v199, 16
    %v783 = vrot.slane %v781, 5
    %v784 = vor.u32 %v780, %v783
    %v785 = vrot.slane %v784, 4
    %v787 = vshll.u32 %v200, 16
    %v789 = vrot.slane %v787, 5
    %v790 = vsel %vm636, %v785, %v789
    %v792 = vshrl.u32 %v201, 16
    %v794 = vrot.slane %v792, 4
    %v795 = vshll.u32 %v201, 16
    %v797 = vrot.slane %v795, 5
    %v798 = vor.u32 %v794, %v797
    %v799 = vrot.slane %v798, 4
    %v801 = vshll.u32 %v202, 16
    %v803 = vrot.slane %v801, 5
    %v804 = vsel %vm636, %v799, %v803
    %v806 = vshrl.u32 %v203, 16
    %v808 = vrot.slane %v806, 4
    %v809 = vshll.u32 %v203, 16
    %v811 = vrot.slane %v809, 5
    %v812 = vor.u32 %v808, %v811
    %v813 = vrot.slane %v812, 4
    %v815 = vshll.u32 %v204, 16
    %v817 = vrot.slane %v815, 5
    %v818 = vsel %vm636, %v813, %v817
    %v820 = vshrl.u32 %v205, 16
    %v822 = vrot.slane %v820, 4
    %v823 = vshll.u32 %v205, 16
    %v825 = vrot.slane %v823, 5
    %v826 = vor.u32 %v822, %v825
    %v827 = vrot.slane %v826, 4
    %v829 = vshll.u32 %v206, 16
    %v831 = vrot.slane %v829, 5
    %v832 = vsel %vm636, %v827, %v831
    %v834 = vshrl.u32 %v207, 16
    %v836 = vrot.slane %v834, 4
    %v837 = vshll.u32 %v207, 16
    %v839 = vrot.slane %v837, 5
    %v840 = vor.u32 %v836, %v839
    %v841 = vrot.slane %v840, 4
    %v843 = vshll.u32 %v208, 16
    %v845 = vrot.slane %v843, 5
    %v846 = vsel %vm636, %v841, %v845
    %v848 = vshrl.u32 %v209, 16
    %v850 = vrot.slane %v848, 4
    %v851 = vshll.u32 %v209, 16
    %v853 = vrot.slane %v851, 5
    %v854 = vor.u32 %v850, %v853
    %v855 = vrot.slane %v854, 4
    %v857 = vshll.u32 %v210, 16
    %v859 = vrot.slane %v857, 5
    %v860 = vsel %vm636, %v855, %v859
    %v861 = vunpack.c.l.b16 %v650
    %v862 = vunpack.c.l.b16 %v664
    %v863 = vunpack.c.l.b16 %v678
    %v864 = vunpack.c.l.b16 %v692
    %v865 = vunpack.c.l.b16 %v706
    %v866 = vunpack.c.l.b16 %v720
    %v867 = vunpack.c.l.b16 %v734
    %v868 = vunpack.c.l.b16 %v748
    %v869 = vunpack.c.l.b16 %v762
    %v870 = vunpack.c.l.b16 %v776
    %v871 = vunpack.c.l.b16 %v790
    %v872 = vunpack.c.l.b16 %v804
    %v873 = vunpack.c.l.b16 %v818
    %v874 = vunpack.c.l.b16 %v832
    %v875 = vunpack.c.l.b16 %v846
    %v876 = vunpack.c.l.b16 %v860
    %v877 = vpack.c.b16 %v862, %v861
    %v878 = vpack.c.b16 %v864, %v863
    %v879 = vpack.c.b16 %v866, %v865
    %v880 = vpack.c.b16 %v868, %v867
    %v881 = vpack.c.b16 %v870, %v869
    %v882 = vpack.c.b16 %v872, %v871
    %v883 = vpack.c.b16 %v874, %v873
    %v884 = vpack.c.b16 %v876, %v875
    %v887 = vunpack.c.l.b16 %v283
    %v888 = vunpack.c.l.b16 %v284
    %v889 = vpack.c.b16 %v888, %v887
    %v892 = vsel %vm345, %v877, 0
    %v895 = vsel %vm345, %v878, 0
    %v898 = vsel %vm345, %v879, 0
    %v901 = vsel %vm345, %v880, 0
    %v904 = vsel %vm345, %v881, 0
    %v907 = vsel %vm345, %v882, 0
    %v910 = vsel %vm345, %v883, 0
    %v913 = vsel %vm345, %v884, 0
    %915 = vmatprep.subr.bf16.mxu0 0
    %916 = vmatpush1.bf16.msra.mxu0 %v889
    %917 = vmatprep.subr.bf16.mxu0 0
    %918 = vmatpush1.bf16.msra.mxu0 0
    %919 = vmatprep.subr.bf16.mxu0 0
    %920 = vmatpush1.bf16.msra.mxu0 0
    %921 = vmatprep.subr.bf16.mxu0 0
    %922 = vmatpush1.bf16.msra.mxu0 0
    %923 = vmatprep.subr.bf16.mxu0 0
    %924 = vmatpush1.bf16.msra.mxu0 0
    %925 = vmatprep.subr.bf16.mxu0 0
    %926 = vmatpush1.bf16.msra.mxu0 0
    %927 = vmatprep.subr.bf16.mxu0 0
    %928 = vmatpush1.bf16.msra.mxu0 0
    %929 = vmatprep.subr.bf16.mxu0 0
    %930 = vmatpush1.bf16.msra.mxu0 0
    %931 = vmatprep.subr.bf16.mxu0 0
    %932 = vmatpush1.bf16.msra.mxu0 0
    %933 = vmatprep.subr.bf16.mxu0 0
    %934 = vmatpush1.bf16.msra.mxu0 0
    %935 = vmatprep.subr.bf16.mxu0 0
    %936 = vmatpush1.bf16.msra.mxu0 0
    %937 = vmatprep.subr.bf16.mxu0 0
    %938 = vmatpush1.bf16.msra.mxu0 0
    %939 = vmatprep.subr.bf16.mxu0 0
    %940 = vmatpush1.bf16.msra.mxu0 0
    %941 = vmatprep.subr.bf16.mxu0 0
    %942 = vmatpush1.bf16.msra.mxu0 0
    %943 = vmatprep.subr.bf16.mxu0 0
    %944 = vmatpush1.bf16.msra.mxu0 0
    %945 = vmatprep.subr.bf16.mxu0 0
    %946 = vmatpush1.bf16.msra.mxu0 0
    %947 = vmatprep.mubr.bf16.mxu0 0
    %948 = vmatmul.mubr.bf16.gmra.mrb[0].mxu0 %v892
    %v949 = vpop.f32.mrb[0].mxu0
    %v950 = vadd.f32 0.0, %v949
    %v951 = vpop.f32.mrb[0].mxu0
    %v952 = vpop.f32.mrb[0].mxu0
    %v953 = vadd.f32 0.0, %v952
    %v954 = vpop.f32.mrb[0].mxu0
    %955 = vmatprep.mubr.bf16.mxu0 0
    %956 = vmatmul.mubr.bf16.gmra.mrb[0].mxu0 %v895
    %v957 = vpop.f32.mrb[0].mxu0
    %v958 = vadd.f32 0.0, %v957
    %v959 = vpop.f32.mrb[0].mxu0
    %v960 = vpop.f32.mrb[0].mxu0
    %v961 = vadd.f32 0.0, %v960
    %v962 = vpop.f32.mrb[0].mxu0
    %963 = vmatprep.mubr.bf16.mxu0 0
    %964 = vmatmul.mubr.bf16.gmra.mrb[0].mxu0 %v898
    %v965 = vpop.f32.mrb[0].mxu0
    %v966 = vadd.f32 0.0, %v965
    %v967 = vpop.f32.mrb[0].mxu0
    %v968 = vpop.f32.mrb[0].mxu0
    %v969 = vadd.f32 0.0, %v968
    %v970 = vpop.f32.mrb[0].mxu0
    %971 = vmatprep.mubr.bf16.mxu0 0
    %972 = vmatmul.mubr.bf16.gmra.mrb[0].mxu0 %v901
    %v973 = vpop.f32.mrb[0].mxu0
    %v974 = vadd.f32 0.0, %v973
    %v975 = vpop.f32.mrb[0].mxu0
    %v976 = vpop.f32.mrb[0].mxu0
    %v977 = vadd.f32 0.0, %v976
    %v978 = vpop.f32.mrb[0].mxu0
    %979 = vmatprep.mubr.bf16.mxu0 0
    %980 = vmatmul.mubr.bf16.gmra.mrb[0].mxu0 %v904
    %v981 = vpop.f32.mrb[0].mxu0
    %v982 = vadd.f32 0.0, %v981
    %v983 = vpop.f32.mrb[0].mxu0
    %v984 = vpop.f32.mrb[0].mxu0
    %v985 = vadd.f32 0.0, %v984
    %v986 = vpop.f32.mrb[0].mxu0
    %987 = vmatprep.mubr.bf16.mxu0 0
    %988 = vmatmul.mubr.bf16.gmra.mrb[0].mxu0 %v907
    %v989 = vpop.f32.mrb[0].mxu0
    %v990 = vadd.f32 0.0, %v989
    %v991 = vpop.f32.mrb[0].mxu0
    %v992 = vpop.f32.mrb[0].mxu0
    %v993 = vadd.f32 0.0, %v992
    %v994 = vpop.f32.mrb[0].mxu0
    %995 = vmatprep.mubr.bf16.mxu0 0
    %996 = vmatmul.mubr.bf16.gmra.mrb[0].mxu0 %v910
    %v997 = vpop.f32.mrb[0].mxu0
    %v998 = vadd.f32 0.0, %v997
    %v999 = vpop.f32.mrb[0].mxu0
    %v1000 = vpop.f32.mrb[0].mxu0
    %v1001 = vadd.f32 0.0, %v1000
    %v1002 = vpop.f32.mrb[0].mxu0
    %1003 = vmatprep.mubr.bf16.mxu0 0
    %1004 = vmatmul.mubr.bf16.gmra.mrb[0].mxu0 %v913
    %v1005 = vpop.f32.mrb[0].mxu0
    %v1006 = vadd.f32 0.0, %v1005
    %v1007 = vpop.f32.mrb[0].mxu0
    %v1008 = vpop.f32.mrb[0].mxu0
    %v1009 = vadd.f32 0.0, %v1008
    %v1010 = vpop.f32.mrb[0].mxu0
    %1011 = vdwg.mxu0
    %v1012 = vadd.f32 %v572, %v950
    %v1013 = vadd.f32 %v575, %v953
    %v1014 = vadd.f32 %v580, %v958
    %v1015 = vadd.f32 %v583, %v961
    %v1016 = vadd.f32 %v588, %v966
    %v1017 = vadd.f32 %v591, %v969
    %v1018 = vadd.f32 %v596, %v974
    %v1019 = vadd.f32 %v599, %v977
    %v1020 = vadd.f32 %v604, %v982
    %v1021 = vadd.f32 %v607, %v985
    %v1022 = vadd.f32 %v612, %v990
    %v1023 = vadd.f32 %v615, %v993
    %v1024 = vadd.f32 %v620, %v998
    %v1025 = vadd.f32 %v623, %v1001
    %v1026 = vadd.f32 %v628, %v1006
    %v1027 = vadd.f32 %v631, %v1009
    %v1044 = vunpack.c.l.b16 %v231
    %v1045 = vunpack.c.l.b16 %v233
    %v1046 = vunpack.c.l.b16 %v235
    %v1047 = vunpack.c.l.b16 %v237
    %v1048 = vunpack.c.l.b16 %v239
    %v1049 = vunpack.c.l.b16 %v241
    %v1050 = vunpack.c.l.b16 %v243
    %v1051 = vunpack.c.l.b16 %v245
    %v1052 = vunpack.c.l.b16 %v247
    %v1053 = vunpack.c.l.b16 %v249
    %v1054 = vunpack.c.l.b16 %v251
    %v1055 = vunpack.c.l.b16 %v253
    %v1056 = vunpack.c.l.b16 %v255
    %v1057 = vunpack.c.l.b16 %v257
    %v1058 = vunpack.c.l.b16 %v259
    %v1059 = vunpack.c.l.b16 %v261
    %v1060 = vpack.c.b16 %v1045, %v1044
    %v1061 = vpack.c.b16 %v1047, %v1046
    %v1062 = vpack.c.b16 %v1049, %v1048
    %v1063 = vpack.c.b16 %v1051, %v1050
    %v1064 = vpack.c.b16 %v1053, %v1052
    %v1065 = vpack.c.b16 %v1055, %v1054
    %v1066 = vpack.c.b16 %v1057, %v1056
    %v1067 = vpack.c.b16 %v1059, %v1058
    %v1070 = vunpack.c.l.b16 %v285
    %v1071 = vunpack.c.l.b16 %v286
    %v1072 = vpack.c.b16 %v1071, %v1070
    %v1075 = vsel %vm345, %v1060, 0
    %v1078 = vsel %vm345, %v1061, 0
    %v1081 = vsel %vm345, %v1062, 0
    %v1084 = vsel %vm345, %v1063, 0
    %v1087 = vsel %vm345, %v1064, 0
    %v1090 = vsel %vm345, %v1065, 0
    %v1093 = vsel %vm345, %v1066, 0
    %v1096 = vsel %vm345, %v1067, 0
    %1098 = vmatprep.subr.bf16.mxu0 0
    %1099 = vmatpush1.bf16.msra.mxu0 %v1072
    %1100 = vmatprep.subr.bf16.mxu0 0
    %1101 = vmatpush1.bf16.msra.mxu0 0
    %1102 = vmatprep.subr.bf16.mxu0 0
    %1103 = vmatpush1.bf16.msra.mxu0 0
    %1104 = vmatprep.subr.bf16.mxu0 0
    %1105 = vmatpush1.bf16.msra.mxu0 0
    %1106 = vmatprep.subr.bf16.mxu0 0
    %1107 = vmatpush1.bf16.msra.mxu0 0
    %1108 = vmatprep.subr.bf16.mxu0 0
    %1109 = vmatpush1.bf16.msra.mxu0 0
    %1110 = vmatprep.subr.bf16.mxu0 0
    %1111 = vmatpush1.bf16.msra.mxu0 0
    %1112 = vmatprep.subr.bf16.mxu0 0
    %1113 = vmatpush1.bf16.msra.mxu0 0
    %1114 = vmatprep.subr.bf16.mxu0 0
    %1115 = vmatpush1.bf16.msra.mxu0 0
    %1116 = vmatprep.subr.bf16.mxu0 0
    %1117 = vmatpush1.bf16.msra.mxu0 0
    %1118 = vmatprep.subr.bf16.mxu0 0
    %1119 = vmatpush1.bf16.msra.mxu0 0
    %1120 = vmatprep.subr.bf16.mxu0 0
    %1121 = vmatpush1.bf16.msra.mxu0 0
    %1122 = vmatprep.subr.bf16.mxu0 0
    %1123 = vmatpush1.bf16.msra.mxu0 0
    %1124 = vmatprep.subr.bf16.mxu0 0
    %1125 = vmatpush1.bf16.msra.mxu0 0
    %1126 = vmatprep.subr.bf16.mxu0 0
    %1127 = vmatpush1.bf16.msra.mxu0 0
    %1128 = vmatprep.subr.bf16.mxu0 0
    %1129 = vmatpush1.bf16.msra.mxu0 0
    %1130 = vmatprep.mubr.bf16.mxu0 0
    %1131 = vmatmul.mubr.bf16.gmra.mrb[0].mxu0 %v1075
    %v1132 = vpop.f32.mrb[0].mxu0
    %v1133 = vadd.f32 0.0, %v1132
    %v1134 = vpop.f32.mrb[0].mxu0
    %v1135 = vpop.f32.mrb[0].mxu0
    %v1136 = vadd.f32 0.0, %v1135
    %v1137 = vpop.f32.mrb[0].mxu0
    %1138 = vmatprep.mubr.bf16.mxu0 0
    %1139 = vmatmul.mubr.bf16.gmra.mrb[0].mxu0 %v1078
    %v1140 = vpop.f32.mrb[0].mxu0
    %v1141 = vadd.f32 0.0, %v1140
    %v1142 = vpop.f32.mrb[0].mxu0
    %v1143 = vpop.f32.mrb[0].mxu0
    %v1144 = vadd.f32 0.0, %v1143
    %v1145 = vpop.f32.mrb[0].mxu0
    %1146 = vmatprep.mubr.bf16.mxu0 0
    %1147 = vmatmul.mubr.bf16.gmra.mrb[0].mxu0 %v1081
    %v1148 = vpop.f32.mrb[0].mxu0
    %v1149 = vadd.f32 0.0, %v1148
    %v1150 = vpop.f32.mrb[0].mxu0
    %v1151 = vpop.f32.mrb[0].mxu0
    %v1152 = vadd.f32 0.0, %v1151
    %v1153 = vpop.f32.mrb[0].mxu0
    %1154 = vmatprep.mubr.bf16.mxu0 0
    %1155 = vmatmul.mubr.bf16.gmra.mrb[0].mxu0 %v1084
    %v1156 = vpop.f32.mrb[0].mxu0
    %v1157 = vadd.f32 0.0, %v1156
    %v1158 = vpop.f32.mrb[0].mxu0
    %v1159 = vpop.f32.mrb[0].mxu0
    %v1160 = vadd.f32 0.0, %v1159
    %v1161 = vpop.f32.mrb[0].mxu0
    %1162 = vmatprep.mubr.bf16.mxu0 0
    %1163 = vmatmul.mubr.bf16.gmra.mrb[0].mxu0 %v1087
    %v1164 = vpop.f32.mrb[0].mxu0
    %v1165 = vadd.f32 0.0, %v1164
    %v1166 = vpop.f32.mrb[0].mxu0
    %v1167 = vpop.f32.mrb[0].mxu0
    %v1168 = vadd.f32 0.0, %v1167
    %v1169 = vpop.f32.mrb[0].mxu0
    %1170 = vmatprep.mubr.bf16.mxu0 0
    %1171 = vmatmul.mubr.bf16.gmra.mrb[0].mxu0 %v1090
    %v1172 = vpop.f32.mrb[0].mxu0
    %v1173 = vadd.f32 0.0, %v1172
    %v1174 = vpop.f32.mrb[0].mxu0
    %v1175 = vpop.f32.mrb[0].mxu0
    %v1176 = vadd.f32 0.0, %v1175
    %v1177 = vpop.f32.mrb[0].mxu0
    %1178 = vmatprep.mubr.bf16.mxu0 0
    %1179 = vmatmul.mubr.bf16.gmra.mrb[0].mxu0 %v1093
    %v1180 = vpop.f32.mrb[0].mxu0
    %v1181 = vadd.f32 0.0, %v1180
    %v1182 = vpop.f32.mrb[0].mxu0
    %v1183 = vpop.f32.mrb[0].mxu0
    %v1184 = vadd.f32 0.0, %v1183
    %v1185 = vpop.f32.mrb[0].mxu0
    %1186 = vmatprep.mubr.bf16.mxu0 0
    %1187 = vmatmul.mubr.bf16.gmra.mrb[0].mxu0 %v1096
    %v1188 = vpop.f32.mrb[0].mxu0
    %v1189 = vadd.f32 0.0, %v1188
    %v1190 = vpop.f32.mrb[0].mxu0
    %v1191 = vpop.f32.mrb[0].mxu0
    %v1192 = vadd.f32 0.0, %v1191
    %v1193 = vpop.f32.mrb[0].mxu0
    %1194 = vdwg.mxu0
    %v1195 = vadd.f32 %v1012, %v1133
    %v1196 = vadd.f32 %v1013, %v1136
    %v1197 = vadd.f32 %v1014, %v1141
    %v1198 = vadd.f32 %v1015, %v1144
    %v1199 = vadd.f32 %v1016, %v1149
    %v1200 = vadd.f32 %v1017, %v1152
    %v1201 = vadd.f32 %v1018, %v1157
    %v1202 = vadd.f32 %v1019, %v1160
    %v1203 = vadd.f32 %v1020, %v1165
    %v1204 = vadd.f32 %v1021, %v1168
    %v1205 = vadd.f32 %v1022, %v1173
    %v1206 = vadd.f32 %v1023, %v1176
    %v1207 = vadd.f32 %v1024, %v1181
    %v1208 = vadd.f32 %v1025, %v1184
    %v1209 = vadd.f32 %v1026, %v1189
    %v1210 = vadd.f32 %v1027, %v1192
    %v1227 = vunpack.c.l.b16 %v263
    %v1228 = vunpack.c.l.b16 %v264
    %v1229 = vunpack.c.l.b16 %v265
    %v1230 = vunpack.c.l.b16 %v266
    %v1231 = vunpack.c.l.b16 %v267
    %v1232 = vunpack.c.l.b16 %v268
    %v1233 = vunpack.c.l.b16 %v269
    %v1234 = vunpack.c.l.b16 %v270
    %v1235 = vunpack.c.l.b16 %v271
    %v1236 = vunpack.c.l.b16 %v272
    %v1237 = vunpack.c.l.b16 %v273
    %v1238 = vunpack.c.l.b16 %v274
    %v1239 = vunpack.c.l.b16 %v275
    %v1240 = vunpack.c.l.b16 %v276
    %v1241 = vunpack.c.l.b16 %v277
    %v1242 = vunpack.c.l.b16 %v278
    %v1243 = vpack.c.b16 %v1228, %v1227
    %v1244 = vpack.c.b16 %v1230, %v1229
    %v1245 = vpack.c.b16 %v1232, %v1231
    %v1246 = vpack.c.b16 %v1234, %v1233
    %v1247 = vpack.c.b16 %v1236, %v1235
    %v1248 = vpack.c.b16 %v1238, %v1237
    %v1249 = vpack.c.b16 %v1240, %v1239
    %v1250 = vpack.c.b16 %v1242, %v1241
    %v1253 = vunpack.c.l.b16 %v287
    %v1254 = vunpack.c.l.b16 %v288
    %v1255 = vpack.c.b16 %v1254, %v1253
    %v1258 = vsel %vm345, %v1243, 0
    %v1261 = vsel %vm345, %v1244, 0
    %v1264 = vsel %vm345, %v1245, 0
    %v1267 = vsel %vm345, %v1246, 0
    %v1270 = vsel %vm345, %v1247, 0
    %v1273 = vsel %vm345, %v1248, 0
    %v1276 = vsel %vm345, %v1249, 0
    %v1279 = vsel %vm345, %v1250, 0
    %1281 = vmatprep.subr.bf16.mxu0 0
    %1282 = vmatpush1.bf16.msra.mxu0 %v1255
    %1283 = vmatprep.subr.bf16.mxu0 0
    %1284 = vmatpush1.bf16.msra.mxu0 0
    %1285 = vmatprep.subr.bf16.mxu0 0
    %1286 = vmatpush1.bf16.msra.mxu0 0
    %1287 = vmatprep.subr.bf16.mxu0 0
    %1288 = vmatpush1.bf16.msra.mxu0 0
    %1289 = vmatprep.subr.bf16.mxu0 0
    %1290 = vmatpush1.bf16.msra.mxu0 0
    %1291 = vmatprep.subr.bf16.mxu0 0
    %1292 = vmatpush1.bf16.msra.mxu0 0
    %1293 = vmatprep.subr.bf16.mxu0 0
    %1294 = vmatpush1.bf16.msra.mxu0 0
    %1295 = vmatprep.subr.bf16.mxu0 0
    %1296 = vmatpush1.bf16.msra.mxu0 0
    %1297 = vmatprep.subr.bf16.mxu0 0
    %1298 = vmatpush1.bf16.msra.mxu0 0
    %1299 = vmatprep.subr.bf16.mxu0 0
    %1300 = vmatpush1.bf16.msra.mxu0 0
    %1301 = vmatprep.subr.bf16.mxu0 0
    %1302 = vmatpush1.bf16.msra.mxu0 0
    %1303 = vmatprep.subr.bf16.mxu0 0
    %1304 = vmatpush1.bf16.msra.mxu0 0
    %1305 = vmatprep.subr.bf16.mxu0 0
    %1306 = vmatpush1.bf16.msra.mxu0 0
    %1307 = vmatprep.subr.bf16.mxu0 0
    %1308 = vmatpush1.bf16.msra.mxu0 0
    %1309 = vmatprep.subr.bf16.mxu0 0
    %1310 = vmatpush1.bf16.msra.mxu0 0
    %1311 = vmatprep.subr.bf16.mxu0 0
    %1312 = vmatpush1.bf16.msra.mxu0 0
    %1313 = vmatprep.mubr.bf16.mxu0 0
    %1314 = vmatmul.mubr.bf16.gmra.mrb[0].mxu0 %v1258
    %v1315 = vpop.f32.mrb[0].mxu0
    %v1316 = vadd.f32 0.0, %v1315
    %v1317 = vpop.f32.mrb[0].mxu0
    %v1318 = vpop.f32.mrb[0].mxu0
    %v1319 = vadd.f32 0.0, %v1318
    %v1320 = vpop.f32.mrb[0].mxu0
    %1321 = vmatprep.mubr.bf16.mxu0 0
    %1322 = vmatmul.mubr.bf16.gmra.mrb[0].mxu0 %v1261
    %v1323 = vpop.f32.mrb[0].mxu0
    %v1324 = vadd.f32 0.0, %v1323
    %v1325 = vpop.f32.mrb[0].mxu0
    %v1326 = vpop.f32.mrb[0].mxu0
    %v1327 = vadd.f32 0.0, %v1326
    %v1328 = vpop.f32.mrb[0].mxu0
    %1329 = vmatprep.mubr.bf16.mxu0 0
    %1330 = vmatmul.mubr.bf16.gmra.mrb[0].mxu0 %v1264
    %v1331 = vpop.f32.mrb[0].mxu0
    %v1332 = vadd.f32 0.0, %v1331
    %v1333 = vpop.f32.mrb[0].mxu0
    %v1334 = vpop.f32.mrb[0].mxu0
    %v1335 = vadd.f32 0.0, %v1334
    %v1336 = vpop.f32.mrb[0].mxu0
    %1337 = vmatprep.mubr.bf16.mxu0 0
    %1338 = vmatmul.mubr.bf16.gmra.mrb[0].mxu0 %v1267
    %v1339 = vpop.f32.mrb[0].mxu0
    %v1340 = vadd.f32 0.0, %v1339
    %v1341 = vpop.f32.mrb[0].mxu0
    %v1342 = vpop.f32.mrb[0].mxu0
    %v1343 = vadd.f32 0.0, %v1342
    %v1344 = vpop.f32.mrb[0].mxu0
    %1345 = vmatprep.mubr.bf16.mxu0 0
    %1346 = vmatmul.mubr.bf16.gmra.mrb[0].mxu0 %v1270
    %v1347 = vpop.f32.mrb[0].mxu0
    %v1348 = vadd.f32 0.0, %v1347
    %v1349 = vpop.f32.mrb[0].mxu0
    %v1350 = vpop.f32.mrb[0].mxu0
    %v1351 = vadd.f32 0.0, %v1350
    %v1352 = vpop.f32.mrb[0].mxu0
    %1353 = vmatprep.mubr.bf16.mxu0 0
    %1354 = vmatmul.mubr.bf16.gmra.mrb[0].mxu0 %v1273
    %v1355 = vpop.f32.mrb[0].mxu0
    %v1356 = vadd.f32 0.0, %v1355
    %v1357 = vpop.f32.mrb[0].mxu0
    %v1358 = vpop.f32.mrb[0].mxu0
    %v1359 = vadd.f32 0.0, %v1358
    %v1360 = vpop.f32.mrb[0].mxu0
    %1361 = vmatprep.mubr.bf16.mxu0 0
    %1362 = vmatmul.mubr.bf16.gmra.mrb[0].mxu0 %v1276
    %v1363 = vpop.f32.mrb[0].mxu0
    %v1364 = vadd.f32 0.0, %v1363
    %v1365 = vpop.f32.mrb[0].mxu0
    %v1366 = vpop.f32.mrb[0].mxu0
    %v1367 = vadd.f32 0.0, %v1366
    %v1368 = vpop.f32.mrb[0].mxu0
    %1369 = vmatprep.mubr.bf16.mxu0 0
    %1370 = vmatmul.mubr.bf16.gmra.mrb[0].mxu0 %v1279
    %v1371 = vpop.f32.mrb[0].mxu0
    %v1372 = vadd.f32 0.0, %v1371
    %v1373 = vpop.f32.mrb[0].mxu0
    %v1374 = vpop.f32.mrb[0].mxu0
    %v1375 = vadd.f32 0.0, %v1374
    %v1376 = vpop.f32.mrb[0].mxu0
    %1377 = vdwg.mxu0
    %v1378 = vadd.f32 %v1195, %v1316
    %v1379 = vadd.f32 %v1196, %v1319
    %v1380 = vadd.f32 %v1197, %v1324
    %v1381 = vadd.f32 %v1198, %v1327
    %v1382 = vadd.f32 %v1199, %v1332
    %v1383 = vadd.f32 %v1200, %v1335
    %v1384 = vadd.f32 %v1201, %v1340
    %v1385 = vadd.f32 %v1202, %v1343
    %v1386 = vadd.f32 %v1203, %v1348
    %v1387 = vadd.f32 %v1204, %v1351
    %v1388 = vadd.f32 %v1205, %v1356
    %v1389 = vadd.f32 %v1206, %v1359
    %v1390 = vadd.f32 %v1207, %v1364
    %v1391 = vadd.f32 %v1208, %v1367
    %v1392 = vadd.f32 %v1209, %v1372
    %v1393 = vadd.f32 %v1210, %v1375
    %v1395 = vshrl.u32 %v231, 16
    %v1397 = vrot.slane %v1395, 4
    %v1398 = vshll.u32 %v231, 16
    %v1400 = vrot.slane %v1398, 5
    %v1401 = vor.u32 %v1397, %v1400
    %v1402 = vrot.slane %v1401, 4
    %v1404 = vshll.u32 %v232, 16
    %v1406 = vrot.slane %v1404, 5
    %v1407 = vsel %vm636, %v1402, %v1406
    %v1409 = vshrl.u32 %v233, 16
    %v1411 = vrot.slane %v1409, 4
    %v1412 = vshll.u32 %v233, 16
    %v1414 = vrot.slane %v1412, 5
    %v1415 = vor.u32 %v1411, %v1414
    %v1416 = vrot.slane %v1415, 4
    %v1418 = vshll.u32 %v234, 16
    %v1420 = vrot.slane %v1418, 5
    %v1421 = vsel %vm636, %v1416, %v1420
    %v1423 = vshrl.u32 %v235, 16
    %v1425 = vrot.slane %v1423, 4
    %v1426 = vshll.u32 %v235, 16
    %v1428 = vrot.slane %v1426, 5
    %v1429 = vor.u32 %v1425, %v1428
    %v1430 = vrot.slane %v1429, 4
    %v1432 = vshll.u32 %v236, 16
    %v1434 = vrot.slane %v1432, 5
    %v1435 = vsel %vm636, %v1430, %v1434
    %v1437 = vshrl.u32 %v237, 16
    %v1439 = vrot.slane %v1437, 4
    %v1440 = vshll.u32 %v237, 16
    %v1442 = vrot.slane %v1440, 5
    %v1443 = vor.u32 %v1439, %v1442
    %v1444 = vrot.slane %v1443, 4
    %v1446 = vshll.u32 %v238, 16
    %v1448 = vrot.slane %v1446, 5
    %v1449 = vsel %vm636, %v1444, %v1448
    %v1451 = vshrl.u32 %v239, 16
    %v1453 = vrot.slane %v1451, 4
    %v1454 = vshll.u32 %v239, 16
    %v1456 = vrot.slane %v1454, 5
    %v1457 = vor.u32 %v1453, %v1456
    %v1458 = vrot.slane %v1457, 4
    %v1460 = vshll.u32 %v240, 16
    %v1462 = vrot.slane %v1460, 5
    %v1463 = vsel %vm636, %v1458, %v1462
    %v1465 = vshrl.u32 %v241, 16
    %v1467 = vrot.slane %v1465, 4
    %v1468 = vshll.u32 %v241, 16
    %v1470 = vrot.slane %v1468, 5
    %v1471 = vor.u32 %v1467, %v1470
    %v1472 = vrot.slane %v1471, 4
    %v1474 = vshll.u32 %v242, 16
    %v1476 = vrot.slane %v1474, 5
    %v1477 = vsel %vm636, %v1472, %v1476
    %v1479 = vshrl.u32 %v243, 16
    %v1481 = vrot.slane %v1479, 4
    %v1482 = vshll.u32 %v243, 16
    %v1484 = vrot.slane %v1482, 5
    %v1485 = vor.u32 %v1481, %v1484
    %v1486 = vrot.slane %v1485, 4
    %v1488 = vshll.u32 %v244, 16
    %v1490 = vrot.slane %v1488, 5
    %v1491 = vsel %vm636, %v1486, %v1490
    %v1493 = vshrl.u32 %v245, 16
    %v1495 = vrot.slane %v1493, 4
    %v1496 = vshll.u32 %v245, 16
    %v1498 = vrot.slane %v1496, 5
    %v1499 = vor.u32 %v1495, %v1498
    %v1500 = vrot.slane %v1499, 4
    %v1502 = vshll.u32 %v246, 16
    %v1504 = vrot.slane %v1502, 5
    %v1505 = vsel %vm636, %v1500, %v1504
    %v1507 = vshrl.u32 %v247, 16
    %v1509 = vrot.slane %v1507, 4
    %v1510 = vshll.u32 %v247, 16
    %v1512 = vrot.slane %v1510, 5
    %v1513 = vor.u32 %v1509, %v1512
    %v1514 = vrot.slane %v1513, 4
    %v1516 = vshll.u32 %v248, 16
    %v1518 = vrot.slane %v1516, 5
    %v1519 = vsel %vm636, %v1514, %v1518
    %v1521 = vshrl.u32 %v249, 16
    %v1523 = vrot.slane %v1521, 4
    %v1524 = vshll.u32 %v249, 16
    %v1526 = vrot.slane %v1524, 5
    %v1527 = vor.u32 %v1523, %v1526
    %v1528 = vrot.slane %v1527, 4
    %v1530 = vshll.u32 %v250, 16
    %v1532 = vrot.slane %v1530, 5
    %v1533 = vsel %vm636, %v1528, %v1532
    %v1535 = vshrl.u32 %v251, 16
    %v1537 = vrot.slane %v1535, 4
    %v1538 = vshll.u32 %v251, 16
    %v1540 = vrot.slane %v1538, 5
    %v1541 = vor.u32 %v1537, %v1540
    %v1542 = vrot.slane %v1541, 4
    %v1544 = vshll.u32 %v252, 16
    %v1546 = vrot.slane %v1544, 5
    %v1547 = vsel %vm636, %v1542, %v1546
    %v1549 = vshrl.u32 %v253, 16
    %v1551 = vrot.slane %v1549, 4
    %v1552 = vshll.u32 %v253, 16
    %v1554 = vrot.slane %v1552, 5
    %v1555 = vor.u32 %v1551, %v1554
    %v1556 = vrot.slane %v1555, 4
    %v1558 = vshll.u32 %v254, 16
    %v1560 = vrot.slane %v1558, 5
    %v1561 = vsel %vm636, %v1556, %v1560
    %v1563 = vshrl.u32 %v255, 16
    %v1565 = vrot.slane %v1563, 4
    %v1566 = vshll.u32 %v255, 16
    %v1568 = vrot.slane %v1566, 5
    %v1569 = vor.u32 %v1565, %v1568
    %v1570 = vrot.slane %v1569, 4
    %v1572 = vshll.u32 %v256, 16
    %v1574 = vrot.slane %v1572, 5
    %v1575 = vsel %vm636, %v1570, %v1574
    %v1577 = vshrl.u32 %v257, 16
    %v1579 = vrot.slane %v1577, 4
    %v1580 = vshll.u32 %v257, 16
    %v1582 = vrot.slane %v1580, 5
    %v1583 = vor.u32 %v1579, %v1582
    %v1584 = vrot.slane %v1583, 4
    %v1586 = vshll.u32 %v258, 16
    %v1588 = vrot.slane %v1586, 5
    %v1589 = vsel %vm636, %v1584, %v1588
    %v1591 = vshrl.u32 %v259, 16
    %v1593 = vrot.slane %v1591, 4
    %v1594 = vshll.u32 %v259, 16
    %v1596 = vrot.slane %v1594, 5
    %v1597 = vor.u32 %v1593, %v1596
    %v1598 = vrot.slane %v1597, 4
    %v1600 = vshll.u32 %v260, 16
    %v1602 = vrot.slane %v1600, 5
    %v1603 = vsel %vm636, %v1598, %v1602
    %v1605 = vshrl.u32 %v261, 16
    %v1607 = vrot.slane %v1605, 4
    %v1608 = vshll.u32 %v261, 16
    %v1610 = vrot.slane %v1608, 5
    %v1611 = vor.u32 %v1607, %v1610
    %v1612 = vrot.slane %v1611, 4
    %v1614 = vshll.u32 %v262, 16
    %v1616 = vrot.slane %v1614, 5
    %v1617 = vsel %vm636, %v1612, %v1616
    %v1618 = vunpack.c.l.b16 %v1407
    %v1619 = vunpack.c.l.b16 %v1421
    %v1620 = vunpack.c.l.b16 %v1435
    %v1621 = vunpack.c.l.b16 %v1449
    %v1622 = vunpack.c.l.b16 %v1463
    %v1623 = vunpack.c.l.b16 %v1477
    %v1624 = vunpack.c.l.b16 %v1491
    %v1625 = vunpack.c.l.b16 %v1505
    %v1626 = vunpack.c.l.b16 %v1519
    %v1627 = vunpack.c.l.b16 %v1533
    %v1628 = vunpack.c.l.b16 %v1547
    %v1629 = vunpack.c.l.b16 %v1561
    %v1630 = vunpack.c.l.b16 %v1575
    %v1631 = vunpack.c.l.b16 %v1589
    %v1632 = vunpack.c.l.b16 %v1603
    %v1633 = vunpack.c.l.b16 %v1617
    %v1634 = vpack.c.b16 %v1619, %v1618
    %v1635 = vpack.c.b16 %v1621, %v1620
    %v1636 = vpack.c.b16 %v1623, %v1622
    %v1637 = vpack.c.b16 %v1625, %v1624
    %v1638 = vpack.c.b16 %v1627, %v1626
    %v1639 = vpack.c.b16 %v1629, %v1628
    %v1640 = vpack.c.b16 %v1631, %v1630
    %v1641 = vpack.c.b16 %v1633, %v1632
    %v1644 = vunpack.c.l.b16 %v289
    %v1645 = vunpack.c.l.b16 %v290
    %v1646 = vpack.c.b16 %v1645, %v1644
    %v1649 = vsel %vm345, %v1634, 0
    %v1652 = vsel %vm345, %v1635, 0
    %v1655 = vsel %vm345, %v1636, 0
    %v1658 = vsel %vm345, %v1637, 0
    %v1661 = vsel %vm345, %v1638, 0
    %v1664 = vsel %vm345, %v1639, 0
    %v1667 = vsel %vm345, %v1640, 0
    %v1670 = vsel %vm345, %v1641, 0
    %1672 = vmatprep.subr.bf16.mxu0 0
    %1673 = vmatpush1.bf16.msra.mxu0 %v1646
    %1674 = vmatprep.subr.bf16.mxu0 0
    %1675 = vmatpush1.bf16.msra.mxu0 0
    %1676 = vmatprep.subr.bf16.mxu0 0
    %1677 = vmatpush1.bf16.msra.mxu0 0
    %1678 = vmatprep.subr.bf16.mxu0 0
    %1679 = vmatpush1.bf16.msra.mxu0 0
    %1680 = vmatprep.subr.bf16.mxu0 0
    %1681 = vmatpush1.bf16.msra.mxu0 0
    %1682 = vmatprep.subr.bf16.mxu0 0
    %1683 = vmatpush1.bf16.msra.mxu0 0
    %1684 = vmatprep.subr.bf16.mxu0 0
    %1685 = vmatpush1.bf16.msra.mxu0 0
    %1686 = vmatprep.subr.bf16.mxu0 0
    %1687 = vmatpush1.bf16.msra.mxu0 0
    %1688 = vmatprep.subr.bf16.mxu0 0
    %1689 = vmatpush1.bf16.msra.mxu0 0
    %1690 = vmatprep.subr.bf16.mxu0 0
    %1691 = vmatpush1.bf16.msra.mxu0 0
    %1692 = vmatprep.subr.bf16.mxu0 0
    %1693 = vmatpush1.bf16.msra.mxu0 0
    %1694 = vmatprep.subr.bf16.mxu0 0
    %1695 = vmatpush1.bf16.msra.mxu0 0
    %1696 = vmatprep.subr.bf16.mxu0 0
    %1697 = vmatpush1.bf16.msra.mxu0 0
    %1698 = vmatprep.subr.bf16.mxu0 0
    %1699 = vmatpush1.bf16.msra.mxu0 0
    %1700 = vmatprep.subr.bf16.mxu0 0
    %1701 = vmatpush1.bf16.msra.mxu0 0
    %1702 = vmatprep.subr.bf16.mxu0 0
    %1703 = vmatpush1.bf16.msra.mxu0 0
    %1704 = vmatprep.mubr.bf16.mxu0 0
    %1705 = vmatmul.mubr.bf16.gmra.mrb[0].mxu0 %v1649
    %v1706 = vpop.f32.mrb[0].mxu0
    %v1707 = vadd.f32 0.0, %v1706
    %v1708 = vpop.f32.mrb[0].mxu0
    %v1709 = vpop.f32.mrb[0].mxu0
    %v1710 = vadd.f32 0.0, %v1709
    %v1711 = vpop.f32.mrb[0].mxu0
    %1712 = vmatprep.mubr.bf16.mxu0 0
    %1713 = vmatmul.mubr.bf16.gmra.mrb[0].mxu0 %v1652
    %v1714 = vpop.f32.mrb[0].mxu0
    %v1715 = vadd.f32 0.0, %v1714
    %v1716 = vpop.f32.mrb[0].mxu0
    %v1717 = vpop.f32.mrb[0].mxu0
    %v1718 = vadd.f32 0.0, %v1717
    %v1719 = vpop.f32.mrb[0].mxu0
    %1720 = vmatprep.mubr.bf16.mxu0 0
    %1721 = vmatmul.mubr.bf16.gmra.mrb[0].mxu0 %v1655
    %v1722 = vpop.f32.mrb[0].mxu0
    %v1723 = vadd.f32 0.0, %v1722
    %v1724 = vpop.f32.mrb[0].mxu0
    %v1725 = vpop.f32.mrb[0].mxu0
    %v1726 = vadd.f32 0.0, %v1725
    %v1727 = vpop.f32.mrb[0].mxu0
    %1728 = vmatprep.mubr.bf16.mxu0 0
    %1729 = vmatmul.mubr.bf16.gmra.mrb[0].mxu0 %v1658
    %v1730 = vpop.f32.mrb[0].mxu0
    %v1731 = vadd.f32 0.0, %v1730
    %v1732 = vpop.f32.mrb[0].mxu0
    %v1733 = vpop.f32.mrb[0].mxu0
    %v1734 = vadd.f32 0.0, %v1733
    %v1735 = vpop.f32.mrb[0].mxu0
    %1736 = vmatprep.mubr.bf16.mxu0 0
    %1737 = vmatmul.mubr.bf16.gmra.mrb[0].mxu0 %v1661
    %v1738 = vpop.f32.mrb[0].mxu0
    %v1739 = vadd.f32 0.0, %v1738
    %v1740 = vpop.f32.mrb[0].mxu0
    %v1741 = vpop.f32.mrb[0].mxu0
    %v1742 = vadd.f32 0.0, %v1741
    %v1743 = vpop.f32.mrb[0].mxu0
    %1744 = vmatprep.mubr.bf16.mxu0 0
    %1745 = vmatmul.mubr.bf16.gmra.mrb[0].mxu0 %v1664
    %v1746 = vpop.f32.mrb[0].mxu0
    %v1747 = vadd.f32 0.0, %v1746
    %v1748 = vpop.f32.mrb[0].mxu0
    %v1749 = vpop.f32.mrb[0].mxu0
    %v1750 = vadd.f32 0.0, %v1749
    %v1751 = vpop.f32.mrb[0].mxu0
    %1752 = vmatprep.mubr.bf16.mxu0 0
    %1753 = vmatmul.mubr.bf16.gmra.mrb[0].mxu0 %v1667
    %v1754 = vpop.f32.mrb[0].mxu0
    %v1755 = vadd.f32 0.0, %v1754
    %v1756 = vpop.f32.mrb[0].mxu0
    %v1757 = vpop.f32.mrb[0].mxu0
    %v1758 = vadd.f32 0.0, %v1757
    %v1759 = vpop.f32.mrb[0].mxu0
    %1760 = vmatprep.mubr.bf16.mxu0 0
    %1761 = vmatmul.mubr.bf16.gmra.mrb[0].mxu0 %v1670
    %v1762 = vpop.f32.mrb[0].mxu0
    %v1763 = vadd.f32 0.0, %v1762
    %v1764 = vpop.f32.mrb[0].mxu0
    %v1765 = vpop.f32.mrb[0].mxu0
    %v1766 = vadd.f32 0.0, %v1765
    %v1767 = vpop.f32.mrb[0].mxu0
    %1768 = vdwg.mxu0
    %v1769 = vadd.f32 %v1378, %v1707
    %v1770 = vadd.f32 %v1379, %v1710
    %v1771 = vadd.f32 %v1380, %v1715
    %v1772 = vadd.f32 %v1381, %v1718
    %v1773 = vadd.f32 %v1382, %v1723
    %v1774 = vadd.f32 %v1383, %v1726
    %v1775 = vadd.f32 %v1384, %v1731
    %v1776 = vadd.f32 %v1385, %v1734
    %v1777 = vadd.f32 %v1386, %v1739
    %v1778 = vadd.f32 %v1387, %v1742
    %v1779 = vadd.f32 %v1388, %v1747
    %v1780 = vadd.f32 %v1389, %v1750
    %v1781 = vadd.f32 %v1390, %v1755
    %v1782 = vadd.f32 %v1391, %v1758
    %v1783 = vadd.f32 %v1392, %v1763
    %v1784 = vadd.f32 %v1393, %v1766
    %v1787 = vunpack.c.l.b16 %v193
    %v1788 = vunpack.c.l.b16 %v211
    %v1789 = vpack.c.b16 %v485, %v484
    %v1790 = vpack.c.b16 %v487, %v486
    %v1791 = vpack.c.b16 %v489, %v488
    %v1792 = vpack.c.b16 %v1787, %v490
    %v1793 = vpack.c.b16 %v493, %v492
    %v1794 = vpack.c.b16 %v495, %v494
    %v1795 = vpack.c.b16 %v497, %v496
    %v1796 = vpack.c.b16 %v1788, %v498
    %v1799 = vunpack.c.l.b16 %v291
    %v1800 = vunpack.c.l.b16 %v292
    %v1801 = vpack.c.b16 %v1800, %v1799
    %v1804 = vsel %vm345, %v1789, 0
    %v1807 = vsel %vm345, %v1790, 0
    %v1810 = vsel %vm345, %v1791, 0
    %v1813 = vsel %vm345, %v1792, 0
    %v1816 = vsel %vm345, %v1793, 0
    %v1819 = vsel %vm345, %v1794, 0
    %v1822 = vsel %vm345, %v1795, 0
    %v1825 = vsel %vm345, %v1796, 0
    %1827 = vmatprep.subr.bf16.mxu0 0
    %1828 = vmatpush1.bf16.msra.mxu0 %v1801
    %1829 = vmatprep.subr.bf16.mxu0 0
    %1830 = vmatpush1.bf16.msra.mxu0 0
    %1831 = vmatprep.subr.bf16.mxu0 0
    %1832 = vmatpush1.bf16.msra.mxu0 0
    %1833 = vmatprep.subr.bf16.mxu0 0
    %1834 = vmatpush1.bf16.msra.mxu0 0
    %1835 = vmatprep.subr.bf16.mxu0 0
    %1836 = vmatpush1.bf16.msra.mxu0 0
    %1837 = vmatprep.subr.bf16.mxu0 0
    %1838 = vmatpush1.bf16.msra.mxu0 0
    %1839 = vmatprep.subr.bf16.mxu0 0
    %1840 = vmatpush1.bf16.msra.mxu0 0
    %1841 = vmatprep.subr.bf16.mxu0 0
    %1842 = vmatpush1.bf16.msra.mxu0 0
    %1843 = vmatprep.subr.bf16.mxu0 0
    %1844 = vmatpush1.bf16.msra.mxu0 0
    %1845 = vmatprep.subr.bf16.mxu0 0
    %1846 = vmatpush1.bf16.msra.mxu0 0
    %1847 = vmatprep.subr.bf16.mxu0 0
    %1848 = vmatpush1.bf16.msra.mxu0 0
    %1849 = vmatprep.subr.bf16.mxu0 0
    %1850 = vmatpush1.bf16.msra.mxu0 0
    %1851 = vmatprep.subr.bf16.mxu0 0
    %1852 = vmatpush1.bf16.msra.mxu0 0
    %1853 = vmatprep.subr.bf16.mxu0 0
    %1854 = vmatpush1.bf16.msra.mxu0 0
    %1855 = vmatprep.subr.bf16.mxu0 0
    %1856 = vmatpush1.bf16.msra.mxu0 0
    %1857 = vmatprep.subr.bf16.mxu0 0
    %1858 = vmatpush1.bf16.msra.mxu0 0
    %1859 = vmatprep.mubr.bf16.mxu0 0
    %1860 = vmatmul.mubr.bf16.gmra.mrb[0].mxu0 %v1804
    %v1861 = vpop.f32.mrb[0].mxu0
    %v1862 = vadd.f32 0.0, %v1861
    %v1863 = vpop.f32.mrb[0].mxu0
    %v1864 = vpop.f32.mrb[0].mxu0
    %v1865 = vadd.f32 0.0, %v1864
    %v1866 = vpop.f32.mrb[0].mxu0
    %1867 = vmatprep.mubr.bf16.mxu0 0
    %1868 = vmatmul.mubr.bf16.gmra.mrb[0].mxu0 %v1807
    %v1869 = vpop.f32.mrb[0].mxu0
    %v1870 = vadd.f32 0.0, %v1869
    %v1871 = vpop.f32.mrb[0].mxu0
    %v1872 = vpop.f32.mrb[0].mxu0
    %v1873 = vadd.f32 0.0, %v1872
    %v1874 = vpop.f32.mrb[0].mxu0
    %1875 = vmatprep.mubr.bf16.mxu0 0
    %1876 = vmatmul.mubr.bf16.gmra.mrb[0].mxu0 %v1810
    %v1877 = vpop.f32.mrb[0].mxu0
    %v1878 = vadd.f32 0.0, %v1877
    %v1879 = vpop.f32.mrb[0].mxu0
    %v1880 = vpop.f32.mrb[0].mxu0
    %v1881 = vadd.f32 0.0, %v1880
    %v1882 = vpop.f32.mrb[0].mxu0
    %1883 = vmatprep.mubr.bf16.mxu0 0
    %1884 = vmatmul.mubr.bf16.gmra.mrb[0].mxu0 %v1813
    %v1885 = vpop.f32.mrb[0].mxu0
    %v1886 = vadd.f32 0.0, %v1885
    %v1887 = vpop.f32.mrb[0].mxu0
    %v1888 = vpop.f32.mrb[0].mxu0
    %v1889 = vadd.f32 0.0, %v1888
    %v1890 = vpop.f32.mrb[0].mxu0
    %1891 = vmatprep.mubr.bf16.mxu0 0
    %1892 = vmatmul.mubr.bf16.gmra.mrb[0].mxu0 %v1816
    %v1893 = vpop.f32.mrb[0].mxu0
    %v1894 = vadd.f32 0.0, %v1893
    %v1895 = vpop.f32.mrb[0].mxu0
    %v1896 = vpop.f32.mrb[0].mxu0
    %v1897 = vadd.f32 0.0, %v1896
    %v1898 = vpop.f32.mrb[0].mxu0
    %1899 = vmatprep.mubr.bf16.mxu0 0
    %1900 = vmatmul.mubr.bf16.gmra.mrb[0].mxu0 %v1819
    %v1901 = vpop.f32.mrb[0].mxu0
    %v1902 = vadd.f32 0.0, %v1901
    %v1903 = vpop.f32.mrb[0].mxu0
    %v1904 = vpop.f32.mrb[0].mxu0
    %v1905 = vadd.f32 0.0, %v1904
    %v1906 = vpop.f32.mrb[0].mxu0
    %1907 = vmatprep.mubr.bf16.mxu0 0
    %1908 = vmatmul.mubr.bf16.gmra.mrb[0].mxu0 %v1822
    %v1909 = vpop.f32.mrb[0].mxu0
    %v1910 = vadd.f32 0.0, %v1909
    %v1911 = vpop.f32.mrb[0].mxu0
    %v1912 = vpop.f32.mrb[0].mxu0
    %v1913 = vadd.f32 0.0, %v1912
    %v1914 = vpop.f32.mrb[0].mxu0
    %1915 = vmatprep.mubr.bf16.mxu0 0
    %1916 = vmatmul.mubr.bf16.gmra.mrb[0].mxu0 %v1825
    %v1917 = vpop.f32.mrb[0].mxu0
    %v1918 = vadd.f32 0.0, %v1917
    %v1919 = vpop.f32.mrb[0].mxu0
    %v1920 = vpop.f32.mrb[0].mxu0
    %v1921 = vadd.f32 0.0, %v1920
    %v1922 = vpop.f32.mrb[0].mxu0
    %1923 = vdwg.mxu0
    %v1924 = vadd.f32 %v1769, %v1862
    %v1925 = vadd.f32 %v1770, %v1865
    %v1926 = vadd.f32 %v1771, %v1870
    %v1927 = vadd.f32 %v1772, %v1873
    %v1928 = vadd.f32 %v1773, %v1878
    %v1929 = vadd.f32 %v1774, %v1881
    %v1930 = vadd.f32 %v1775, %v1886
    %v1931 = vadd.f32 %v1776, %v1889
    %v1932 = vadd.f32 %v1777, %v1894
    %v1933 = vadd.f32 %v1778, %v1897
    %v1934 = vadd.f32 %v1779, %v1902
    %v1935 = vadd.f32 %v1780, %v1905
    %v1936 = vadd.f32 %v1781, %v1910
    %v1937 = vadd.f32 %v1782, %v1913
    %v1938 = vadd.f32 %v1783, %v1918
    %v1939 = vadd.f32 %v1784, %v1921
    %v1942 = vunpack.c.l.b16 %v221
    %v1943 = vunpack.c.l.b16 %v230
    %v1944 = vpack.c.b16 %v317, %v316
    %v1945 = vpack.c.b16 %v319, %v318
    %v1946 = vpack.c.b16 %v321, %v320
    %v1947 = vpack.c.b16 %v1942, %v322
    %v1948 = vpack.c.b16 %v325, %v324
    %v1949 = vpack.c.b16 %v327, %v326
    %v1950 = vpack.c.b16 %v329, %v328
    %v1951 = vpack.c.b16 %v1943, %v330
    %v1954 = vunpack.c.l.b16 %v293
    %v1955 = vunpack.c.l.b16 %v294
    %v1956 = vpack.c.b16 %v1955, %v1954
    %v1959 = vsel %vm345, %v1944, 0
    %v1962 = vsel %vm345, %v1945, 0
    %v1965 = vsel %vm345, %v1946, 0
    %v1968 = vsel %vm345, %v1947, 0
    %v1971 = vsel %vm345, %v1948, 0
    %v1974 = vsel %vm345, %v1949, 0
    %v1977 = vsel %vm345, %v1950, 0
    %v1980 = vsel %vm345, %v1951, 0
    %1982 = vmatprep.subr.bf16.mxu0 0
    %1983 = vmatpush1.bf16.msra.mxu0 %v1956
    %1984 = vmatprep.subr.bf16.mxu0 0
    %1985 = vmatpush1.bf16.msra.mxu0 0
    %1986 = vmatprep.subr.bf16.mxu0 0
    %1987 = vmatpush1.bf16.msra.mxu0 0
    %1988 = vmatprep.subr.bf16.mxu0 0
    %1989 = vmatpush1.bf16.msra.mxu0 0
    %1990 = vmatprep.subr.bf16.mxu0 0
    %1991 = vmatpush1.bf16.msra.mxu0 0
    %1992 = vmatprep.subr.bf16.mxu0 0
    %1993 = vmatpush1.bf16.msra.mxu0 0
    %1994 = vmatprep.subr.bf16.mxu0 0
    %1995 = vmatpush1.bf16.msra.mxu0 0
    %1996 = vmatprep.subr.bf16.mxu0 0
    %1997 = vmatpush1.bf16.msra.mxu0 0
    %1998 = vmatprep.subr.bf16.mxu0 0
    %1999 = vmatpush1.bf16.msra.mxu0 0
    %2000 = vmatprep.subr.bf16.mxu0 0
    %2001 = vmatpush1.bf16.msra.mxu0 0
    %2002 = vmatprep.subr.bf16.mxu0 0
    %2003 = vmatpush1.bf16.msra.mxu0 0
    %2004 = vmatprep.subr.bf16.mxu0 0
    %2005 = vmatpush1.bf16.msra.mxu0 0
    %2006 = vmatprep.subr.bf16.mxu0 0
    %2007 = vmatpush1.bf16.msra.mxu0 0
    %2008 = vmatprep.subr.bf16.mxu0 0
    %2009 = vmatpush1.bf16.msra.mxu0 0
    %2010 = vmatprep.subr.bf16.mxu0 0
    %2011 = vmatpush1.bf16.msra.mxu0 0
    %2012 = vmatprep.subr.bf16.mxu0 0
    %2013 = vmatpush1.bf16.msra.mxu0 0
    %2014 = vmatprep.mubr.bf16.mxu0 0
    %2015 = vmatmul.mubr.bf16.gmra.mrb[0].mxu0 %v1959
    %v2016 = vpop.f32.mrb[0].mxu0
    %v2017 = vadd.f32 0.0, %v2016
    %v2018 = vpop.f32.mrb[0].mxu0
    %v2019 = vpop.f32.mrb[0].mxu0
    %v2020 = vadd.f32 0.0, %v2019
    %v2021 = vpop.f32.mrb[0].mxu0
    %2022 = vmatprep.mubr.bf16.mxu0 0
    %2023 = vmatmul.mubr.bf16.gmra.mrb[0].mxu0 %v1962
    %v2024 = vpop.f32.mrb[0].mxu0
    %v2025 = vadd.f32 0.0, %v2024
    %v2026 = vpop.f32.mrb[0].mxu0
    %v2027 = vpop.f32.mrb[0].mxu0
    %v2028 = vadd.f32 0.0, %v2027
    %v2029 = vpop.f32.mrb[0].mxu0
    %2030 = vmatprep.mubr.bf16.mxu0 0
    %2031 = vmatmul.mubr.bf16.gmra.mrb[0].mxu0 %v1965
    %v2032 = vpop.f32.mrb[0].mxu0
    %v2033 = vadd.f32 0.0, %v2032
    %v2034 = vpop.f32.mrb[0].mxu0
    %v2035 = vpop.f32.mrb[0].mxu0
    %v2036 = vadd.f32 0.0, %v2035
    %v2037 = vpop.f32.mrb[0].mxu0
    %2038 = vmatprep.mubr.bf16.mxu0 0
    %2039 = vmatmul.mubr.bf16.gmra.mrb[0].mxu0 %v1968
    %v2040 = vpop.f32.mrb[0].mxu0
    %v2041 = vadd.f32 0.0, %v2040
    %v2042 = vpop.f32.mrb[0].mxu0
    %v2043 = vpop.f32.mrb[0].mxu0
    %v2044 = vadd.f32 0.0, %v2043
    %v2045 = vpop.f32.mrb[0].mxu0
    %2046 = vmatprep.mubr.bf16.mxu0 0
    %2047 = vmatmul.mubr.bf16.gmra.mrb[0].mxu0 %v1971
    %v2048 = vpop.f32.mrb[0].mxu0
    %v2049 = vadd.f32 0.0, %v2048
    %v2050 = vpop.f32.mrb[0].mxu0
    %v2051 = vpop.f32.mrb[0].mxu0
    %v2052 = vadd.f32 0.0, %v2051
    %v2053 = vpop.f32.mrb[0].mxu0
    %2054 = vmatprep.mubr.bf16.mxu0 0
    %2055 = vmatmul.mubr.bf16.gmra.mrb[0].mxu0 %v1974
    %v2056 = vpop.f32.mrb[0].mxu0
    %v2057 = vadd.f32 0.0, %v2056
    %v2058 = vpop.f32.mrb[0].mxu0
    %v2059 = vpop.f32.mrb[0].mxu0
    %v2060 = vadd.f32 0.0, %v2059
    %v2061 = vpop.f32.mrb[0].mxu0
    %2062 = vmatprep.mubr.bf16.mxu0 0
    %2063 = vmatmul.mubr.bf16.gmra.mrb[0].mxu0 %v1977
    %v2064 = vpop.f32.mrb[0].mxu0
    %v2065 = vadd.f32 0.0, %v2064
    %v2066 = vpop.f32.mrb[0].mxu0
    %v2067 = vpop.f32.mrb[0].mxu0
    %v2068 = vadd.f32 0.0, %v2067
    %v2069 = vpop.f32.mrb[0].mxu0
    %2070 = vmatprep.mubr.bf16.mxu0 0
    %2071 = vmatmul.mubr.bf16.gmra.mrb[0].mxu0 %v1980
    %v2072 = vpop.f32.mrb[0].mxu0
    %v2073 = vadd.f32 0.0, %v2072
    %v2074 = vpop.f32.mrb[0].mxu0
    %v2075 = vpop.f32.mrb[0].mxu0
    %v2076 = vadd.f32 0.0, %v2075
    %v2077 = vpop.f32.mrb[0].mxu0
    %2078 = vdwg.mxu0
    %v2079 = vadd.f32 %v1924, %v2017
    %v2080 = vadd.f32 %v1925, %v2020
    %v2081 = vadd.f32 %v1926, %v2025
    %v2082 = vadd.f32 %v1927, %v2028
    %v2083 = vadd.f32 %v1928, %v2033
    %v2084 = vadd.f32 %v1929, %v2036
    %v2085 = vadd.f32 %v1930, %v2041
    %v2086 = vadd.f32 %v1931, %v2044
    %v2087 = vadd.f32 %v1932, %v2049
    %v2088 = vadd.f32 %v1933, %v2052
    %v2089 = vadd.f32 %v1934, %v2057
    %v2090 = vadd.f32 %v1935, %v2060
    %v2091 = vadd.f32 %v1936, %v2065
    %v2092 = vadd.f32 %v1937, %v2068
    %v2093 = vadd.f32 %v1938, %v2073
    %v2094 = vadd.f32 %v1939, %v2076
    %v2096 = vshrl.u32 %v193, 16
    %v2098 = vrot.slane %v2096, 4
    %v2099 = vshll.u32 %v193, 16
    %v2101 = vrot.slane %v2099, 5
    %v2102 = vor.u32 %v2098, %v2101
    %v2103 = vrot.slane %v2102, 4
    %v2105 = vshll.u32 %v194, 16
    %v2107 = vrot.slane %v2105, 5
    %v2108 = vsel %vm636, %v2103, %v2107
    %v2110 = vshrl.u32 %v211, 16
    %v2112 = vrot.slane %v2110, 4
    %v2113 = vshll.u32 %v211, 16
    %v2115 = vrot.slane %v2113, 5
    %v2116 = vor.u32 %v2112, %v2115
    %v2117 = vrot.slane %v2116, 4
    %v2119 = vshll.u32 %v212, 16
    %v2121 = vrot.slane %v2119, 5
    %v2122 = vsel %vm636, %v2117, %v2121
    %v2123 = vunpack.c.l.b16 %v2108
    %v2124 = vunpack.c.l.b16 %v2122
    %v2125 = vpack.c.b16 %v863, %v862
    %v2126 = vpack.c.b16 %v865, %v864
    %v2127 = vpack.c.b16 %v867, %v866
    %v2128 = vpack.c.b16 %v2123, %v868
    %v2129 = vpack.c.b16 %v871, %v870
    %v2130 = vpack.c.b16 %v873, %v872
    %v2131 = vpack.c.b16 %v875, %v874
    %v2132 = vpack.c.b16 %v2124, %v876
    %v2135 = vunpack.c.l.b16 %v295
    %v2136 = vunpack.c.l.b16 %v296
    %v2137 = vpack.c.b16 %v2136, %v2135
    %v2140 = vsel %vm345, %v2125, 0
    %v2143 = vsel %vm345, %v2126, 0
    %v2146 = vsel %vm345, %v2127, 0
    %v2149 = vsel %vm345, %v2128, 0
    %v2152 = vsel %vm345, %v2129, 0
    %v2155 = vsel %vm345, %v2130, 0
    %v2158 = vsel %vm345, %v2131, 0
    %v2161 = vsel %vm345, %v2132, 0
    %2163 = vmatprep.subr.bf16.mxu0 0
    %2164 = vmatpush1.bf16.msra.mxu0 %v2137
    %2165 = vmatprep.subr.bf16.mxu0 0
    %2166 = vmatpush1.bf16.msra.mxu0 0
    %2167 = vmatprep.subr.bf16.mxu0 0
    %2168 = vmatpush1.bf16.msra.mxu0 0
    %2169 = vmatprep.subr.bf16.mxu0 0
    %2170 = vmatpush1.bf16.msra.mxu0 0
    %2171 = vmatprep.subr.bf16.mxu0 0
    %2172 = vmatpush1.bf16.msra.mxu0 0
    %2173 = vmatprep.subr.bf16.mxu0 0
    %2174 = vmatpush1.bf16.msra.mxu0 0
    %2175 = vmatprep.subr.bf16.mxu0 0
    %2176 = vmatpush1.bf16.msra.mxu0 0
    %2177 = vmatprep.subr.bf16.mxu0 0
    %2178 = vmatpush1.bf16.msra.mxu0 0
    %2179 = vmatprep.subr.bf16.mxu0 0
    %2180 = vmatpush1.bf16.msra.mxu0 0
    %2181 = vmatprep.subr.bf16.mxu0 0
    %2182 = vmatpush1.bf16.msra.mxu0 0
    %2183 = vmatprep.subr.bf16.mxu0 0
    %2184 = vmatpush1.bf16.msra.mxu0 0
    %2185 = vmatprep.subr.bf16.mxu0 0
    %2186 = vmatpush1.bf16.msra.mxu0 0
    %2187 = vmatprep.subr.bf16.mxu0 0
    %2188 = vmatpush1.bf16.msra.mxu0 0
    %2189 = vmatprep.subr.bf16.mxu0 0
    %2190 = vmatpush1.bf16.msra.mxu0 0
    %2191 = vmatprep.subr.bf16.mxu0 0
    %2192 = vmatpush1.bf16.msra.mxu0 0
    %2193 = vmatprep.subr.bf16.mxu0 0
    %2194 = vmatpush1.bf16.msra.mxu0 0
    %2195 = vmatprep.mubr.bf16.mxu0 0
    %2196 = vmatmul.mubr.bf16.gmra.mrb[0].mxu0 %v2140
    %v2197 = vpop.f32.mrb[0].mxu0
    %v2198 = vadd.f32 0.0, %v2197
    %v2199 = vpop.f32.mrb[0].mxu0
    %v2200 = vpop.f32.mrb[0].mxu0
    %v2201 = vadd.f32 0.0, %v2200
    %v2202 = vpop.f32.mrb[0].mxu0
    %2203 = vmatprep.mubr.bf16.mxu0 0
    %2204 = vmatmul.mubr.bf16.gmra.mrb[0].mxu0 %v2143
    %v2205 = vpop.f32.mrb[0].mxu0
    %v2206 = vadd.f32 0.0, %v2205
    %v2207 = vpop.f32.mrb[0].mxu0
    %v2208 = vpop.f32.mrb[0].mxu0
    %v2209 = vadd.f32 0.0, %v2208
    %v2210 = vpop.f32.mrb[0].mxu0
    %2211 = vmatprep.mubr.bf16.mxu0 0
    %2212 = vmatmul.mubr.bf16.gmra.mrb[0].mxu0 %v2146
    %v2213 = vpop.f32.mrb[0].mxu0
    %v2214 = vadd.f32 0.0, %v2213
    %v2215 = vpop.f32.mrb[0].mxu0
    %v2216 = vpop.f32.mrb[0].mxu0
    %v2217 = vadd.f32 0.0, %v2216
    %v2218 = vpop.f32.mrb[0].mxu0
    %2219 = vmatprep.mubr.bf16.mxu0 0
    %2220 = vmatmul.mubr.bf16.gmra.mrb[0].mxu0 %v2149
    %v2221 = vpop.f32.mrb[0].mxu0
    %v2222 = vadd.f32 0.0, %v2221
    %v2223 = vpop.f32.mrb[0].mxu0
    %v2224 = vpop.f32.mrb[0].mxu0
    %v2225 = vadd.f32 0.0, %v2224
    %v2226 = vpop.f32.mrb[0].mxu0
    %2227 = vmatprep.mubr.bf16.mxu0 0
    %2228 = vmatmul.mubr.bf16.gmra.mrb[0].mxu0 %v2152
    %v2229 = vpop.f32.mrb[0].mxu0
    %v2230 = vadd.f32 0.0, %v2229
    %v2231 = vpop.f32.mrb[0].mxu0
    %v2232 = vpop.f32.mrb[0].mxu0
    %v2233 = vadd.f32 0.0, %v2232
    %v2234 = vpop.f32.mrb[0].mxu0
    %2235 = vmatprep.mubr.bf16.mxu0 0
    %2236 = vmatmul.mubr.bf16.gmra.mrb[0].mxu0 %v2155
    %v2237 = vpop.f32.mrb[0].mxu0
    %v2238 = vadd.f32 0.0, %v2237
    %v2239 = vpop.f32.mrb[0].mxu0
    %v2240 = vpop.f32.mrb[0].mxu0
    %v2241 = vadd.f32 0.0, %v2240
    %v2242 = vpop.f32.mrb[0].mxu0
    %2243 = vmatprep.mubr.bf16.mxu0 0
    %2244 = vmatmul.mubr.bf16.gmra.mrb[0].mxu0 %v2158
    %v2245 = vpop.f32.mrb[0].mxu0
    %v2246 = vadd.f32 0.0, %v2245
    %v2247 = vpop.f32.mrb[0].mxu0
    %v2248 = vpop.f32.mrb[0].mxu0
    %v2249 = vadd.f32 0.0, %v2248
    %v2250 = vpop.f32.mrb[0].mxu0
    %2251 = vmatprep.mubr.bf16.mxu0 0
    %2252 = vmatmul.mubr.bf16.gmra.mrb[0].mxu0 %v2161
    %v2253 = vpop.f32.mrb[0].mxu0
    %v2254 = vadd.f32 0.0, %v2253
    %v2255 = vpop.f32.mrb[0].mxu0
    %v2256 = vpop.f32.mrb[0].mxu0
    %v2257 = vadd.f32 0.0, %v2256
    %v2258 = vpop.f32.mrb[0].mxu0
    %2259 = vdwg.mxu0
    %v2260 = vadd.f32 %v2079, %v2198
    %v2261 = vadd.f32 %v2080, %v2201
    %v2262 = vadd.f32 %v2081, %v2206
    %v2263 = vadd.f32 %v2082, %v2209
    %v2264 = vadd.f32 %v2083, %v2214
    %v2265 = vadd.f32 %v2084, %v2217
    %v2266 = vadd.f32 %v2085, %v2222
    %v2267 = vadd.f32 %v2086, %v2225
    %v2268 = vadd.f32 %v2087, %v2230
    %v2269 = vadd.f32 %v2088, %v2233
    %v2270 = vadd.f32 %v2089, %v2238
    %v2271 = vadd.f32 %v2090, %v2241
    %v2272 = vadd.f32 %v2091, %v2246
    %v2273 = vadd.f32 %v2092, %v2249
    %v2274 = vadd.f32 %v2093, %v2254
    %v2275 = vadd.f32 %v2094, %v2257
    %v2276 = vadd.f32 %v2260, %v2261
    %v2277 = vadd.f32 %v2276, %v2262
    %v2278 = vadd.f32 %v2277, %v2263
    %v2279 = vadd.f32 %v2278, %v2264
    %v2280 = vadd.f32 %v2279, %v2265
    %v2281 = vadd.f32 %v2280, %v2266
    %v2282 = vadd.f32 %v2281, %v2267
    %v2283 = vadd.f32 %v2282, %v2268
    %v2284 = vadd.f32 %v2283, %v2269
    %v2285 = vadd.f32 %v2284, %v2270
    %v2286 = vadd.f32 %v2285, %v2271
    %v2287 = vadd.f32 %v2286, %v2272
    %v2288 = vadd.f32 %v2287, %v2273
    %v2289 = vadd.f32 %v2288, %v2274
    %v2290 = vadd.f32 %v2289, %v2275
    %v2291 = vrot.slane %v2290, 4
    %v2292 = vadd.f32 %v2290, %v2291
    %v2293 = vrot.slane %v2292, 2
    %v2294 = vadd.f32 %v2292, %v2293
    %v2295 = vrot.slane %v2294, 1
    %v2296 = vadd.f32 %v2294, %v2295
    %v2297 = vrcp.pop 128.0
    %v2298 = vmul.f32 %v2296, %v2297
    %v2299 = vmul.f32 %v2260, %v2260
    %v2300 = vmul.f32 %v2261, %v2261
    %v2301 = vmul.f32 %v2262, %v2262
    %v2302 = vmul.f32 %v2263, %v2263
    %v2303 = vmul.f32 %v2264, %v2264
    %v2304 = vmul.f32 %v2265, %v2265
    %v2305 = vmul.f32 %v2266, %v2266
    %v2306 = vmul.f32 %v2267, %v2267
    %v2307 = vmul.f32 %v2268, %v2268
    %v2308 = vmul.f32 %v2269, %v2269
    %v2309 = vmul.f32 %v2270, %v2270
    %v2310 = vmul.f32 %v2271, %v2271
    %v2311 = vmul.f32 %v2272, %v2272
    %v2312 = vmul.f32 %v2273, %v2273
    %v2313 = vmul.f32 %v2274, %v2274
    %v2314 = vmul.f32 %v2275, %v2275
    %v2315 = vadd.f32 %v2299, %v2300
    %v2316 = vadd.f32 %v2315, %v2301
    %v2317 = vadd.f32 %v2316, %v2302
    %v2318 = vadd.f32 %v2317, %v2303
    %v2319 = vadd.f32 %v2318, %v2304
    %v2320 = vadd.f32 %v2319, %v2305
    %v2321 = vadd.f32 %v2320, %v2306
    %v2322 = vadd.f32 %v2321, %v2307
    %v2323 = vadd.f32 %v2322, %v2308
    %v2324 = vadd.f32 %v2323, %v2309
    %v2325 = vadd.f32 %v2324, %v2310
    %v2326 = vadd.f32 %v2325, %v2311
    %v2327 = vadd.f32 %v2326, %v2312
    %v2328 = vadd.f32 %v2327, %v2313
    %v2329 = vadd.f32 %v2328, %v2314
    %v2330 = vrot.slane %v2329, 4
    %v2331 = vadd.f32 %v2329, %v2330
    %v2332 = vrot.slane %v2331, 2
    %v2333 = vadd.f32 %v2331, %v2332
    %v2334 = vrot.slane %v2333, 1
    %v2335 = vadd.f32 %v2333, %v2334
    %v2336 = vmul.f32 %v2335, %v2297
    %v2337 = vmul.f32 %v2298, %v2298
    %v2338 = vsub.f32 %v2336, %v2337
    %v2339 = vmax.f32 %v2338, 0.0
    %v2340 = vadd.f32 %v2339, 1e-05
    %v2341 = vrsqrt.pop %v2340
    %v2342 = vmul.f32 %v297, %v2341
    %v2344 = vlaneseq
    %v2345 = vshrl.u32 %v2344, 7
    %v2346 = vsub.s32 0, %v2345
    %v2347 = vrot.slane %v2342, %v2346
    %v2349 = vmul.f32 %v2260, %v2347
    %v2350 = vmul.f32 %v2261, %v2347
    %v2351 = vmul.f32 %v2262, %v2347
    %v2352 = vmul.f32 %v2263, %v2347
    %v2353 = vmul.f32 %v2264, %v2347
    %v2354 = vmul.f32 %v2265, %v2347
    %v2355 = vmul.f32 %v2266, %v2347
    %v2356 = vmul.f32 %v2267, %v2347
    %v2357 = vmul.f32 %v2268, %v2347
    %v2358 = vmul.f32 %v2269, %v2347
    %v2359 = vmul.f32 %v2270, %v2347
    %v2360 = vmul.f32 %v2271, %v2347
    %v2361 = vmul.f32 %v2272, %v2347
    %v2362 = vmul.f32 %v2273, %v2347
    %v2363 = vmul.f32 %v2274, %v2347
    %v2364 = vmul.f32 %v2275, %v2347
    %v2365 = vmul.f32 %v2298, %v2342
    %v2366 = vsub.f32 %v298, %v2365
    %v2368 = vlaneseq
    %v2369 = vshrl.u32 %v2368, 7
    %v2370 = vsub.s32 0, %v2369
    %v2371 = vrot.slane %v2366, %v2370
    %v2373 = vadd.f32 %v2349, %v2371
    %v2374 = vadd.f32 %v2350, %v2371
    %v2375 = vadd.f32 %v2351, %v2371
    %v2376 = vadd.f32 %v2352, %v2371
    %v2377 = vadd.f32 %v2353, %v2371
    %v2378 = vadd.f32 %v2354, %v2371
    %v2379 = vadd.f32 %v2355, %v2371
    %v2380 = vadd.f32 %v2356, %v2371
    %v2381 = vadd.f32 %v2357, %v2371
    %v2382 = vadd.f32 %v2358, %v2371
    %v2383 = vadd.f32 %v2359, %v2371
    %v2384 = vadd.f32 %v2360, %v2371
    %v2385 = vadd.f32 %v2361, %v2371
    %v2386 = vadd.f32 %v2362, %v2371
    %v2387 = vadd.f32 %v2363, %v2371
    %v2388 = vadd.f32 %v2364, %v2371
    %v2389 = vxor.u32 %v2373, 2147483648
    %v2390 = vxor.u32 %v2374, 2147483648
    %v2391 = vxor.u32 %v2375, 2147483648
    %v2392 = vxor.u32 %v2376, 2147483648
    %v2393 = vxor.u32 %v2377, 2147483648
    %v2394 = vxor.u32 %v2378, 2147483648
    %v2395 = vxor.u32 %v2379, 2147483648
    %v2396 = vxor.u32 %v2380, 2147483648
    %v2397 = vxor.u32 %v2381, 2147483648
    %v2398 = vxor.u32 %v2382, 2147483648
    %v2399 = vxor.u32 %v2383, 2147483648
    %v2400 = vxor.u32 %v2384, 2147483648
    %v2401 = vxor.u32 %v2385, 2147483648
    %v2402 = vxor.u32 %v2386, 2147483648
    %v2403 = vxor.u32 %v2387, 2147483648
    %v2404 = vxor.u32 %v2388, 2147483648
    %v2405 = vmul.f32 %v2389, 1.442695
    %v2406 = vpow.pop %v2405
    %v2407 = vmul.f32 %v2390, 1.442695
    %v2408 = vpow.pop %v2407
    %v2409 = vmul.f32 %v2391, 1.442695
    %v2410 = vpow.pop %v2409
    %v2411 = vmul.f32 %v2392, 1.442695
    %v2412 = vpow.pop %v2411
    %v2413 = vmul.f32 %v2393, 1.442695
    %v2414 = vpow.pop %v2413
    %v2415 = vmul.f32 %v2394, 1.442695
    %v2416 = vpow.pop %v2415
    %v2417 = vmul.f32 %v2395, 1.442695
    %v2418 = vpow.pop %v2417
    %v2419 = vmul.f32 %v2396, 1.442695
    %v2420 = vpow.pop %v2419
    %v2421 = vmul.f32 %v2397, 1.442695
    %v2422 = vpow.pop %v2421
    %v2423 = vmul.f32 %v2398, 1.442695
    %v2424 = vpow.pop %v2423
    %v2425 = vmul.f32 %v2399, 1.442695
    %v2426 = vpow.pop %v2425
    %v2427 = vmul.f32 %v2400, 1.442695
    %v2428 = vpow.pop %v2427
    %v2429 = vmul.f32 %v2401, 1.442695
    %v2430 = vpow.pop %v2429
    %v2431 = vmul.f32 %v2402, 1.442695
    %v2432 = vpow.pop %v2431
    %v2433 = vmul.f32 %v2403, 1.442695
    %v2434 = vpow.pop %v2433
    %v2435 = vmul.f32 %v2404, 1.442695
    %v2436 = vpow.pop %v2435
    %v2437 = vadd.f32 %v2406, 1.0
    %v2438 = vadd.f32 %v2408, 1.0
    %v2439 = vadd.f32 %v2410, 1.0
    %v2440 = vadd.f32 %v2412, 1.0
    %v2441 = vadd.f32 %v2414, 1.0
    %v2442 = vadd.f32 %v2416, 1.0
    %v2443 = vadd.f32 %v2418, 1.0
    %v2444 = vadd.f32 %v2420, 1.0
    %v2445 = vadd.f32 %v2422, 1.0
    %v2446 = vadd.f32 %v2424, 1.0
    %v2447 = vadd.f32 %v2426, 1.0
    %v2448 = vadd.f32 %v2428, 1.0
    %v2449 = vadd.f32 %v2430, 1.0
    %v2450 = vadd.f32 %v2432, 1.0
    %v2451 = vadd.f32 %v2434, 1.0
    %v2452 = vadd.f32 %v2436, 1.0
    %v2453 = vrcp.pop %v2437
    %v2454 = vmul.f32 1.0, %v2453
    %v2455 = vrcp.pop %v2438
    %v2456 = vmul.f32 1.0, %v2455
    %v2457 = vrcp.pop %v2439
    %v2458 = vmul.f32 1.0, %v2457
    %v2459 = vrcp.pop %v2440
    %v2460 = vmul.f32 1.0, %v2459
    %v2461 = vrcp.pop %v2441
    %v2462 = vmul.f32 1.0, %v2461
    %v2463 = vrcp.pop %v2442
    %v2464 = vmul.f32 1.0, %v2463
    %v2465 = vrcp.pop %v2443
    %v2466 = vmul.f32 1.0, %v2465
    %v2467 = vrcp.pop %v2444
    %v2468 = vmul.f32 1.0, %v2467
    %v2469 = vrcp.pop %v2445
    %v2470 = vmul.f32 1.0, %v2469
    %v2471 = vrcp.pop %v2446
    %v2472 = vmul.f32 1.0, %v2471
    %v2473 = vrcp.pop %v2447
    %v2474 = vmul.f32 1.0, %v2473
    %v2475 = vrcp.pop %v2448
    %v2476 = vmul.f32 1.0, %v2475
    %v2477 = vrcp.pop %v2449
    %v2478 = vmul.f32 1.0, %v2477
    %v2479 = vrcp.pop %v2450
    %v2480 = vmul.f32 1.0, %v2479
    %v2481 = vrcp.pop %v2451
    %v2482 = vmul.f32 1.0, %v2481
    %v2483 = vrcp.pop %v2452
    %v2484 = vmul.f32 1.0, %v2483
    %v2485 = vpack.c.bf16 %v2456, %v2454
    %v2486 = vpack.c.bf16 %v2460, %v2458
    %v2487 = vpack.c.bf16 %v2464, %v2462
    %v2488 = vpack.c.bf16 %v2468, %v2466
    %v2489 = vpack.c.bf16 %v2472, %v2470
    %v2490 = vpack.c.bf16 %v2476, %v2474
    %v2491 = vpack.c.bf16 %v2480, %v2478
    %v2492 = vpack.c.bf16 %v2484, %v2482
    %v2493 = vld [vmem:[#allocation10] sm:$0xf]
    %v2494 = vld [vmem:[#allocation10 + $0x4] sm:$0xf]
    %v2495 = vld [vmem:[#allocation10 + $0x8] sm:$0xf]
    %v2496 = vld [vmem:[#allocation10 + $0xc] sm:$0xf]
    %v2497 = vld [vmem:[#allocation10 + $0x10] sm:$0xf]
    %v2498 = vld [vmem:[#allocation10 + $0x14] sm:$0xf]
    %v2499 = vld [vmem:[#allocation10 + $0x18] sm:$0xf]
    %v2500 = vld [vmem:[#allocation10 + $0x1c] sm:$0xf]
    %v2501 = vld [vmem:[#allocation10 + $0x20] sm:$0xf]
    %v2502 = vld [vmem:[#allocation10 + $0x24] sm:$0xf]
    %v2503 = vld [vmem:[#allocation10 + $0x28] sm:$0xf]
    %v2504 = vld [vmem:[#allocation10 + $0x2c] sm:$0xf]
    %v2505 = vld [vmem:[#allocation10 + $0x30] sm:$0xf]
    %v2506 = vld [vmem:[#allocation10 + $0x34] sm:$0xf]
    %v2507 = vld [vmem:[#allocation10 + $0x38] sm:$0xf]
    %v2508 = vld [vmem:[#allocation10 + $0x3c] sm:$0xf]
    %v2525 = vunpack.c.l.b16 %v2493
    %v2526 = vunpack.c.l.b16 %v2494
    %v2527 = vunpack.c.l.b16 %v2495
    %v2528 = vunpack.c.l.b16 %v2496
    %v2529 = vunpack.c.l.b16 %v2497
    %v2530 = vunpack.c.l.b16 %v2498
    %v2531 = vunpack.c.l.b16 %v2499
    %v2532 = vunpack.c.l.b16 %v2500
    %v2533 = vunpack.c.l.b16 %v2501
    %v2534 = vunpack.c.l.b16 %v2502
    %v2535 = vunpack.c.l.b16 %v2503
    %v2536 = vunpack.c.l.b16 %v2504
    %v2537 = vunpack.c.l.b16 %v2505
    %v2538 = vunpack.c.l.b16 %v2506
    %v2539 = vunpack.c.l.b16 %v2507
    %v2540 = vunpack.c.l.b16 %v2508
    %v2541 = vpack.c.b16 %v2526, %v2525
    %v2542 = vpack.c.b16 %v2528, %v2527
    %v2543 = vpack.c.b16 %v2530, %v2529
    %v2544 = vpack.c.b16 %v2532, %v2531
    %v2545 = vpack.c.b16 %v2534, %v2533
    %v2546 = vpack.c.b16 %v2536, %v2535
    %v2547 = vpack.c.b16 %v2538, %v2537
    %v2548 = vpack.c.b16 %v2540, %v2539
    %2557 = vmatprep.subr.bf16.mxu0 0
    %2558 = vmatpush1.bf16.msra.mxu0 %v2541
    %2559 = vmatprep.subr.bf16.mxu0 0
    %2560 = vmatpush1.bf16.msra.mxu0 %v2542
    %2561 = vmatprep.subr.bf16.mxu0 0
    %2562 = vmatpush1.bf16.msra.mxu0 %v2543
    %2563 = vmatprep.subr.bf16.mxu0 0
    %2564 = vmatpush1.bf16.msra.mxu0 %v2544
    %2565 = vmatprep.subr.bf16.mxu0 0
    %2566 = vmatpush1.bf16.msra.mxu0 %v2545
    %2567 = vmatprep.subr.bf16.mxu0 0
    %2568 = vmatpush1.bf16.msra.mxu0 %v2546
    %2569 = vmatprep.subr.bf16.mxu0 0
    %2570 = vmatpush1.bf16.msra.mxu0 %v2547
    %2571 = vmatprep.subr.bf16.mxu0 0
    %2572 = vmatpush1.bf16.msra.mxu0 %v2548
    %2573 = vmatprep.subr.bf16.mxu0 0
    %2574 = vmatpush1.bf16.msra.mxu0 0
    %2575 = vmatprep.subr.bf16.mxu0 0
    %2576 = vmatpush1.bf16.msra.mxu0 0
    %2577 = vmatprep.subr.bf16.mxu0 0
    %2578 = vmatpush1.bf16.msra.mxu0 0
    %2579 = vmatprep.subr.bf16.mxu0 0
    %2580 = vmatpush1.bf16.msra.mxu0 0
    %2581 = vmatprep.subr.bf16.mxu0 0
    %2582 = vmatpush1.bf16.msra.mxu0 0
    %2583 = vmatprep.subr.bf16.mxu0 0
    %2584 = vmatpush1.bf16.msra.mxu0 0
    %2585 = vmatprep.subr.bf16.mxu0 0
    %2586 = vmatpush1.bf16.msra.mxu0 0
    %2587 = vmatprep.subr.bf16.mxu0 0
    %2588 = vmatpush1.bf16.msra.mxu0 0
    %2589 = vmatprep.mubr.bf16.mxu0 0
    %2590 = vmatmul.mubr.bf16.gmra.mrb[0].mxu0 %v2485
    %v2591 = vpop.f32.mrb[0].mxu0
    %v2592 = vadd.f32 0.0, %v2591
    %v2593 = vpop.f32.mrb[0].mxu0
    %v2594 = vpop.f32.mrb[0].mxu0
    %v2595 = vadd.f32 0.0, %v2594
    %v2596 = vpop.f32.mrb[0].mxu0
    %2597 = vmatprep.mubr.bf16.mxu0 0
    %2598 = vmatmul.mubr.bf16.gmra.mrb[0].mxu0 %v2486
    %v2599 = vpop.f32.mrb[0].mxu0
    %v2600 = vadd.f32 0.0, %v2599
    %v2601 = vpop.f32.mrb[0].mxu0
    %v2602 = vpop.f32.mrb[0].mxu0
    %v2603 = vadd.f32 0.0, %v2602
    %v2604 = vpop.f32.mrb[0].mxu0
    %2605 = vmatprep.mubr.bf16.mxu0 0
    %2606 = vmatmul.mubr.bf16.gmra.mrb[0].mxu0 %v2487
    %v2607 = vpop.f32.mrb[0].mxu0
    %v2608 = vadd.f32 0.0, %v2607
    %v2609 = vpop.f32.mrb[0].mxu0
    %v2610 = vpop.f32.mrb[0].mxu0
    %v2611 = vadd.f32 0.0, %v2610
    %v2612 = vpop.f32.mrb[0].mxu0
    %2613 = vmatprep.mubr.bf16.mxu0 0
    %2614 = vmatmul.mubr.bf16.gmra.mrb[0].mxu0 %v2488
    %v2615 = vpop.f32.mrb[0].mxu0
    %v2616 = vadd.f32 0.0, %v2615
    %v2617 = vpop.f32.mrb[0].mxu0
    %v2618 = vpop.f32.mrb[0].mxu0
    %v2619 = vadd.f32 0.0, %v2618
    %v2620 = vpop.f32.mrb[0].mxu0
    %2621 = vmatprep.mubr.bf16.mxu0 0
    %2622 = vmatmul.mubr.bf16.gmra.mrb[0].mxu0 %v2489
    %v2623 = vpop.f32.mrb[0].mxu0
    %v2624 = vadd.f32 0.0, %v2623
    %v2625 = vpop.f32.mrb[0].mxu0
    %v2626 = vpop.f32.mrb[0].mxu0
    %v2627 = vadd.f32 0.0, %v2626
    %v2628 = vpop.f32.mrb[0].mxu0
    %2629 = vmatprep.mubr.bf16.mxu0 0
    %2630 = vmatmul.mubr.bf16.gmra.mrb[0].mxu0 %v2490
    %v2631 = vpop.f32.mrb[0].mxu0
    %v2632 = vadd.f32 0.0, %v2631
    %v2633 = vpop.f32.mrb[0].mxu0
    %v2634 = vpop.f32.mrb[0].mxu0
    %v2635 = vadd.f32 0.0, %v2634
    %v2636 = vpop.f32.mrb[0].mxu0
    %2637 = vmatprep.mubr.bf16.mxu0 0
    %2638 = vmatmul.mubr.bf16.gmra.mrb[0].mxu0 %v2491
    %v2639 = vpop.f32.mrb[0].mxu0
    %v2640 = vadd.f32 0.0, %v2639
    %v2641 = vpop.f32.mrb[0].mxu0
    %v2642 = vpop.f32.mrb[0].mxu0
    %v2643 = vadd.f32 0.0, %v2642
    %v2644 = vpop.f32.mrb[0].mxu0
    %2645 = vmatprep.mubr.bf16.mxu0 0
    %2646 = vmatmul.mubr.bf16.gmra.mrb[0].mxu0 %v2492
    %v2647 = vpop.f32.mrb[0].mxu0
    %v2648 = vadd.f32 0.0, %v2647
    %v2649 = vpop.f32.mrb[0].mxu0
    %v2650 = vpop.f32.mrb[0].mxu0
    %v2651 = vadd.f32 0.0, %v2650
    %v2652 = vpop.f32.mrb[0].mxu0
    %2653 = vdwg.mxu0
    %v2654 = vld [vmem:[#allocation11] sm:$0x1]
    %v2655 = vld [vmem:[#allocation13] sm:$0x1]
    %v2656 = vadd.f32 %v2592, %v2595
    %v2657 = vadd.f32 %v2656, %v2600
    %v2658 = vadd.f32 %v2657, %v2603
    %v2659 = vadd.f32 %v2658, %v2608
    %v2660 = vadd.f32 %v2659, %v2611
    %v2661 = vadd.f32 %v2660, %v2616
    %v2662 = vadd.f32 %v2661, %v2619
    %v2663 = vadd.f32 %v2662, %v2624
    %v2664 = vadd.f32 %v2663, %v2627
    %v2665 = vadd.f32 %v2664, %v2632
    %v2666 = vadd.f32 %v2665, %v2635
    %v2667 = vadd.f32 %v2666, %v2640
    %v2668 = vadd.f32 %v2667, %v2643
    %v2669 = vadd.f32 %v2668, %v2648
    %v2670 = vadd.f32 %v2669, %v2651
    %v2671 = vrot.slane %v2670, 4
    %v2672 = vadd.f32 %v2670, %v2671
    %v2673 = vrot.slane %v2672, 2
    %v2674 = vadd.f32 %v2672, %v2673
    %v2675 = vrot.slane %v2674, 1
    %v2676 = vadd.f32 %v2674, %v2675
    %v2677 = vmul.f32 %v2676, %v2297
    %v2678 = vmul.f32 %v2592, %v2592
    %v2679 = vmul.f32 %v2595, %v2595
    %v2680 = vmul.f32 %v2600, %v2600
    %v2681 = vmul.f32 %v2603, %v2603
    %v2682 = vmul.f32 %v2608, %v2608
    %v2683 = vmul.f32 %v2611, %v2611
    %v2684 = vmul.f32 %v2616, %v2616
    %v2685 = vmul.f32 %v2619, %v2619
    %v2686 = vmul.f32 %v2624, %v2624
    %v2687 = vmul.f32 %v2627, %v2627
    %v2688 = vmul.f32 %v2632, %v2632
    %v2689 = vmul.f32 %v2635, %v2635
    %v2690 = vmul.f32 %v2640, %v2640
    %v2691 = vmul.f32 %v2643, %v2643
    %v2692 = vmul.f32 %v2648, %v2648
    %v2693 = vmul.f32 %v2651, %v2651
    %v2694 = vadd.f32 %v2678, %v2679
    %v2695 = vadd.f32 %v2694, %v2680
    %v2696 = vadd.f32 %v2695, %v2681
    %v2697 = vadd.f32 %v2696, %v2682
    %v2698 = vadd.f32 %v2697, %v2683
    %v2699 = vadd.f32 %v2698, %v2684
    %v2700 = vadd.f32 %v2699, %v2685
    %v2701 = vadd.f32 %v2700, %v2686
    %v2702 = vadd.f32 %v2701, %v2687
    %v2703 = vadd.f32 %v2702, %v2688
    %v2704 = vadd.f32 %v2703, %v2689
    %v2705 = vadd.f32 %v2704, %v2690
    %v2706 = vadd.f32 %v2705, %v2691
    %v2707 = vadd.f32 %v2706, %v2692
    %v2708 = vadd.f32 %v2707, %v2693
    %v2709 = vrot.slane %v2708, 4
    %v2710 = vadd.f32 %v2708, %v2709
    %v2711 = vrot.slane %v2710, 2
    %v2712 = vadd.f32 %v2710, %v2711
    %v2713 = vrot.slane %v2712, 1
    %v2714 = vadd.f32 %v2712, %v2713
    %v2715 = vmul.f32 %v2714, %v2297
    %v2716 = vmul.f32 %v2677, %v2677
    %v2717 = vsub.f32 %v2715, %v2716
    %v2718 = vmax.f32 %v2717, 0.0
    %v2719 = vadd.f32 %v2718, 1e-05
    %v2720 = vrsqrt.pop %v2719
    %v2721 = vmul.f32 %v2654, %v2720
    %v2723 = vlaneseq
    %v2724 = vshrl.u32 %v2723, 7
    %v2725 = vsub.s32 0, %v2724
    %v2726 = vrot.slane %v2721, %v2725
    %v2728 = vmul.f32 %v2592, %v2726
    %v2729 = vmul.f32 %v2595, %v2726
    %v2730 = vmul.f32 %v2600, %v2726
    %v2731 = vmul.f32 %v2603, %v2726
    %v2732 = vmul.f32 %v2608, %v2726
    %v2733 = vmul.f32 %v2611, %v2726
    %v2734 = vmul.f32 %v2616, %v2726
    %v2735 = vmul.f32 %v2619, %v2726
    %v2736 = vmul.f32 %v2624, %v2726
    %v2737 = vmul.f32 %v2627, %v2726
    %v2738 = vmul.f32 %v2632, %v2726
    %v2739 = vmul.f32 %v2635, %v2726
    %v2740 = vmul.f32 %v2640, %v2726
    %v2741 = vmul.f32 %v2643, %v2726
    %v2742 = vmul.f32 %v2648, %v2726
    %v2743 = vmul.f32 %v2651, %v2726
    %v2744 = vmul.f32 %v2677, %v2721
    %v2745 = vsub.f32 %v2655, %v2744
    %v2747 = vlaneseq
    %v2748 = vshrl.u32 %v2747, 7
    %v2749 = vsub.s32 0, %v2748
    %v2750 = vrot.slane %v2745, %v2749
    %v2752 = vadd.f32 %v2728, %v2750
    %v2753 = vadd.f32 %v2729, %v2750
    %v2754 = vadd.f32 %v2730, %v2750
    %v2755 = vadd.f32 %v2731, %v2750
    %v2756 = vadd.f32 %v2732, %v2750
    %v2757 = vadd.f32 %v2733, %v2750
    %v2758 = vadd.f32 %v2734, %v2750
    %v2759 = vadd.f32 %v2735, %v2750
    %v2760 = vadd.f32 %v2736, %v2750
    %v2761 = vadd.f32 %v2737, %v2750
    %v2762 = vadd.f32 %v2738, %v2750
    %v2763 = vadd.f32 %v2739, %v2750
    %v2764 = vadd.f32 %v2740, %v2750
    %v2765 = vadd.f32 %v2741, %v2750
    %v2766 = vadd.f32 %v2742, %v2750
    %v2767 = vadd.f32 %v2743, %v2750
    %v2768 = vld [vmem:[#allocation14] sm:$0xf]
    %v2769 = vld [vmem:[#allocation14 + $0x4] sm:$0xf]
    %v2770 = vld [vmem:[#allocation14 + $0x8] sm:$0xf]
    %v2771 = vld [vmem:[#allocation14 + $0xc] sm:$0xf]
    %v2772 = vld [vmem:[#allocation14 + $0x10] sm:$0xf]
    %v2773 = vld [vmem:[#allocation14 + $0x14] sm:$0xf]
    %v2774 = vld [vmem:[#allocation14 + $0x18] sm:$0xf]
    %v2775 = vld [vmem:[#allocation14 + $0x1c] sm:$0xf]
    %v2776 = vld [vmem:[#allocation14 + $0x20] sm:$0xf]
    %v2777 = vld [vmem:[#allocation14 + $0x24] sm:$0xf]
    %v2778 = vld [vmem:[#allocation14 + $0x28] sm:$0xf]
    %v2779 = vld [vmem:[#allocation14 + $0x2c] sm:$0xf]
    %v2780 = vld [vmem:[#allocation14 + $0x30] sm:$0xf]
    %v2781 = vld [vmem:[#allocation14 + $0x34] sm:$0xf]
    %v2782 = vld [vmem:[#allocation14 + $0x38] sm:$0xf]
    %v2783 = vld [vmem:[#allocation14 + $0x3c] sm:$0xf]
    %v2784 = vld [vmem:[#allocation16] sm:$0xf]
    %v2785 = vld [vmem:[#allocation16 + $0x4] sm:$0xf]
    %v2786 = vld [vmem:[#allocation16 + $0x8] sm:$0xf]
    %v2787 = vld [vmem:[#allocation16 + $0xc] sm:$0xf]
    %v2804 = vunpack.c.l.b16 %v2768
    %v2805 = vunpack.c.l.b16 %v2769
    %v2806 = vunpack.c.l.b16 %v2770
    %v2807 = vunpack.c.l.b16 %v2771
    %v2808 = vunpack.c.l.b16 %v2772
    %v2809 = vunpack.c.l.b16 %v2773
    %v2810 = vunpack.c.l.b16 %v2774
    %v2811 = vunpack.c.l.b16 %v2775
    %v2812 = vunpack.c.l.b16 %v2776
    %v2813 = vunpack.c.l.b16 %v2777
    %v2814 = vunpack.c.l.b16 %v2778
    %v2815 = vunpack.c.l.b16 %v2779
    %v2816 = vunpack.c.l.b16 %v2780
    %v2817 = vunpack.c.l.b16 %v2781
    %v2818 = vunpack.c.l.b16 %v2782
    %v2819 = vunpack.c.l.b16 %v2783
    %v2820 = vpack.c.b16 %v2805, %v2804
    %v2821 = vpack.c.b16 %v2807, %v2806
    %v2822 = vpack.c.b16 %v2809, %v2808
    %v2823 = vpack.c.b16 %v2811, %v2810
    %v2824 = vpack.c.b16 %v2813, %v2812
    %v2825 = vpack.c.b16 %v2815, %v2814
    %v2826 = vpack.c.b16 %v2817, %v2816
    %v2827 = vpack.c.b16 %v2819, %v2818
    %v2832 = vunpack.c.l.b16 %v2784
    %v2833 = vunpack.c.l.b16 %v2785
    %v2834 = vunpack.c.l.b16 %v2786
    %v2835 = vunpack.c.l.b16 %v2787
    %v2836 = vpack.c.b16 %v2833, %v2832
    %v2837 = vpack.c.b16 %v2835, %v2834
    %vm2840 = vcmask 261120
    %v2842 = vsel %vm2840, %v2820, 0
    %v2845 = vsel %vm2840, %v2821, 0
    %v2848 = vsel %vm2840, %v2822, 0
    %v2851 = vsel %vm2840, %v2823, 0
    %v2854 = vsel %vm2840, %v2824, 0
    %v2857 = vsel %vm2840, %v2825, 0
    %v2860 = vsel %vm2840, %v2826, 0
    %v2863 = vsel %vm2840, %v2827, 0
    %2865 = vmatprep.subr.bf16.mxu0 0
    %2866 = vmatpush1.bf16.msra.mxu0 %v2836
    %2867 = vmatprep.subr.bf16.mxu0 0
    %2868 = vmatpush1.bf16.msra.mxu0 %v2837
    %2869 = vmatprep.subr.bf16.mxu0 0
    %2870 = vmatpush1.bf16.msra.mxu0 0
    %2871 = vmatprep.subr.bf16.mxu0 0
    %2872 = vmatpush1.bf16.msra.mxu0 0
    %2873 = vmatprep.subr.bf16.mxu0 0
    %2874 = vmatpush1.bf16.msra.mxu0 0
    %2875 = vmatprep.subr.bf16.mxu0 0
    %2876 = vmatpush1.bf16.msra.mxu0 0
    %2877 = vmatprep.subr.bf16.mxu0 0
    %2878 = vmatpush1.bf16.msra.mxu0 0
    %2879 = vmatprep.subr.bf16.mxu0 0
    %2880 = vmatpush1.bf16.msra.mxu0 0
    %2881 = vmatprep.subr.bf16.mxu0 0
    %2882 = vmatpush1.bf16.msra.mxu0 0
    %2883 = vmatprep.subr.bf16.mxu0 0
    %2884 = vmatpush1.bf16.msra.mxu0 0
    %2885 = vmatprep.subr.bf16.mxu0 0
    %2886 = vmatpush1.bf16.msra.mxu0 0
    %2887 = vmatprep.subr.bf16.mxu0 0
    %2888 = vmatpush1.bf16.msra.mxu0 0
    %2889 = vmatprep.subr.bf16.mxu0 0
    %2890 = vmatpush1.bf16.msra.mxu0 0
    %2891 = vmatprep.subr.bf16.mxu0 0
    %2892 = vmatpush1.bf16.msra.mxu0 0
    %2893 = vmatprep.subr.bf16.mxu0 0
    %2894 = vmatpush1.bf16.msra.mxu0 0
    %2895 = vmatprep.subr.bf16.mxu0 0
    %2896 = vmatpush1.bf16.msra.mxu0 0
    %2897 = vmatprep.mubr.bf16.mxu0 0
    %2898 = vmatmul.mubr.bf16.gmra.mrb[0].mxu0 %v2842
    %v2899 = vpop.f32.mrb[0].mxu0
    %v2900 = vadd.f32 0.0, %v2899
    %v2901 = vpop.f32.mrb[0].mxu0
    %v2902 = vpop.f32.mrb[0].mxu0
    %v2903 = vadd.f32 0.0, %v2902
    %v2904 = vpop.f32.mrb[0].mxu0
    %2905 = vmatprep.mubr.bf16.mxu0 0
    %2906 = vmatmul.mubr.bf16.gmra.mrb[0].mxu0 %v2845
    %v2907 = vpop.f32.mrb[0].mxu0
    %v2908 = vadd.f32 0.0, %v2907
    %v2909 = vpop.f32.mrb[0].mxu0
    %v2910 = vpop.f32.mrb[0].mxu0
    %v2911 = vadd.f32 0.0, %v2910
    %v2912 = vpop.f32.mrb[0].mxu0
    %2913 = vmatprep.mubr.bf16.mxu0 0
    %2914 = vmatmul.mubr.bf16.gmra.mrb[0].mxu0 %v2848
    %v2915 = vpop.f32.mrb[0].mxu0
    %v2916 = vadd.f32 0.0, %v2915
    %v2917 = vpop.f32.mrb[0].mxu0
    %v2918 = vpop.f32.mrb[0].mxu0
    %v2919 = vadd.f32 0.0, %v2918
    %v2920 = vpop.f32.mrb[0].mxu0
    %2921 = vmatprep.mubr.bf16.mxu0 0
    %2922 = vmatmul.mubr.bf16.gmra.mrb[0].mxu0 %v2851
    %v2923 = vpop.f32.mrb[0].mxu0
    %v2924 = vadd.f32 0.0, %v2923
    %v2925 = vpop.f32.mrb[0].mxu0
    %v2926 = vpop.f32.mrb[0].mxu0
    %v2927 = vadd.f32 0.0, %v2926
    %v2928 = vpop.f32.mrb[0].mxu0
    %2929 = vmatprep.mubr.bf16.mxu0 0
    %2930 = vmatmul.mubr.bf16.gmra.mrb[0].mxu0 %v2854
    %v2931 = vpop.f32.mrb[0].mxu0
    %v2932 = vadd.f32 0.0, %v2931
    %v2933 = vpop.f32.mrb[0].mxu0
    %v2934 = vpop.f32.mrb[0].mxu0
    %v2935 = vadd.f32 0.0, %v2934
    %v2936 = vpop.f32.mrb[0].mxu0
    %2937 = vmatprep.mubr.bf16.mxu0 0
    %2938 = vmatmul.mubr.bf16.gmra.mrb[0].mxu0 %v2857
    %v2939 = vpop.f32.mrb[0].mxu0
    %v2940 = vadd.f32 0.0, %v2939
    %v2941 = vpop.f32.mrb[0].mxu0
    %v2942 = vpop.f32.mrb[0].mxu0
    %v2943 = vadd.f32 0.0, %v2942
    %v2944 = vpop.f32.mrb[0].mxu0
    %2945 = vmatprep.mubr.bf16.mxu0 0
    %2946 = vmatmul.mubr.bf16.gmra.mrb[0].mxu0 %v2860
    %v2947 = vpop.f32.mrb[0].mxu0
    %v2948 = vadd.f32 0.0, %v2947
    %v2949 = vpop.f32.mrb[0].mxu0
    %v2950 = vpop.f32.mrb[0].mxu0
    %v2951 = vadd.f32 0.0, %v2950
    %v2952 = vpop.f32.mrb[0].mxu0
    %2953 = vmatprep.mubr.bf16.mxu0 0
    %2954 = vmatmul.mubr.bf16.gmra.mrb[0].mxu0 %v2863
    %v2955 = vpop.f32.mrb[0].mxu0
    %v2956 = vadd.f32 0.0, %v2955
    %v2957 = vpop.f32.mrb[0].mxu0
    %v2958 = vpop.f32.mrb[0].mxu0
    %v2959 = vadd.f32 0.0, %v2958
    %v2960 = vpop.f32.mrb[0].mxu0
    %2961 = vdwg.mxu0
    %v2962 = vld [vmem:[#allocation17] sm:$0x1]
    %v2963 = vld [vmem:[#allocation19] sm:$0x1]
    %v2964 = vadd.f32 %v2900, %v2903
    %v2965 = vadd.f32 %v2964, %v2908
    %v2966 = vadd.f32 %v2965, %v2911
    %v2967 = vadd.f32 %v2966, %v2916
    %v2968 = vadd.f32 %v2967, %v2919
    %v2969 = vadd.f32 %v2968, %v2924
    %v2970 = vadd.f32 %v2969, %v2927
    %v2971 = vadd.f32 %v2970, %v2932
    %v2972 = vadd.f32 %v2971, %v2935
    %v2973 = vadd.f32 %v2972, %v2940
    %v2974 = vadd.f32 %v2973, %v2943
    %v2975 = vadd.f32 %v2974, %v2948
    %v2976 = vadd.f32 %v2975, %v2951
    %v2977 = vadd.f32 %v2976, %v2956
    %v2978 = vadd.f32 %v2977, %v2959
    %v2979 = vrot.slane %v2978, 4
    %v2980 = vadd.f32 %v2978, %v2979
    %v2981 = vrot.slane %v2980, 2
    %v2982 = vadd.f32 %v2980, %v2981
    %v2983 = vrot.slane %v2982, 1
    %v2984 = vadd.f32 %v2982, %v2983
    %v2985 = vmul.f32 %v2984, %v2297
    %v2986 = vmul.f32 %v2900, %v2900
    %v2987 = vmul.f32 %v2903, %v2903
    %v2988 = vmul.f32 %v2908, %v2908
    %v2989 = vmul.f32 %v2911, %v2911
    %v2990 = vmul.f32 %v2916, %v2916
    %v2991 = vmul.f32 %v2919, %v2919
    %v2992 = vmul.f32 %v2924, %v2924
    %v2993 = vmul.f32 %v2927, %v2927
    %v2994 = vmul.f32 %v2932, %v2932
    %v2995 = vmul.f32 %v2935, %v2935
    %v2996 = vmul.f32 %v2940, %v2940
    %v2997 = vmul.f32 %v2943, %v2943
    %v2998 = vmul.f32 %v2948, %v2948
    %v2999 = vmul.f32 %v2951, %v2951
    %v3000 = vmul.f32 %v2956, %v2956
    %v3001 = vmul.f32 %v2959, %v2959
    %v3002 = vadd.f32 %v2986, %v2987
    %v3003 = vadd.f32 %v3002, %v2988
    %v3004 = vadd.f32 %v3003, %v2989
    %v3005 = vadd.f32 %v3004, %v2990
    %v3006 = vadd.f32 %v3005, %v2991
    %v3007 = vadd.f32 %v3006, %v2992
    %v3008 = vadd.f32 %v3007, %v2993
    %v3009 = vadd.f32 %v3008, %v2994
    %v3010 = vadd.f32 %v3009, %v2995
    %v3011 = vadd.f32 %v3010, %v2996
    %v3012 = vadd.f32 %v3011, %v2997
    %v3013 = vadd.f32 %v3012, %v2998
    %v3014 = vadd.f32 %v3013, %v2999
    %v3015 = vadd.f32 %v3014, %v3000
    %v3016 = vadd.f32 %v3015, %v3001
    %v3017 = vrot.slane %v3016, 4
    %v3018 = vadd.f32 %v3016, %v3017
    %v3019 = vrot.slane %v3018, 2
    %v3020 = vadd.f32 %v3018, %v3019
    %v3021 = vrot.slane %v3020, 1
    %v3022 = vadd.f32 %v3020, %v3021
    %v3023 = vmul.f32 %v3022, %v2297
    %v3024 = vmul.f32 %v2985, %v2985
    %v3025 = vsub.f32 %v3023, %v3024
    %v3026 = vmax.f32 %v3025, 0.0
    %v3027 = vadd.f32 %v3026, 1e-05
    %v3028 = vrsqrt.pop %v3027
    %v3029 = vmul.f32 %v2962, %v3028
    %v3031 = vlaneseq
    %v3032 = vshrl.u32 %v3031, 7
    %v3033 = vsub.s32 0, %v3032
    %v3034 = vrot.slane %v3029, %v3033
    %v3036 = vmul.f32 %v2900, %v3034
    %v3037 = vmul.f32 %v2903, %v3034
    %v3038 = vmul.f32 %v2908, %v3034
    %v3039 = vmul.f32 %v2911, %v3034
    %v3040 = vmul.f32 %v2916, %v3034
    %v3041 = vmul.f32 %v2919, %v3034
    %v3042 = vmul.f32 %v2924, %v3034
    %v3043 = vmul.f32 %v2927, %v3034
    %v3044 = vmul.f32 %v2932, %v3034
    %v3045 = vmul.f32 %v2935, %v3034
    %v3046 = vmul.f32 %v2940, %v3034
    %v3047 = vmul.f32 %v2943, %v3034
    %v3048 = vmul.f32 %v2948, %v3034
    %v3049 = vmul.f32 %v2951, %v3034
    %v3050 = vmul.f32 %v2956, %v3034
    %v3051 = vmul.f32 %v2959, %v3034
    %v3052 = vmul.f32 %v2985, %v3029
    %v3053 = vsub.f32 %v2963, %v3052
    %v3055 = vlaneseq
    %v3056 = vshrl.u32 %v3055, 7
    %v3057 = vsub.s32 0, %v3056
    %v3058 = vrot.slane %v3053, %v3057
    %v3060 = vadd.f32 %v3036, %v3058
    %v3061 = vadd.f32 %v3037, %v3058
    %v3062 = vadd.f32 %v3038, %v3058
    %v3063 = vadd.f32 %v3039, %v3058
    %v3064 = vadd.f32 %v3040, %v3058
    %v3065 = vadd.f32 %v3041, %v3058
    %v3066 = vadd.f32 %v3042, %v3058
    %v3067 = vadd.f32 %v3043, %v3058
    %v3068 = vadd.f32 %v3044, %v3058
    %v3069 = vadd.f32 %v3045, %v3058
    %v3070 = vadd.f32 %v3046, %v3058
    %v3071 = vadd.f32 %v3047, %v3058
    %v3072 = vadd.f32 %v3048, %v3058
    %v3073 = vadd.f32 %v3049, %v3058
    %v3074 = vadd.f32 %v3050, %v3058
    %v3075 = vadd.f32 %v3051, %v3058
    %v3076 = vadd.f32 %v2752, %v3060
    %v3077 = vadd.f32 %v2753, %v3061
    %v3078 = vadd.f32 %v2754, %v3062
    %v3079 = vadd.f32 %v2755, %v3063
    %v3080 = vadd.f32 %v2756, %v3064
    %v3081 = vadd.f32 %v2757, %v3065
    %v3082 = vadd.f32 %v2758, %v3066
    %v3083 = vadd.f32 %v2759, %v3067
    %v3084 = vadd.f32 %v2760, %v3068
    %v3085 = vadd.f32 %v2761, %v3069
    %v3086 = vadd.f32 %v2762, %v3070
    %v3087 = vadd.f32 %v2763, %v3071
    %v3088 = vadd.f32 %v2764, %v3072
    %v3089 = vadd.f32 %v2765, %v3073
    %v3090 = vadd.f32 %v2766, %v3074
    %v3091 = vadd.f32 %v2767, %v3075
    %v3092 = vxor.u32 %v3076, 2147483648
    %v3093 = vxor.u32 %v3077, 2147483648
    %v3094 = vxor.u32 %v3078, 2147483648
    %v3095 = vxor.u32 %v3079, 2147483648
    %v3096 = vxor.u32 %v3080, 2147483648
    %v3097 = vxor.u32 %v3081, 2147483648
    %v3098 = vxor.u32 %v3082, 2147483648
    %v3099 = vxor.u32 %v3083, 2147483648
    %v3100 = vxor.u32 %v3084, 2147483648
    %v3101 = vxor.u32 %v3085, 2147483648
    %v3102 = vxor.u32 %v3086, 2147483648
    %v3103 = vxor.u32 %v3087, 2147483648
    %v3104 = vxor.u32 %v3088, 2147483648
    %v3105 = vxor.u32 %v3089, 2147483648
    %v3106 = vxor.u32 %v3090, 2147483648
    %v3107 = vxor.u32 %v3091, 2147483648
    %v3108 = vmul.f32 %v3092, 1.442695
    %v3109 = vpow.pop %v3108
    %v3110 = vmul.f32 %v3093, 1.442695
    %v3111 = vpow.pop %v3110
    %v3112 = vmul.f32 %v3094, 1.442695
    %v3113 = vpow.pop %v3112
    %v3114 = vmul.f32 %v3095, 1.442695
    %v3115 = vpow.pop %v3114
    %v3116 = vmul.f32 %v3096, 1.442695
    %v3117 = vpow.pop %v3116
    %v3118 = vmul.f32 %v3097, 1.442695
    %v3119 = vpow.pop %v3118
    %v3120 = vmul.f32 %v3098, 1.442695
    %v3121 = vpow.pop %v3120
    %v3122 = vmul.f32 %v3099, 1.442695
    %v3123 = vpow.pop %v3122
    %v3124 = vmul.f32 %v3100, 1.442695
    %v3125 = vpow.pop %v3124
    %v3126 = vmul.f32 %v3101, 1.442695
    %v3127 = vpow.pop %v3126
    %v3128 = vmul.f32 %v3102, 1.442695
    %v3129 = vpow.pop %v3128
    %v3130 = vmul.f32 %v3103, 1.442695
    %v3131 = vpow.pop %v3130
    %v3132 = vmul.f32 %v3104, 1.442695
    %v3133 = vpow.pop %v3132
    %v3134 = vmul.f32 %v3105, 1.442695
    %v3135 = vpow.pop %v3134
    %v3136 = vmul.f32 %v3106, 1.442695
    %v3137 = vpow.pop %v3136
    %v3138 = vmul.f32 %v3107, 1.442695
    %v3139 = vpow.pop %v3138
    %v3140 = vadd.f32 %v3109, 1.0
    %v3141 = vadd.f32 %v3111, 1.0
    %v3142 = vadd.f32 %v3113, 1.0
    %v3143 = vadd.f32 %v3115, 1.0
    %v3144 = vadd.f32 %v3117, 1.0
    %v3145 = vadd.f32 %v3119, 1.0
    %v3146 = vadd.f32 %v3121, 1.0
    %v3147 = vadd.f32 %v3123, 1.0
    %v3148 = vadd.f32 %v3125, 1.0
    %v3149 = vadd.f32 %v3127, 1.0
    %v3150 = vadd.f32 %v3129, 1.0
    %v3151 = vadd.f32 %v3131, 1.0
    %v3152 = vadd.f32 %v3133, 1.0
    %v3153 = vadd.f32 %v3135, 1.0
    %v3154 = vadd.f32 %v3137, 1.0
    %v3155 = vadd.f32 %v3139, 1.0
    %v3156 = vrcp.pop %v3140
    %v3157 = vmul.f32 1.0, %v3156
    %v3158 = vrcp.pop %v3141
    %v3159 = vmul.f32 1.0, %v3158
    %v3160 = vrcp.pop %v3142
    %v3161 = vmul.f32 1.0, %v3160
    %v3162 = vrcp.pop %v3143
    %v3163 = vmul.f32 1.0, %v3162
    %v3164 = vrcp.pop %v3144
    %v3165 = vmul.f32 1.0, %v3164
    %v3166 = vrcp.pop %v3145
    %v3167 = vmul.f32 1.0, %v3166
    %v3168 = vrcp.pop %v3146
    %v3169 = vmul.f32 1.0, %v3168
    %v3170 = vrcp.pop %v3147
    %v3171 = vmul.f32 1.0, %v3170
    %v3172 = vrcp.pop %v3148
    %v3173 = vmul.f32 1.0, %v3172
    %v3174 = vrcp.pop %v3149
    %v3175 = vmul.f32 1.0, %v3174
    %v3176 = vrcp.pop %v3150
    %v3177 = vmul.f32 1.0, %v3176
    %v3178 = vrcp.pop %v3151
    %v3179 = vmul.f32 1.0, %v3178
    %v3180 = vrcp.pop %v3152
    %v3181 = vmul.f32 1.0, %v3180
    %v3182 = vrcp.pop %v3153
    %v3183 = vmul.f32 1.0, %v3182
    %v3184 = vrcp.pop %v3154
    %v3185 = vmul.f32 1.0, %v3184
    %v3186 = vrcp.pop %v3155
    %v3187 = vmul.f32 1.0, %v3186
    %3188 = vst [vmem:[#allocation20] sm:$0xff] %v3157
    %3189 = vst [vmem:[#allocation20 + $0x8] sm:$0xff] %v3159
    %3190 = vst [vmem:[#allocation20 + $0x10] sm:$0xff] %v3161
    %3191 = vst [vmem:[#allocation20 + $0x18] sm:$0xff] %v3163
    %3192 = vst [vmem:[#allocation20 + $0x20] sm:$0xff] %v3165
    %3193 = vst [vmem:[#allocation20 + $0x28] sm:$0xff] %v3167
    %3194 = vst [vmem:[#allocation20 + $0x30] sm:$0xff] %v3169
    %3195 = vst [vmem:[#allocation20 + $0x38] sm:$0xff] %v3171
    %3196 = vst [vmem:[#allocation20 + $0x40] sm:$0xff] %v3173
    %3197 = vst [vmem:[#allocation20 + $0x48] sm:$0xff] %v3175
    %3198 = vst [vmem:[#allocation20 + $0x50] sm:$0xff] %v3177
    %3199 = vst [vmem:[#allocation20 + $0x58] sm:$0xff] %v3179
    %3200 = vst [vmem:[#allocation20 + $0x60] sm:$0xff] %v3181
    %3201 = vst [vmem:[#allocation20 + $0x68] sm:$0xff] %v3183
    %3202 = vst [vmem:[#allocation20 + $0x70] sm:$0xff] %v3185
    %3203 = vst [vmem:[#allocation20 + $0x78] sm:$0xff] %v3187
    // Predicated region
    $region90: #{bottleneck_forward.3} parent=1 // pred_check
      _
    $region91: #{bottleneck_forward.3} parent=1 // pred_check_branch
      %3205 = sbr.rel (0) target = $region93
    $region92: #{bottleneck_forward.3} parent=1 // pred_region
      %s3207 = ssub.s32 2048, 2048
      %3208 = vsyncadd [#allocation4], %s3207
      %s3209 = sshll.u32 [#allocation20], 4
      %s3210 = int_to_ptr.vmem [resolvable:$true] %s3209
      %3215 = dma.vmem_to_hbm [thread:$0]  %s3210, 2048, %s11, [#allocation4], 128, 128, 8
    $region93: #{bottleneck_forward.3} parent=1 // pred_fallthru
      _
    // Predicated region
    $region94: #{bottleneck_forward.3} parent=1 // pred_check
      _
    $region95: #{bottleneck_forward.3} parent=1 // pred_check_branch
      %3217 = sbr.rel (0) target = $region97
    $region96: #{bottleneck_forward.3} parent=1 // pred_region
      %3218 = dma.done [#allocation4], 2048
    $region97: #{bottleneck_forward.3} parent=1 // pred_fallthru
      _
    %3219 = vsyncpa [#allocation3], 1
    %3220 = vsyncpa [#allocation6], 1
    %3221 = vsyncpa [#allocation9], 1
    %3222 = vsyncpa [#allocation12], 1
    %3223 = vsyncpa [#allocation15], 1
    %3224 = vsyncpa [#allocation18], 1
    %3225 = vsyncpa [#allocation4], 1

</llo_original>
